<compile_context>
chip_gen: v7x
topology: tpu7x:2x2x1
jax: 0.10.0
libtpu: 0.0.40
codegen_flags: <defaults>
</compile_context>

<pallas_src>
import math

import jax
import jax.numpy as jnp
from jax.experimental import pallas as pl
from jax.experimental.pallas import tpu as pltpu


D_MODEL = 128           # lane-dense (multiple of 128)
N_HEADS = 4
D_HEAD = D_MODEL // N_HEADS
D_FF = 256              # lane-dense
EPS = 1e-6
NEG_INF = -1e9


# ---------------------------------------------------------------------------
# Fused Pallas kernel: TB sequences per grid step, batch folded into M.
# ---------------------------------------------------------------------------
def _layer_norm(x, gamma, beta):
    """torch LayerNorm variant from the spec: unbiased std, divide by (std+eps)."""
    d = x.shape[-1]
    mean = jnp.mean(x, axis=-1, keepdims=True)
    diff = x - mean
    var = jnp.sum(diff * diff, axis=-1, keepdims=True) / (d - 1)   # ddof=1
    std = jnp.sqrt(var)
    return gamma * diff / (std + EPS) + beta


def transformer_block_kernel(x_ref, bias_ref,
                             ln1_g_ref, ln1_b_ref,
                             wqkv_ref, bqkv_ref,
                             wo_ref, bo_ref,
                             ln2_g_ref, ln2_b_ref,
                             w1_ref, b1_ref,
                             w2_ref, b2_ref,
                             o_ref):
    TB, S, D = x_ref.shape
    M = TB * S

    x = x_ref[...].reshape(M, D)          # (M, D) f32 slab — batch folded into M
    bias = bias_ref[...]                  # (TB, S, S) additive mask bias (0 / -1e9)

    # ---- sublayer 0: x + dropout(self_attn(norm1(x)))  (dropout p=0 -> identity)
    y = _layer_norm(x, ln1_g_ref[...], ln1_b_ref[...])
    qkv = (jnp.dot(y.astype(jnp.bfloat16), wqkv_ref[...],
                   preferred_element_type=jnp.float32)
           + bqkv_ref[...])                                   # (M, 3D), fused QKV
    qkv3 = qkv.reshape(TB, S, 3 * D)

    inv_sqrt_dk = 1.0 / math.sqrt(D_HEAD)
    attn = jnp.zeros((M, D), jnp.float32)
    for h in range(N_HEADS):                                  # static unroll
        lo = h * D_HEAD
        qh = qkv3[:, :, 0 * D + lo: 0 * D + lo + D_HEAD]      # (TB, S, dk)
        kh = qkv3[:, :, 1 * D + lo: 1 * D + lo + D_HEAD]
        vh = qkv3[:, :, 2 * D + lo: 2 * D + lo + D_HEAD]
        # scores = q @ k^T / sqrt(d_k), per sequence (batched over TB)
        s = jnp.einsum("bqd,bkd->bqk", qh, kh,
                       preferred_element_type=jnp.float32) * inv_sqrt_dk
        s = s + bias                                          # additive mask bias
        s = s - jnp.max(s, axis=-1, keepdims=True)
        p = jnp.exp(s)
        p = p * pl.reciprocal(jnp.sum(p, axis=-1, keepdims=True), approx=True)
        oh = jnp.einsum("bqk,bkd->bqd", p, vh,
                        preferred_element_type=jnp.float32)   # (TB, S, dk)
        # accumulate this head's output projection directly (no concat)
        attn = attn + jnp.dot(oh.reshape(M, D_HEAD).astype(jnp.bfloat16),
                              wo_ref[lo:lo + D_HEAD, :],
                              preferred_element_type=jnp.float32)
    x1 = x + attn + bo_ref[...]

    # ---- sublayer 1: x + dropout(feed_forward(norm2(x)))
    y2 = _layer_norm(x1, ln2_g_ref[...], ln2_b_ref[...])
    hdn = jnp.maximum(
        jnp.dot(y2.astype(jnp.bfloat16), w1_ref[...],
                preferred_element_type=jnp.float32) + b1_ref[...],
        0.0)
    ffn = (jnp.dot(hdn.astype(jnp.bfloat16), w2_ref[...],
                   preferred_element_type=jnp.float32)
           + b2_ref[...])
    o_ref[...] = (x1 + ffn).reshape(TB, S, D)


# ---------------------------------------------------------------------------
# Wrapper: single pallas_call, batch-tiled grid, weights resident in VMEM.
# ---------------------------------------------------------------------------
def _choose_batch_tile(B, S, target_rows=256):
    """Pick TB so TB*S rows fill the MXU, keeping >= 2 grid steps (v7x megacore)."""
    tb = max(1, min(B, -(-target_rows // S)))   # ceil(target_rows / S), capped at B
    while B % tb:
        tb -= 1
    if B // tb < 2 and B >= 2:
        tb = max(1, B // 2)
        while B % tb:
            tb -= 1
    return tb


@jax.jit
def transformer_block(x, mask, params):
    B, S, D = x.shape
    TB = _choose_batch_tile(B, S)

    # Hoist the mask compare out of the kernel: precompute additive bias.
    # NOTE: for fully-masked rows this differs from masked_fill semantics
    # (softmax of original scores vs uniform); no such rows exist with a
    # causal / padding mask that always attends to self.
    mask_bias = jnp.where(mask == 0.0, jnp.float32(NEG_INF), jnp.float32(0.0))

    # Weights as (in, out); matmul weights stored bf16 (MXU fast path), biases
    # and LayerNorm params stay f32.
    weight_args = (
        params["ln1_g"], params["ln1_b"],
        params["wqkv"].astype(jnp.bfloat16), params["bqkv"],
        params["wo"].astype(jnp.bfloat16), params["bo"],
        params["ln2_g"], params["ln2_b"],
        params["w1"].astype(jnp.bfloat16), params["b1"],
        params["w2"].astype(jnp.bfloat16), params["b2"],
    )

    def full_spec(a):
        return pl.BlockSpec(a.shape, lambda b: (0,) * a.ndim)  # resident weight

    in_specs = [pl.BlockSpec((TB, S, D), lambda b: (b, 0, 0)),  # x
                pl.BlockSpec((TB, S, S), lambda b: (b, 0, 0))]  # mask bias
    in_specs += [full_spec(w) for w in weight_args]

    flops = 2 * B * S * (D * 3 * D      # QKV projection
                         + 2 * S * D    # scores + p@v (summed over heads)
                         + D * D        # output projection
                         + 2 * D * D_FF)  # FFN
    transc = B * N_HEADS * S * (S + 1)    # exp + reciprocal
    bytes_accessed = (x.size * 4 + mask_bias.size * 4 + B * S * D * 4
                      + sum(int(w.size) * w.dtype.itemsize for w in weight_args))

    return pl.pallas_call(
        transformer_block_kernel,
        out_shape=jax.ShapeDtypeStruct((B, S, D), jnp.float32),
        grid=(B // TB,),
        in_specs=in_specs,
        out_specs=pl.BlockSpec((TB, S, D), lambda b: (b, 0, 0)),
        compiler_params=pltpu.CompilerParams(
            dimension_semantics=("parallel",)),
        cost_estimate=pl.CostEstimate(flops=int(flops),
                                      transcendentals=int(transc),
                                      bytes_accessed=int(bytes_accessed)),
    )(x, mask_bias, *weight_args)


# ---------------------------------------------------------------------------
# Deterministic parameter init (weights stored as (in, out), f32 master copies).
# ---------------------------------------------------------------------------
def init_params(key):
    ks = jax.random.split(key, 8)

    def unif(k, shape, scale):
        return jax.random.uniform(k, shape, jnp.float32, -scale, scale)

    s = 1.0 / math.sqrt(D_MODEL)
    sf = 1.0 / math.sqrt(D_FF)
    return {
        "ln1_g": jnp.ones((1, D_MODEL), jnp.float32),
        "ln1_b": jnp.zeros((1, D_MODEL), jnp.float32),
        "wqkv": unif(ks[0], (D_MODEL, 3 * D_MODEL), s),   # [Wq | Wk | Wv]
        "bqkv": unif(ks[1], (1, 3 * D_MODEL), s),
        "wo":   unif(ks[2], (D_MODEL, D_MODEL), s),
        "bo":   unif(ks[3], (1, D_MODEL), s),
        "ln2_g": jnp.ones((1, D_MODEL), jnp.float32),
        "ln2_b": jnp.zeros((1, D_MODEL), jnp.float32),
        "w1":   unif(ks[4], (D_MODEL, D_FF), s),
        "b1":   unif(ks[5], (1, D_FF), s),
        "w2":   unif(ks[6], (D_FF, D_MODEL), sf),
        "b2":   unif(ks[7], (1, D_MODEL), sf),
    }


# ---------------------------------------------------------------------------
# Pure-JAX reference (f32, HIGHEST precision) for the correctness check.
# ---------------------------------------------------------------------------
def reference(x, mask, params):
    hp = jax.lax.Precision.HIGHEST

    def layer_norm(t, g, b):
        d = t.shape[-1]
        mean = jnp.mean(t, axis=-1, keepdims=True)
        diff = t - mean
        std = jnp.sqrt(jnp.sum(diff * diff, axis=-1, keepdims=True) / (d - 1))
        return g * diff / (std + EPS) + b

    B, S, D = x.shape
    y = layer_norm(x, params["ln1_g"], params["ln1_b"])
    qkv = jnp.einsum("bsd,df->bsf", y, params["wqkv"], precision=hp) + params["bqkv"]
    q, k, v = jnp.split(qkv, 3, axis=-1)
    q = q.reshape(B, S, N_HEADS, D_HEAD).transpose(0, 2, 1, 3)
    k = k.reshape(B, S, N_HEADS, D_HEAD).transpose(0, 2, 1, 3)
    v = v.reshape(B, S, N_HEADS, D_HEAD).transpose(0, 2, 1, 3)
    scores = jnp.einsum("bhqd,bhkd->bhqk", q, k, precision=hp) / math.sqrt(D_HEAD)
    scores = jnp.where(mask[:, None, :, :] == 0.0, NEG_INF, scores)
    p = jax.nn.softmax(scores, axis=-1)
    o = jnp.einsum("bhqk,bhkd->bhqd", p, v, precision=hp)
    o = o.transpose(0, 2, 1, 3).reshape(B, S, D)
    attn = jnp.einsum("bsd,df->bsf", o, params["wo"], precision=hp) + params["bo"]
    x1 = x + attn
    y2 = layer_norm(x1, params["ln2_g"], params["ln2_b"])
    hdn = jnp.maximum(
        jnp.einsum("bsd,df->bsf", y2, params["w1"], precision=hp) + params["b1"], 0.0)
    ffn = jnp.einsum("bsf,fd->bsd", hdn, params["w2"], precision=hp) + params["b2"]
    return x1 + ffn


# ---------------------------------------------------------------------------
if __name__ == "__main__":
    B, S = 8, 8

    key = jax.random.PRNGKey(0)
    k_p, k_x = jax.random.split(key)
    params = init_params(k_p)

    x = jax.random.normal(k_x, (B, S, D_MODEL), jnp.float32)
    # causal mask (1 = attend, 0 = masked), as consumed by self_attn(x, x, x, mask)
    mask = jnp.tile(jnp.tril(jnp.ones((S, S), jnp.float32))[None], (B, 1, 1))

    out = transformer_block(x, mask, params)
    jax.block_until_ready(out)

    ref = reference(x, mask, params)
    assert out.shape == (B, S, D_MODEL)
    max_err = float(jnp.max(jnp.abs(out - ref)))
    # bf16 MXU operands (f32 accumulate) vs f32 HIGHEST reference -> looser tol.
    assert jnp.allclose(out, ref, atol=3e-2, rtol=3e-2), f"max_err={max_err}"

    # TODO(synk): self_attn / feed_forward are constructor-injected nn.Modules in
    # the spec; the canonical multi-head attention + Linear-ReLU-Linear FFN are
    # implemented here. Dropout (p=0 / eval) is the identity and is omitted.
    print("KERNEL_OK")
</pallas_src>

<mosaic_0001>
module attributes {stable_mosaic.version = 11 : i64} {
  func.func @transformer_block_kernel(%arg0: i32, %arg1: memref<4x8x128xf32, #tpu.memory_space<vmem>>, %arg2: memref<4x8x8xf32, #tpu.memory_space<vmem>>, %arg3: memref<1x128xf32, #tpu.memory_space<vmem>>, %arg4: memref<1x128xf32, #tpu.memory_space<vmem>>, %arg5: memref<128x384xbf16, #tpu.memory_space<vmem>>, %arg6: memref<1x384xf32, #tpu.memory_space<vmem>>, %arg7: memref<128x128xbf16, #tpu.memory_space<vmem>>, %arg8: memref<1x128xf32, #tpu.memory_space<vmem>>, %arg9: memref<1x128xf32, #tpu.memory_space<vmem>>, %arg10: memref<1x128xf32, #tpu.memory_space<vmem>>, %arg11: memref<128x256xbf16, #tpu.memory_space<vmem>>, %arg12: memref<1x256xf32, #tpu.memory_space<vmem>>, %arg13: memref<256x128xbf16, #tpu.memory_space<vmem>>, %arg14: memref<1x128xf32, #tpu.memory_space<vmem>>, %arg15: memref<4x8x128xf32, #tpu.memory_space<vmem>>) attributes {dimension_semantics = [#tpu.dimension_semantics<parallel>], iteration_bounds = array<i64: 2>, scalar_prefetch = 0 : i64, scratch_operands = 0 : i64, tpu.core_type = #tpu.core_type<tc>, window_params = [{transform_indices = @transform_0, window_bounds = array<i64: 4, 8, 128>}, {transform_indices = @transform_1, window_bounds = array<i64: 4, 8, 8>}, {pipeline_mode = #tpu.pipeline_mode<synchronous>, transform_indices = @transform_2, window_bounds = array<i64: 1, 128>}, {pipeline_mode = #tpu.pipeline_mode<synchronous>, transform_indices = @transform_3, window_bounds = array<i64: 1, 128>}, {pipeline_mode = #tpu.pipeline_mode<synchronous>, transform_indices = @transform_4, window_bounds = array<i64: 128, 384>}, {pipeline_mode = #tpu.pipeline_mode<synchronous>, transform_indices = @transform_5, window_bounds = array<i64: 1, 384>}, {pipeline_mode = #tpu.pipeline_mode<synchronous>, transform_indices = @transform_6, window_bounds = array<i64: 128, 128>}, {pipeline_mode = #tpu.pipeline_mode<synchronous>, transform_indices = @transform_7, window_bounds = array<i64: 1, 128>}, {pipeline_mode = #tpu.pipeline_mode<synchronous>, transform_indices = @transform_8, window_bounds = array<i64: 1, 128>}, {pipeline_mode = #tpu.pipeline_mode<synchronous>, transform_indices = @transform_9, window_bounds = array<i64: 1, 128>}, {pipeline_mode = #tpu.pipeline_mode<synchronous>, transform_indices = @transform_10, window_bounds = array<i64: 128, 256>}, {pipeline_mode = #tpu.pipeline_mode<synchronous>, transform_indices = @transform_11, window_bounds = array<i64: 1, 256>}, {pipeline_mode = #tpu.pipeline_mode<synchronous>, transform_indices = @transform_12, window_bounds = array<i64: 256, 128>}, {pipeline_mode = #tpu.pipeline_mode<synchronous>, transform_indices = @transform_13, window_bounds = array<i64: 1, 128>}, {transform_indices = @transform_14, window_bounds = array<i64: 4, 8, 128>}]} {
    %c0 = arith.constant 0 : index
    %c0_0 = arith.constant 0 : index
    %c0_1 = arith.constant 0 : index
    %0 = vector.load %arg1[%c0, %c0_0, %c0_1] : memref<4x8x128xf32, #tpu.memory_space<vmem>>, vector<4x8x128xf32>
    %1 = vector.shape_cast %0 : vector<4x8x128xf32> to vector<32x128xf32>
    %c0_2 = arith.constant 0 : index
    %c0_3 = arith.constant 0 : index
    %c0_4 = arith.constant 0 : index
    %2 = vector.load %arg2[%c0_2, %c0_3, %c0_4] : memref<4x8x8xf32, #tpu.memory_space<vmem>>, vector<4x8x8xf32>
    %c0_5 = arith.constant 0 : index
    %c0_6 = arith.constant 0 : index
    %3 = vector.load %arg3[%c0_5, %c0_6] : memref<1x128xf32, #tpu.memory_space<vmem>>, vector<1x128xf32>
    %c0_7 = arith.constant 0 : index
    %c0_8 = arith.constant 0 : index
    %4 = vector.load %arg4[%c0_7, %c0_8] : memref<1x128xf32, #tpu.memory_space<vmem>>, vector<1x128xf32>
    %cst = arith.constant dense<0.000000e+00> : vector<32xf32>
    %5 = vector.multi_reduction <add>, %1, %cst [1] : vector<32x128xf32> to vector<32xf32>
    %6 = vector.shape_cast %5 : vector<32xf32> to vector<32x1xf32>
    %cst_9 = arith.constant 1.280000e+02 : f32
    %7 = vector.broadcast %cst_9 : f32 to vector<32x1xf32>
    %8 = arith.divf %6, %7 : vector<32x1xf32>
    %9 = vector.broadcast %8 : vector<32x1xf32> to vector<32x128xf32>
    %10 = arith.subf %1, %9 : vector<32x128xf32>
    %11 = arith.mulf %10, %10 : vector<32x128xf32>
    %cst_10 = arith.constant dense<0.000000e+00> : vector<32xf32>
    %12 = vector.multi_reduction <add>, %11, %cst_10 [1] : vector<32x128xf32> to vector<32xf32>
    %13 = vector.shape_cast %12 : vector<32xf32> to vector<32x1xf32>
    %cst_11 = arith.constant 1.270000e+02 : f32
    %14 = vector.broadcast %cst_11 : f32 to vector<32x1xf32>
    %15 = arith.divf %13, %14 : vector<32x1xf32>
    %16 = math.sqrt %15 : vector<32x1xf32>
    %17 = vector.broadcast %3 : vector<1x128xf32> to vector<32x128xf32>
    %18 = arith.mulf %17, %10 : vector<32x128xf32>
    %cst_12 = arith.constant 9.99999997E-7 : f32
    %19 = vector.broadcast %cst_12 : f32 to vector<32x1xf32>
    %20 = arith.addf %16, %19 : vector<32x1xf32>
    %21 = vector.broadcast %20 : vector<32x1xf32> to vector<32x128xf32>
    %22 = arith.divf %18, %21 : vector<32x128xf32>
    %23 = vector.broadcast %4 : vector<1x128xf32> to vector<32x128xf32>
    %24 = arith.addf %22, %23 : vector<32x128xf32>
    %25 = arith.truncf %24 : vector<32x128xf32> to vector<32x128xbf16>
    %c0_13 = arith.constant 0 : index
    %c0_14 = arith.constant 0 : index
    %26 = vector.load %arg5[%c0_13, %c0_14] : memref<128x384xbf16, #tpu.memory_space<vmem>>, vector<128x384xbf16>
    %cst_15 = arith.constant dense<0.000000e+00> : vector<32x384xf32>
    %27 = tpu.matmul %25, %26, %cst_15 {dimension_numbers = #tpu.dot_dimension_numbers<[1], [0], [0], [1], [0, 0, 1, 1], [], []>} : vector<32x128xbf16>, vector<128x384xbf16>, vector<32x384xf32> -> vector<32x384xf32>
    %c0_16 = arith.constant 0 : index
    %c0_17 = arith.constant 0 : index
    %28 = vector.load %arg6[%c0_16, %c0_17] : memref<1x384xf32, #tpu.memory_space<vmem>>, vector<1x384xf32>
    %29 = vector.broadcast %28 : vector<1x384xf32> to vector<32x384xf32>
    %30 = arith.addf %27, %29 : vector<32x384xf32>
    %31 = vector.shape_cast %30 : vector<32x384xf32> to vector<4x8x384xf32>
    %cst_18 = arith.constant 0.000000e+00 : f32
    %32 = vector.broadcast %cst_18 : f32 to vector<32x128xf32>
    %33 = vector.extract_strided_slice %31 {offsets = [0, 0, 0], sizes = [4, 8, 32], strides = [1, 1, 1]} : vector<4x8x384xf32> to vector<4x8x32xf32>
    %34 = vector.extract_strided_slice %31 {offsets = [0, 0, 128], sizes = [4, 8, 32], strides = [1, 1, 1]} : vector<4x8x384xf32> to vector<4x8x32xf32>
    %35 = vector.extract_strided_slice %31 {offsets = [0, 0, 256], sizes = [4, 8, 32], strides = [1, 1, 1]} : vector<4x8x384xf32> to vector<4x8x32xf32>
    "tpu.trace_start"() <{level = 10 : i32, message = "bqd,bkd->bqk"}> : () -> ()
    %cst_19 = arith.constant dense<0.000000e+00> : vector<4x8x8xf32>
    %36 = tpu.matmul %33, %34, %cst_19 {dimension_numbers = #tpu.dot_dimension_numbers<[2], [2], [1], [1], [0, 0, 0, 1, 1, 1], [0], [0]>} : vector<4x8x32xf32>, vector<4x8x32xf32>, vector<4x8x8xf32> -> vector<4x8x8xf32>
    "tpu.trace_stop"() : () -> ()
    %cst_20 = arith.constant 0.176776692 : f32
    %37 = vector.broadcast %cst_20 : f32 to vector<4x8x8xf32>
    %38 = arith.mulf %36, %37 : vector<4x8x8xf32>
    %39 = arith.addf %38, %2 : vector<4x8x8xf32>
    %cst_21 = arith.constant dense<0xFF800000> : vector<4x8xf32>
    %40 = vector.multi_reduction <maximumf>, %39, %cst_21 [2] : vector<4x8x8xf32> to vector<4x8xf32>
    %41 = vector.shape_cast %40 : vector<4x8xf32> to vector<4x8x1xf32>
    %42 = vector.broadcast %41 : vector<4x8x1xf32> to vector<4x8x8xf32>
    %43 = arith.subf %39, %42 : vector<4x8x8xf32>
    %44 = math.exp %43 : vector<4x8x8xf32>
    %cst_22 = arith.constant dense<0.000000e+00> : vector<4x8xf32>
    %45 = vector.multi_reduction <add>, %44, %cst_22 [2] : vector<4x8x8xf32> to vector<4x8xf32>
    %46 = vector.shape_cast %45 : vector<4x8xf32> to vector<4x8x1xf32>
    %47 = tpu.reciprocal %46 {approx = true} : vector<4x8x1xf32> -> vector<4x8x1xf32>
    %48 = vector.broadcast %47 : vector<4x8x1xf32> to vector<4x8x8xf32>
    %49 = arith.mulf %44, %48 : vector<4x8x8xf32>
    "tpu.trace_start"() <{level = 10 : i32, message = "bqk,bkd->bqd"}> : () -> ()
    %cst_23 = arith.constant dense<0.000000e+00> : vector<4x8x32xf32>
    %50 = tpu.matmul %49, %35, %cst_23 {dimension_numbers = #tpu.dot_dimension_numbers<[2], [1], [1], [2], [0, 0, 0, 1, 1, 2], [0], [0]>} : vector<4x8x8xf32>, vector<4x8x32xf32>, vector<4x8x32xf32> -> vector<4x8x32xf32>
    "tpu.trace_stop"() : () -> ()
    %51 = vector.shape_cast %50 : vector<4x8x32xf32> to vector<32x32xf32>
    %52 = arith.truncf %51 : vector<32x32xf32> to vector<32x32xbf16>
    %c0_24 = arith.constant 0 : index
    %c0_25 = arith.constant 0 : index
    %53 = vector.load %arg7[%c0_24, %c0_25] : memref<128x128xbf16, #tpu.memory_space<vmem>>, vector<32x128xbf16>
    %cst_26 = arith.constant dense<0.000000e+00> : vector<32x128xf32>
    %54 = tpu.matmul %52, %53, %cst_26 {dimension_numbers = #tpu.dot_dimension_numbers<[1], [0], [0], [1], [0, 0, 1, 1], [], []>} : vector<32x32xbf16>, vector<32x128xbf16>, vector<32x128xf32> -> vector<32x128xf32>
    %55 = arith.addf %32, %54 : vector<32x128xf32>
    %56 = vector.extract_strided_slice %31 {offsets = [0, 0, 32], sizes = [4, 8, 32], strides = [1, 1, 1]} : vector<4x8x384xf32> to vector<4x8x32xf32>
    %57 = vector.extract_strided_slice %31 {offsets = [0, 0, 160], sizes = [4, 8, 32], strides = [1, 1, 1]} : vector<4x8x384xf32> to vector<4x8x32xf32>
    %58 = vector.extract_strided_slice %31 {offsets = [0, 0, 288], sizes = [4, 8, 32], strides = [1, 1, 1]} : vector<4x8x384xf32> to vector<4x8x32xf32>
    "tpu.trace_start"() <{level = 10 : i32, message = "bqd,bkd->bqk"}> : () -> ()
    %cst_27 = arith.constant dense<0.000000e+00> : vector<4x8x8xf32>
    %59 = tpu.matmul %56, %57, %cst_27 {dimension_numbers = #tpu.dot_dimension_numbers<[2], [2], [1], [1], [0, 0, 0, 1, 1, 1], [0], [0]>} : vector<4x8x32xf32>, vector<4x8x32xf32>, vector<4x8x8xf32> -> vector<4x8x8xf32>
    "tpu.trace_stop"() : () -> ()
    %cst_28 = arith.constant 0.176776692 : f32
    %60 = vector.broadcast %cst_28 : f32 to vector<4x8x8xf32>
    %61 = arith.mulf %59, %60 : vector<4x8x8xf32>
    %62 = arith.addf %61, %2 : vector<4x8x8xf32>
    %cst_29 = arith.constant dense<0xFF800000> : vector<4x8xf32>
    %63 = vector.multi_reduction <maximumf>, %62, %cst_29 [2] : vector<4x8x8xf32> to vector<4x8xf32>
    %64 = vector.shape_cast %63 : vector<4x8xf32> to vector<4x8x1xf32>
    %65 = vector.broadcast %64 : vector<4x8x1xf32> to vector<4x8x8xf32>
    %66 = arith.subf %62, %65 : vector<4x8x8xf32>
    %67 = math.exp %66 : vector<4x8x8xf32>
    %cst_30 = arith.constant dense<0.000000e+00> : vector<4x8xf32>
    %68 = vector.multi_reduction <add>, %67, %cst_30 [2] : vector<4x8x8xf32> to vector<4x8xf32>
    %69 = vector.shape_cast %68 : vector<4x8xf32> to vector<4x8x1xf32>
    %70 = tpu.reciprocal %69 {approx = true} : vector<4x8x1xf32> -> vector<4x8x1xf32>
    %71 = vector.broadcast %70 : vector<4x8x1xf32> to vector<4x8x8xf32>
    %72 = arith.mulf %67, %71 : vector<4x8x8xf32>
    "tpu.trace_start"() <{level = 10 : i32, message = "bqk,bkd->bqd"}> : () -> ()
    %cst_31 = arith.constant dense<0.000000e+00> : vector<4x8x32xf32>
    %73 = tpu.matmul %72, %58, %cst_31 {dimension_numbers = #tpu.dot_dimension_numbers<[2], [1], [1], [2], [0, 0, 0, 1, 1, 2], [0], [0]>} : vector<4x8x8xf32>, vector<4x8x32xf32>, vector<4x8x32xf32> -> vector<4x8x32xf32>
    "tpu.trace_stop"() : () -> ()
    %74 = vector.shape_cast %73 : vector<4x8x32xf32> to vector<32x32xf32>
    %75 = arith.truncf %74 : vector<32x32xf32> to vector<32x32xbf16>
    %c32 = arith.constant 32 : index
    %c0_32 = arith.constant 0 : index
    %76 = vector.load %arg7[%c32, %c0_32] : memref<128x128xbf16, #tpu.memory_space<vmem>>, vector<32x128xbf16>
    %cst_33 = arith.constant dense<0.000000e+00> : vector<32x128xf32>
    %77 = tpu.matmul %75, %76, %cst_33 {dimension_numbers = #tpu.dot_dimension_numbers<[1], [0], [0], [1], [0, 0, 1, 1], [], []>} : vector<32x32xbf16>, vector<32x128xbf16>, vector<32x128xf32> -> vector<32x128xf32>
    %78 = arith.addf %55, %77 : vector<32x128xf32>
    %79 = vector.extract_strided_slice %31 {offsets = [0, 0, 64], sizes = [4, 8, 32], strides = [1, 1, 1]} : vector<4x8x384xf32> to vector<4x8x32xf32>
    %80 = vector.extract_strided_slice %31 {offsets = [0, 0, 192], sizes = [4, 8, 32], strides = [1, 1, 1]} : vector<4x8x384xf32> to vector<4x8x32xf32>
    %81 = vector.extract_strided_slice %31 {offsets = [0, 0, 320], sizes = [4, 8, 32], strides = [1, 1, 1]} : vector<4x8x384xf32> to vector<4x8x32xf32>
    "tpu.trace_start"() <{level = 10 : i32, message = "bqd,bkd->bqk"}> : () -> ()
    %cst_34 = arith.constant dense<0.000000e+00> : vector<4x8x8xf32>
    %82 = tpu.matmul %79, %80, %cst_34 {dimension_numbers = #tpu.dot_dimension_numbers<[2], [2], [1], [1], [0, 0, 0, 1, 1, 1], [0], [0]>} : vector<4x8x32xf32>, vector<4x8x32xf32>, vector<4x8x8xf32> -> vector<4x8x8xf32>
    "tpu.trace_stop"() : () -> ()
    %cst_35 = arith.constant 0.176776692 : f32
    %83 = vector.broadcast %cst_35 : f32 to vector<4x8x8xf32>
    %84 = arith.mulf %82, %83 : vector<4x8x8xf32>
    %85 = arith.addf %84, %2 : vector<4x8x8xf32>
    %cst_36 = arith.constant dense<0xFF800000> : vector<4x8xf32>
    %86 = vector.multi_reduction <maximumf>, %85, %cst_36 [2] : vector<4x8x8xf32> to vector<4x8xf32>
    %87 = vector.shape_cast %86 : vector<4x8xf32> to vector<4x8x1xf32>
    %88 = vector.broadcast %87 : vector<4x8x1xf32> to vector<4x8x8xf32>
    %89 = arith.subf %85, %88 : vector<4x8x8xf32>
    %90 = math.exp %89 : vector<4x8x8xf32>
    %cst_37 = arith.constant dense<0.000000e+00> : vector<4x8xf32>
    %91 = vector.multi_reduction <add>, %90, %cst_37 [2] : vector<4x8x8xf32> to vector<4x8xf32>
    %92 = vector.shape_cast %91 : vector<4x8xf32> to vector<4x8x1xf32>
    %93 = tpu.reciprocal %92 {approx = true} : vector<4x8x1xf32> -> vector<4x8x1xf32>
    %94 = vector.broadcast %93 : vector<4x8x1xf32> to vector<4x8x8xf32>
    %95 = arith.mulf %90, %94 : vector<4x8x8xf32>
    "tpu.trace_start"() <{level = 10 : i32, message = "bqk,bkd->bqd"}> : () -> ()
    %cst_38 = arith.constant dense<0.000000e+00> : vector<4x8x32xf32>
    %96 = tpu.matmul %95, %81, %cst_38 {dimension_numbers = #tpu.dot_dimension_numbers<[2], [1], [1], [2], [0, 0, 0, 1, 1, 2], [0], [0]>} : vector<4x8x8xf32>, vector<4x8x32xf32>, vector<4x8x32xf32> -> vector<4x8x32xf32>
    "tpu.trace_stop"() : () -> ()
    %97 = vector.shape_cast %96 : vector<4x8x32xf32> to vector<32x32xf32>
    %98 = arith.truncf %97 : vector<32x32xf32> to vector<32x32xbf16>
    %c64 = arith.constant 64 : index
    %c0_39 = arith.constant 0 : index
    %99 = vector.load %arg7[%c64, %c0_39] : memref<128x128xbf16, #tpu.memory_space<vmem>>, vector<32x128xbf16>
    %cst_40 = arith.constant dense<0.000000e+00> : vector<32x128xf32>
    %100 = tpu.matmul %98, %99, %cst_40 {dimension_numbers = #tpu.dot_dimension_numbers<[1], [0], [0], [1], [0, 0, 1, 1], [], []>} : vector<32x32xbf16>, vector<32x128xbf16>, vector<32x128xf32> -> vector<32x128xf32>
    %101 = arith.addf %78, %100 : vector<32x128xf32>
    %102 = vector.extract_strided_slice %31 {offsets = [0, 0, 96], sizes = [4, 8, 32], strides = [1, 1, 1]} : vector<4x8x384xf32> to vector<4x8x32xf32>
    %103 = vector.extract_strided_slice %31 {offsets = [0, 0, 224], sizes = [4, 8, 32], strides = [1, 1, 1]} : vector<4x8x384xf32> to vector<4x8x32xf32>
    %104 = vector.extract_strided_slice %31 {offsets = [0, 0, 352], sizes = [4, 8, 32], strides = [1, 1, 1]} : vector<4x8x384xf32> to vector<4x8x32xf32>
    "tpu.trace_start"() <{level = 10 : i32, message = "bqd,bkd->bqk"}> : () -> ()
    %cst_41 = arith.constant dense<0.000000e+00> : vector<4x8x8xf32>
    %105 = tpu.matmul %102, %103, %cst_41 {dimension_numbers = #tpu.dot_dimension_numbers<[2], [2], [1], [1], [0, 0, 0, 1, 1, 1], [0], [0]>} : vector<4x8x32xf32>, vector<4x8x32xf32>, vector<4x8x8xf32> -> vector<4x8x8xf32>
    "tpu.trace_stop"() : () -> ()
    %cst_42 = arith.constant 0.176776692 : f32
    %106 = vector.broadcast %cst_42 : f32 to vector<4x8x8xf32>
    %107 = arith.mulf %105, %106 : vector<4x8x8xf32>
    %108 = arith.addf %107, %2 : vector<4x8x8xf32>
    %cst_43 = arith.constant dense<0xFF800000> : vector<4x8xf32>
    %109 = vector.multi_reduction <maximumf>, %108, %cst_43 [2] : vector<4x8x8xf32> to vector<4x8xf32>
    %110 = vector.shape_cast %109 : vector<4x8xf32> to vector<4x8x1xf32>
    %111 = vector.broadcast %110 : vector<4x8x1xf32> to vector<4x8x8xf32>
    %112 = arith.subf %108, %111 : vector<4x8x8xf32>
    %113 = math.exp %112 : vector<4x8x8xf32>
    %cst_44 = arith.constant dense<0.000000e+00> : vector<4x8xf32>
    %114 = vector.multi_reduction <add>, %113, %cst_44 [2] : vector<4x8x8xf32> to vector<4x8xf32>
    %115 = vector.shape_cast %114 : vector<4x8xf32> to vector<4x8x1xf32>
    %116 = tpu.reciprocal %115 {approx = true} : vector<4x8x1xf32> -> vector<4x8x1xf32>
    %117 = vector.broadcast %116 : vector<4x8x1xf32> to vector<4x8x8xf32>
    %118 = arith.mulf %113, %117 : vector<4x8x8xf32>
    "tpu.trace_start"() <{level = 10 : i32, message = "bqk,bkd->bqd"}> : () -> ()
    %cst_45 = arith.constant dense<0.000000e+00> : vector<4x8x32xf32>
    %119 = tpu.matmul %118, %104, %cst_45 {dimension_numbers = #tpu.dot_dimension_numbers<[2], [1], [1], [2], [0, 0, 0, 1, 1, 2], [0], [0]>} : vector<4x8x8xf32>, vector<4x8x32xf32>, vector<4x8x32xf32> -> vector<4x8x32xf32>
    "tpu.trace_stop"() : () -> ()
    %120 = vector.shape_cast %119 : vector<4x8x32xf32> to vector<32x32xf32>
    %121 = arith.truncf %120 : vector<32x32xf32> to vector<32x32xbf16>
    %c96 = arith.constant 96 : index
    %c0_46 = arith.constant 0 : index
    %122 = vector.load %arg7[%c96, %c0_46] : memref<128x128xbf16, #tpu.memory_space<vmem>>, vector<32x128xbf16>
    %cst_47 = arith.constant dense<0.000000e+00> : vector<32x128xf32>
    %123 = tpu.matmul %121, %122, %cst_47 {dimension_numbers = #tpu.dot_dimension_numbers<[1], [0], [0], [1], [0, 0, 1, 1], [], []>} : vector<32x32xbf16>, vector<32x128xbf16>, vector<32x128xf32> -> vector<32x128xf32>
    %124 = arith.addf %101, %123 : vector<32x128xf32>
    %125 = arith.addf %1, %124 : vector<32x128xf32>
    %c0_48 = arith.constant 0 : index
    %c0_49 = arith.constant 0 : index
    %126 = vector.load %arg8[%c0_48, %c0_49] : memref<1x128xf32, #tpu.memory_space<vmem>>, vector<1x128xf32>
    %127 = vector.broadcast %126 : vector<1x128xf32> to vector<32x128xf32>
    %128 = arith.addf %125, %127 : vector<32x128xf32>
    %c0_50 = arith.constant 0 : index
    %c0_51 = arith.constant 0 : index
    %129 = vector.load %arg9[%c0_50, %c0_51] : memref<1x128xf32, #tpu.memory_space<vmem>>, vector<1x128xf32>
    %c0_52 = arith.constant 0 : index
    %c0_53 = arith.constant 0 : index
    %130 = vector.load %arg10[%c0_52, %c0_53] : memref<1x128xf32, #tpu.memory_space<vmem>>, vector<1x128xf32>
    %cst_54 = arith.constant dense<0.000000e+00> : vector<32xf32>
    %131 = vector.multi_reduction <add>, %128, %cst_54 [1] : vector<32x128xf32> to vector<32xf32>
    %132 = vector.shape_cast %131 : vector<32xf32> to vector<32x1xf32>
    %cst_55 = arith.constant 1.280000e+02 : f32
    %133 = vector.broadcast %cst_55 : f32 to vector<32x1xf32>
    %134 = arith.divf %132, %133 : vector<32x1xf32>
    %135 = vector.broadcast %134 : vector<32x1xf32> to vector<32x128xf32>
    %136 = arith.subf %128, %135 : vector<32x128xf32>
    %137 = arith.mulf %136, %136 : vector<32x128xf32>
    %cst_56 = arith.constant dense<0.000000e+00> : vector<32xf32>
    %138 = vector.multi_reduction <add>, %137, %cst_56 [1] : vector<32x128xf32> to vector<32xf32>
    %139 = vector.shape_cast %138 : vector<32xf32> to vector<32x1xf32>
    %cst_57 = arith.constant 1.270000e+02 : f32
    %140 = vector.broadcast %cst_57 : f32 to vector<32x1xf32>
    %141 = arith.divf %139, %140 : vector<32x1xf32>
    %142 = math.sqrt %141 : vector<32x1xf32>
    %143 = vector.broadcast %129 : vector<1x128xf32> to vector<32x128xf32>
    %144 = arith.mulf %143, %136 : vector<32x128xf32>
    %cst_58 = arith.constant 9.99999997E-7 : f32
    %145 = vector.broadcast %cst_58 : f32 to vector<32x1xf32>
    %146 = arith.addf %142, %145 : vector<32x1xf32>
    %147 = vector.broadcast %146 : vector<32x1xf32> to vector<32x128xf32>
    %148 = arith.divf %144, %147 : vector<32x128xf32>
    %149 = vector.broadcast %130 : vector<1x128xf32> to vector<32x128xf32>
    %150 = arith.addf %148, %149 : vector<32x128xf32>
    %151 = arith.truncf %150 : vector<32x128xf32> to vector<32x128xbf16>
    %c0_59 = arith.constant 0 : index
    %c0_60 = arith.constant 0 : index
    %152 = vector.load %arg11[%c0_59, %c0_60] : memref<128x256xbf16, #tpu.memory_space<vmem>>, vector<128x256xbf16>
    %cst_61 = arith.constant dense<0.000000e+00> : vector<32x256xf32>
    %153 = tpu.matmul %151, %152, %cst_61 {dimension_numbers = #tpu.dot_dimension_numbers<[1], [0], [0], [1], [0, 0, 1, 1], [], []>} : vector<32x128xbf16>, vector<128x256xbf16>, vector<32x256xf32> -> vector<32x256xf32>
    %c0_62 = arith.constant 0 : index
    %c0_63 = arith.constant 0 : index
    %154 = vector.load %arg12[%c0_62, %c0_63] : memref<1x256xf32, #tpu.memory_space<vmem>>, vector<1x256xf32>
    %155 = vector.broadcast %154 : vector<1x256xf32> to vector<32x256xf32>
    %156 = arith.addf %153, %155 : vector<32x256xf32>
    %cst_64 = arith.constant 0.000000e+00 : f32
    %157 = vector.broadcast %cst_64 : f32 to vector<32x256xf32>
    %158 = arith.maximumf %156, %157 : vector<32x256xf32>
    %159 = arith.truncf %158 : vector<32x256xf32> to vector<32x256xbf16>
    %c0_65 = arith.constant 0 : index
    %c0_66 = arith.constant 0 : index
    %160 = vector.load %arg13[%c0_65, %c0_66] : memref<256x128xbf16, #tpu.memory_space<vmem>>, vector<256x128xbf16>
    %cst_67 = arith.constant dense<0.000000e+00> : vector<32x128xf32>
    %161 = tpu.matmul %159, %160, %cst_67 {dimension_numbers = #tpu.dot_dimension_numbers<[1], [0], [0], [1], [0, 0, 1, 1], [], []>} : vector<32x256xbf16>, vector<256x128xbf16>, vector<32x128xf32> -> vector<32x128xf32>
    %c0_68 = arith.constant 0 : index
    %c0_69 = arith.constant 0 : index
    %162 = vector.load %arg14[%c0_68, %c0_69] : memref<1x128xf32, #tpu.memory_space<vmem>>, vector<1x128xf32>
    %163 = vector.broadcast %162 : vector<1x128xf32> to vector<32x128xf32>
    %164 = arith.addf %161, %163 : vector<32x128xf32>
    %165 = arith.addf %128, %164 : vector<32x128xf32>
    %166 = vector.shape_cast %165 : vector<32x128xf32> to vector<4x8x128xf32>
    %c0_70 = arith.constant 0 : index
    %c0_71 = arith.constant 0 : index
    %c0_72 = arith.constant 0 : index
    %167 = vector.load %arg15[%c0_70, %c0_71, %c0_72] : memref<4x8x128xf32, #tpu.memory_space<vmem>>, vector<4x8x128xf32>
    tpu.vector_store %arg15[%c0_70, %c0_71, %c0_72], %166 {strides = array<i32>} : memref<4x8x128xf32, #tpu.memory_space<vmem>>, vector<4x8x128xf32>,
    return
  }
  func.func @transform_0(%arg0: i32) -> (i32, i32, i32) {
    %c0_i32 = arith.constant 0 : i32
    %c0_i32_0 = arith.constant 0 : i32
    %c0_i32_1 = arith.constant 0 : i32
    return %arg0, %c0_i32, %c0_i32_0 : i32, i32, i32
  }
  func.func @transform_1(%arg0: i32) -> (i32, i32, i32) {
    %c0_i32 = arith.constant 0 : i32
    %c0_i32_0 = arith.constant 0 : i32
    %c0_i32_1 = arith.constant 0 : i32
    return %arg0, %c0_i32, %c0_i32_0 : i32, i32, i32
  }
  func.func @transform_2(%arg0: i32) -> (i32, i32) {
    %c0_i32 = arith.constant 0 : i32
    %c0_i32_0 = arith.constant 0 : i32
    %c0_i32_1 = arith.constant 0 : i32
    return %c0_i32, %c0_i32_0 : i32, i32
  }
  func.func @transform_3(%arg0: i32) -> (i32, i32) {
    %c0_i32 = arith.constant 0 : i32
    %c0_i32_0 = arith.constant 0 : i32
    %c0_i32_1 = arith.constant 0 : i32
    return %c0_i32, %c0_i32_0 : i32, i32
  }
  func.func @transform_4(%arg0: i32) -> (i32, i32) {
    %c0_i32 = arith.constant 0 : i32
    %c0_i32_0 = arith.constant 0 : i32
    %c0_i32_1 = arith.constant 0 : i32
    return %c0_i32, %c0_i32_0 : i32, i32
  }
  func.func @transform_5(%arg0: i32) -> (i32, i32) {
    %c0_i32 = arith.constant 0 : i32
    %c0_i32_0 = arith.constant 0 : i32
    %c0_i32_1 = arith.constant 0 : i32
    return %c0_i32, %c0_i32_0 : i32, i32
  }
  func.func @transform_6(%arg0: i32) -> (i32, i32) {
    %c0_i32 = arith.constant 0 : i32
    %c0_i32_0 = arith.constant 0 : i32
    %c0_i32_1 = arith.constant 0 : i32
    return %c0_i32, %c0_i32_0 : i32, i32
  }
  func.func @transform_7(%arg0: i32) -> (i32, i32) {
    %c0_i32 = arith.constant 0 : i32
    %c0_i32_0 = arith.constant 0 : i32
    %c0_i32_1 = arith.constant 0 : i32
    return %c0_i32, %c0_i32_0 : i32, i32
  }
  func.func @transform_8(%arg0: i32) -> (i32, i32) {
    %c0_i32 = arith.constant 0 : i32
    %c0_i32_0 = arith.constant 0 : i32
    %c0_i32_1 = arith.constant 0 : i32
    return %c0_i32, %c0_i32_0 : i32, i32
  }
  func.func @transform_9(%arg0: i32) -> (i32, i32) {
    %c0_i32 = arith.constant 0 : i32
    %c0_i32_0 = arith.constant 0 : i32
    %c0_i32_1 = arith.constant 0 : i32
    return %c0_i32, %c0_i32_0 : i32, i32
  }
  func.func @transform_10(%arg0: i32) -> (i32, i32) {
    %c0_i32 = arith.constant 0 : i32
    %c0_i32_0 = arith.constant 0 : i32
    %c0_i32_1 = arith.constant 0 : i32
    return %c0_i32, %c0_i32_0 : i32, i32
  }
  func.func @transform_11(%arg0: i32) -> (i32, i32) {
    %c0_i32 = arith.constant 0 : i32
    %c0_i32_0 = arith.constant 0 : i32
    %c0_i32_1 = arith.constant 0 : i32
    return %c0_i32, %c0_i32_0 : i32, i32
  }
  func.func @transform_12(%arg0: i32) -> (i32, i32) {
    %c0_i32 = arith.constant 0 : i32
    %c0_i32_0 = arith.constant 0 : i32
    %c0_i32_1 = arith.constant 0 : i32
    return %c0_i32, %c0_i32_0 : i32, i32
  }
  func.func @transform_13(%arg0: i32) -> (i32, i32) {
    %c0_i32 = arith.constant 0 : i32
    %c0_i32_0 = arith.constant 0 : i32
    %c0_i32_1 = arith.constant 0 : i32
    return %c0_i32, %c0_i32_0 : i32, i32
  }
  func.func @transform_14(%arg0: i32) -> (i32, i32, i32) {
    %c0_i32 = arith.constant 0 : i32
    %c0_i32_0 = arith.constant 0 : i32
    %c0_i32_1 = arith.constant 0 : i32
    return %arg0, %c0_i32, %c0_i32_0 : i32, i32, i32
  }
}

</mosaic_0001>

<llo_original>
// kernel: transformer_block.1
$region0: #{transformer_block.1}
  #allocation0 [shape = 'u32[]', space=smem, size = 0x4, offset = 0x4, fixed_abs, tag = 'smem constant byte address 0x4 - core index']
  #allocation1 [shape = 'u32[144,128]{1,0:T(1,128)}', space=vmem, size = 0x12000, scoped, tag = 'internal scratch']
  %s0 = inlined_call_operand.vmem [shape: f32[8,8,128], index: 0, kind: input, shape index: {}]
  %s1 = inlined_call_operand.vmem [shape: f32[8,8,8], index: 1, kind: input, shape index: {}]
  %s2 = inlined_call_operand.vmem [shape: f32[1,128], index: 2, kind: input, shape index: {}]
  %s3 = inlined_call_operand.vmem [shape: f32[1,128], index: 3, kind: input, shape index: {}]
  %s4 = inlined_call_operand.vmem [shape: bf16[128,384], index: 4, kind: input, shape index: {}]
  %s5 = inlined_call_operand.vmem [shape: f32[1,384], index: 5, kind: input, shape index: {}]
  %s6 = inlined_call_operand.vmem [shape: bf16[128,128], index: 6, kind: input, shape index: {}]
  %s7 = inlined_call_operand.vmem [shape: f32[1,128], index: 7, kind: input, shape index: {}]
  %s8 = inlined_call_operand.vmem [shape: f32[1,128], index: 8, kind: input, shape index: {}]
  %s9 = inlined_call_operand.vmem [shape: f32[1,128], index: 9, kind: input, shape index: {}]
  %s10 = inlined_call_operand.vmem [shape: bf16[128,256], index: 10, kind: input, shape index: {}]
  %s11 = inlined_call_operand.vmem [shape: f32[1,256], index: 11, kind: input, shape index: {}]
  %s12 = inlined_call_operand.vmem [shape: bf16[256,128], index: 12, kind: input, shape index: {}]
  %s13 = inlined_call_operand.vmem [shape: f32[1,128], index: 13, kind: input, shape index: {}]
  %s14 = inlined_call_operand.hbm [shape: f32[8,8,128], index: 14, kind: output, shape index: {}]
  %s15 = sld [smem:[#allocation0]]
  $region89: #{transformer_block.1} parent=0
    _
  %s17 = ssub.s32 1, %s15
  %s18 = scalar_select 0, %s17, %s15
  $region1: #{transformer_block.1} parent=0
    #allocation2 [shape = 'u8[32768]{0}', space=vmem, size = 0x8000, scoped, tag = 'output window, operand 0']
    #allocation3 [shape = 's32[2]{0}', space=sflag, size = 0x8, scoped, tag = 'scoped memory for transformer_block.1']
    %19 = vsyncpa [#allocation3], 0
    %s20 = scalar_lea.sflag [#allocation3], 1
    %21 = vsyncpa %s20, 0
    loop: start=0, step=1, limit=4
    $region2: #{transformer_block.1} parent=1 // loop_pre_header
      _
    $region3: #{transformer_block.1} parent=1 // loop_header
      %s23 = sphi 0, %s27
      %p24 = scmp.ge.s32.totalorder %s23, 4
      %s33 = sphi 0, %s35
      %s36 = sphi 0, %s33
      %s37 = sphi 0, %s36
      %s53 = sphi 0, %s37
      %s59 = sphi 0, %s61
      %s62 = sphi 0, %s59
      %s63 = sphi 0, %s62
      %s79 = sphi 0, %s63
      %s83 = sphi 0, %s83
      %s85 = sphi 0, %s83
      %s86 = sphi 0, %s85
      %s100 = sphi 0, %s86
      %s104 = sphi 0, %s104
      %s106 = sphi 0, %s104
      %s107 = sphi 0, %s106
      %s121 = sphi 0, %s107
      %s125 = sphi 0, %s125
      %s127 = sphi 0, %s125
      %s128 = sphi 0, %s127
      %s142 = sphi 0, %s128
      %s146 = sphi 0, %s146
      %s148 = sphi 0, %s146
      %s149 = sphi 0, %s148
      %s163 = sphi 0, %s149
      %s167 = sphi 0, %s167
      %s169 = sphi 0, %s167
      %s170 = sphi 0, %s169
      %s184 = sphi 0, %s170
      %s188 = sphi 0, %s188
      %s190 = sphi 0, %s188
      %s191 = sphi 0, %s190
      %s205 = sphi 0, %s191
      %s209 = sphi 0, %s209
      %s211 = sphi 0, %s209
      %s212 = sphi 0, %s211
      %s226 = sphi 0, %s212
      %s230 = sphi 0, %s230
      %s232 = sphi 0, %s230
      %s233 = sphi 0, %s232
      %s247 = sphi 0, %s233
      %s251 = sphi 0, %s251
      %s253 = sphi 0, %s251
      %s254 = sphi 0, %s253
      %s268 = sphi 0, %s254
      %s272 = sphi 0, %s272
      %s274 = sphi 0, %s272
      %s275 = sphi 0, %s274
      %s289 = sphi 0, %s275
      %s293 = sphi 0, %s293
      %s295 = sphi 0, %s293
      %s296 = sphi 0, %s295
      %s310 = sphi 0, %s296
      %s314 = sphi 0, %s314
      %s316 = sphi 0, %s314
      %s317 = sphi 0, %s316
      %s331 = sphi 0, %s317
      %s337 = sphi 0, %s339
      %s340 = sphi 0, %s337
      %s341 = sphi 0, %s340
      %s357 = sphi 0, %s341
    $region4: #{transformer_block.1} parent=1 // loop_header_branch
      %26 = sbr.rel (%p24) target = $region8
    $region5: #{transformer_block.1} parent=1 // loop_body
      %s28 = ssub.s32 %s23, 1
      %s29 = ssub.s32 %s23, 2
      %s30 = sadd.s32 %s23, 1
      %s31 = ssub.s32 %s23, %s30
      %p32 = scmp.eq.s32.totalorder %s31, 0
      %s34 = sadd.s32 %s33, 1
      %s35 = scalar_select %p32, %s33, %s34
      %p38 = pneg %p32
      %p39 = scmp.eq.s32.totalorder %s23, 1
      %p40 = por %p38, %p39
      %p41 = scmp.ne.s32.totalorder %s33, %s36
      %p42 = scmp.eq.s32.totalorder %s23, 0
      %p43 = por %p41, %p42
      %p44 = scmp.ne.s32.totalorder %s33, %s36
      %p45 = scmp.eq.s32.totalorder %s28, 1
      %p46 = por %p44, %p45
      %p47 = scmp.ne.s32.totalorder %s36, %s37
      %p48 = scmp.eq.s32.totalorder %s28, 0
      %p49 = por %p47, %p48
      %p50 = scmp.ne.s32.totalorder %s36, %s37
      %p51 = scmp.eq.s32.totalorder %s29, 1
      %p52 = por %p50, %p51
      %p54 = scmp.ne.s32.totalorder %s37, %s53
      %p55 = scmp.eq.s32.totalorder %s29, 0
      %p56 = por %p54, %p55
      %s57 = ssub.s32 %s23, %s30
      %p58 = scmp.eq.s32.totalorder %s57, 0
      %s60 = sadd.s32 %s59, 1
      %s61 = scalar_select %p58, %s59, %s60
      %p64 = pneg %p58
      %p65 = scmp.eq.s32.totalorder %s23, 1
      %p66 = por %p64, %p65
      %p67 = scmp.ne.s32.totalorder %s59, %s62
      %p68 = scmp.eq.s32.totalorder %s23, 0
      %p69 = por %p67, %p68
      %p70 = scmp.ne.s32.totalorder %s59, %s62
      %p71 = scmp.eq.s32.totalorder %s28, 1
      %p72 = por %p70, %p71
      %p73 = scmp.ne.s32.totalorder %s62, %s63
      %p74 = scmp.eq.s32.totalorder %s28, 0
      %p75 = por %p73, %p74
      %p76 = scmp.ne.s32.totalorder %s62, %s63
      %p77 = scmp.eq.s32.totalorder %s29, 1
      %p78 = por %p76, %p77
      %p80 = scmp.ne.s32.totalorder %s63, %s79
      %p81 = scmp.eq.s32.totalorder %s29, 0
      %p82 = por %p80, %p81
      %s84 = sadd.s32 %s83, 1
      %p87 = scmp.eq.s32.totalorder %s23, 1
      %p88 = scmp.ne.s32.totalorder %s83, %s85
      %p89 = scmp.eq.s32.totalorder %s23, 0
      %p90 = por %p88, %p89
      %p91 = scmp.ne.s32.totalorder %s83, %s85
      %p92 = scmp.eq.s32.totalorder %s28, 1
      %p93 = por %p91, %p92
      %p94 = scmp.ne.s32.totalorder %s85, %s86
      %p95 = scmp.eq.s32.totalorder %s28, 0
      %p96 = por %p94, %p95
      %p97 = scmp.ne.s32.totalorder %s85, %s86
      %p98 = scmp.eq.s32.totalorder %s29, 1
      %p99 = por %p97, %p98
      %p101 = scmp.ne.s32.totalorder %s86, %s100
      %p102 = scmp.eq.s32.totalorder %s29, 0
      %p103 = por %p101, %p102
      %s105 = sadd.s32 %s104, 1
      %p108 = scmp.eq.s32.totalorder %s23, 1
      %p109 = scmp.ne.s32.totalorder %s104, %s106
      %p110 = scmp.eq.s32.totalorder %s23, 0
      %p111 = por %p109, %p110
      %p112 = scmp.ne.s32.totalorder %s104, %s106
      %p113 = scmp.eq.s32.totalorder %s28, 1
      %p114 = por %p112, %p113
      %p115 = scmp.ne.s32.totalorder %s106, %s107
      %p116 = scmp.eq.s32.totalorder %s28, 0
      %p117 = por %p115, %p116
      %p118 = scmp.ne.s32.totalorder %s106, %s107
      %p119 = scmp.eq.s32.totalorder %s29, 1
      %p120 = por %p118, %p119
      %p122 = scmp.ne.s32.totalorder %s107, %s121
      %p123 = scmp.eq.s32.totalorder %s29, 0
      %p124 = por %p122, %p123
      %s126 = sadd.s32 %s125, 1
      %p129 = scmp.eq.s32.totalorder %s23, 1
      %p130 = scmp.ne.s32.totalorder %s125, %s127
      %p131 = scmp.eq.s32.totalorder %s23, 0
      %p132 = por %p130, %p131
      %p133 = scmp.ne.s32.totalorder %s125, %s127
      %p134 = scmp.eq.s32.totalorder %s28, 1
      %p135 = por %p133, %p134
      %p136 = scmp.ne.s32.totalorder %s127, %s128
      %p137 = scmp.eq.s32.totalorder %s28, 0
      %p138 = por %p136, %p137
      %p139 = scmp.ne.s32.totalorder %s127, %s128
      %p140 = scmp.eq.s32.totalorder %s29, 1
      %p141 = por %p139, %p140
      %p143 = scmp.ne.s32.totalorder %s128, %s142
      %p144 = scmp.eq.s32.totalorder %s29, 0
      %p145 = por %p143, %p144
      %s147 = sadd.s32 %s146, 1
      %p150 = scmp.eq.s32.totalorder %s23, 1
      %p151 = scmp.ne.s32.totalorder %s146, %s148
      %p152 = scmp.eq.s32.totalorder %s23, 0
      %p153 = por %p151, %p152
      %p154 = scmp.ne.s32.totalorder %s146, %s148
      %p155 = scmp.eq.s32.totalorder %s28, 1
      %p156 = por %p154, %p155
      %p157 = scmp.ne.s32.totalorder %s148, %s149
      %p158 = scmp.eq.s32.totalorder %s28, 0
      %p159 = por %p157, %p158
      %p160 = scmp.ne.s32.totalorder %s148, %s149
      %p161 = scmp.eq.s32.totalorder %s29, 1
      %p162 = por %p160, %p161
      %p164 = scmp.ne.s32.totalorder %s149, %s163
      %p165 = scmp.eq.s32.totalorder %s29, 0
      %p166 = por %p164, %p165
      %s168 = sadd.s32 %s167, 1
      %p171 = scmp.eq.s32.totalorder %s23, 1
      %p172 = scmp.ne.s32.totalorder %s167, %s169
      %p173 = scmp.eq.s32.totalorder %s23, 0
      %p174 = por %p172, %p173
      %p175 = scmp.ne.s32.totalorder %s167, %s169
      %p176 = scmp.eq.s32.totalorder %s28, 1
      %p177 = por %p175, %p176
      %p178 = scmp.ne.s32.totalorder %s169, %s170
      %p179 = scmp.eq.s32.totalorder %s28, 0
      %p180 = por %p178, %p179
      %p181 = scmp.ne.s32.totalorder %s169, %s170
      %p182 = scmp.eq.s32.totalorder %s29, 1
      %p183 = por %p181, %p182
      %p185 = scmp.ne.s32.totalorder %s170, %s184
      %p186 = scmp.eq.s32.totalorder %s29, 0
      %p187 = por %p185, %p186
      %s189 = sadd.s32 %s188, 1
      %p192 = scmp.eq.s32.totalorder %s23, 1
      %p193 = scmp.ne.s32.totalorder %s188, %s190
      %p194 = scmp.eq.s32.totalorder %s23, 0
      %p195 = por %p193, %p194
      %p196 = scmp.ne.s32.totalorder %s188, %s190
      %p197 = scmp.eq.s32.totalorder %s28, 1
      %p198 = por %p196, %p197
      %p199 = scmp.ne.s32.totalorder %s190, %s191
      %p200 = scmp.eq.s32.totalorder %s28, 0
      %p201 = por %p199, %p200
      %p202 = scmp.ne.s32.totalorder %s190, %s191
      %p203 = scmp.eq.s32.totalorder %s29, 1
      %p204 = por %p202, %p203
      %p206 = scmp.ne.s32.totalorder %s191, %s205
      %p207 = scmp.eq.s32.totalorder %s29, 0
      %p208 = por %p206, %p207
      %s210 = sadd.s32 %s209, 1
      %p213 = scmp.eq.s32.totalorder %s23, 1
      %p214 = scmp.ne.s32.totalorder %s209, %s211
      %p215 = scmp.eq.s32.totalorder %s23, 0
      %p216 = por %p214, %p215
      %p217 = scmp.ne.s32.totalorder %s209, %s211
      %p218 = scmp.eq.s32.totalorder %s28, 1
      %p219 = por %p217, %p218
      %p220 = scmp.ne.s32.totalorder %s211, %s212
      %p221 = scmp.eq.s32.totalorder %s28, 0
      %p222 = por %p220, %p221
      %p223 = scmp.ne.s32.totalorder %s211, %s212
      %p224 = scmp.eq.s32.totalorder %s29, 1
      %p225 = por %p223, %p224
      %p227 = scmp.ne.s32.totalorder %s212, %s226
      %p228 = scmp.eq.s32.totalorder %s29, 0
      %p229 = por %p227, %p228
      %s231 = sadd.s32 %s230, 1
      %p234 = scmp.eq.s32.totalorder %s23, 1
      %p235 = scmp.ne.s32.totalorder %s230, %s232
      %p236 = scmp.eq.s32.totalorder %s23, 0
      %p237 = por %p235, %p236
      %p238 = scmp.ne.s32.totalorder %s230, %s232
      %p239 = scmp.eq.s32.totalorder %s28, 1
      %p240 = por %p238, %p239
      %p241 = scmp.ne.s32.totalorder %s232, %s233
      %p242 = scmp.eq.s32.totalorder %s28, 0
      %p243 = por %p241, %p242
      %p244 = scmp.ne.s32.totalorder %s232, %s233
      %p245 = scmp.eq.s32.totalorder %s29, 1
      %p246 = por %p244, %p245
      %p248 = scmp.ne.s32.totalorder %s233, %s247
      %p249 = scmp.eq.s32.totalorder %s29, 0
      %p250 = por %p248, %p249
      %s252 = sadd.s32 %s251, 1
      %p255 = scmp.eq.s32.totalorder %s23, 1
      %p256 = scmp.ne.s32.totalorder %s251, %s253
      %p257 = scmp.eq.s32.totalorder %s23, 0
      %p258 = por %p256, %p257
      %p259 = scmp.ne.s32.totalorder %s251, %s253
      %p260 = scmp.eq.s32.totalorder %s28, 1
      %p261 = por %p259, %p260
      %p262 = scmp.ne.s32.totalorder %s253, %s254
      %p263 = scmp.eq.s32.totalorder %s28, 0
      %p264 = por %p262, %p263
      %p265 = scmp.ne.s32.totalorder %s253, %s254
      %p266 = scmp.eq.s32.totalorder %s29, 1
      %p267 = por %p265, %p266
      %p269 = scmp.ne.s32.totalorder %s254, %s268
      %p270 = scmp.eq.s32.totalorder %s29, 0
      %p271 = por %p269, %p270
      %s273 = sadd.s32 %s272, 1
      %p276 = scmp.eq.s32.totalorder %s23, 1
      %p277 = scmp.ne.s32.totalorder %s272, %s274
      %p278 = scmp.eq.s32.totalorder %s23, 0
      %p279 = por %p277, %p278
      %p280 = scmp.ne.s32.totalorder %s272, %s274
      %p281 = scmp.eq.s32.totalorder %s28, 1
      %p282 = por %p280, %p281
      %p283 = scmp.ne.s32.totalorder %s274, %s275
      %p284 = scmp.eq.s32.totalorder %s28, 0
      %p285 = por %p283, %p284
      %p286 = scmp.ne.s32.totalorder %s274, %s275
      %p287 = scmp.eq.s32.totalorder %s29, 1
      %p288 = por %p286, %p287
      %p290 = scmp.ne.s32.totalorder %s275, %s289
      %p291 = scmp.eq.s32.totalorder %s29, 0
      %p292 = por %p290, %p291
      %s294 = sadd.s32 %s293, 1
      %p297 = scmp.eq.s32.totalorder %s23, 1
      %p298 = scmp.ne.s32.totalorder %s293, %s295
      %p299 = scmp.eq.s32.totalorder %s23, 0
      %p300 = por %p298, %p299
      %p301 = scmp.ne.s32.totalorder %s293, %s295
      %p302 = scmp.eq.s32.totalorder %s28, 1
      %p303 = por %p301, %p302
      %p304 = scmp.ne.s32.totalorder %s295, %s296
      %p305 = scmp.eq.s32.totalorder %s28, 0
      %p306 = por %p304, %p305
      %p307 = scmp.ne.s32.totalorder %s295, %s296
      %p308 = scmp.eq.s32.totalorder %s29, 1
      %p309 = por %p307, %p308
      %p311 = scmp.ne.s32.totalorder %s296, %s310
      %p312 = scmp.eq.s32.totalorder %s29, 0
      %p313 = por %p311, %p312
      %s315 = sadd.s32 %s314, 1
      %p318 = scmp.eq.s32.totalorder %s23, 1
      %p319 = scmp.ne.s32.totalorder %s314, %s316
      %p320 = scmp.eq.s32.totalorder %s23, 0
      %p321 = por %p319, %p320
      %p322 = scmp.ne.s32.totalorder %s314, %s316
      %p323 = scmp.eq.s32.totalorder %s28, 1
      %p324 = por %p322, %p323
      %p325 = scmp.ne.s32.totalorder %s316, %s317
      %p326 = scmp.eq.s32.totalorder %s28, 0
      %p327 = por %p325, %p326
      %p328 = scmp.ne.s32.totalorder %s316, %s317
      %p329 = scmp.eq.s32.totalorder %s29, 1
      %p330 = por %p328, %p329
      %p332 = scmp.ne.s32.totalorder %s317, %s331
      %p333 = scmp.eq.s32.totalorder %s29, 0
      %p334 = por %p332, %p333
      %s335 = ssub.s32 %s23, %s30
      %p336 = scmp.eq.s32.totalorder %s335, 0
      %s338 = sadd.s32 %s337, 1
      %s339 = scalar_select %p336, %s337, %s338
      %p342 = pneg %p336
      %p343 = scmp.eq.s32.totalorder %s23, 1
      %p344 = por %p342, %p343
      %p345 = scmp.ne.s32.totalorder %s337, %s340
      %p346 = scmp.eq.s32.totalorder %s23, 0
      %p347 = por %p345, %p346
      %p348 = scmp.ne.s32.totalorder %s337, %s340
      %p349 = scmp.eq.s32.totalorder %s28, 1
      %p350 = por %p348, %p349
      %p351 = scmp.ne.s32.totalorder %s340, %s341
      %p352 = scmp.eq.s32.totalorder %s28, 0
      %p353 = por %p351, %p352
      %p354 = scmp.ne.s32.totalorder %s340, %s341
      %p355 = scmp.eq.s32.totalorder %s29, 1
      %p356 = por %p354, %p355
      %p358 = scmp.ne.s32.totalorder %s341, %s357
      %p359 = scmp.eq.s32.totalorder %s29, 0
      %p360 = por %p358, %p359
      %p361 = scmp.le.s32.totalorder 1, %s23
      %p362 = scmp.lt.s32.totalorder %s23, 3
      %p363 = pnand %p361, %p362
      %p364 = pneg %p363
      // Predicated region
      $region9: #{transformer_block.1} parent=5 // pred_check
        _
      $region10: #{transformer_block.1} parent=5 // pred_check_branch
        %366 = sbr.rel (%p363) target = $region12
      $region11: #{transformer_block.1} parent=5 // pred_region
        %s367 = ssub.s32 %s23, 1
        // Predicated region
        $region13: #{transformer_block.1} parent=11 // pred_check
          %p368 = pneg %p96
        $region14: #{transformer_block.1} parent=11 // pred_check_branch
          %370 = sbr.rel (%p368) target = $region16
        $region15: #{transformer_block.1} parent=11 // pred_region
          _
        $region16: #{transformer_block.1} parent=11 // pred_fallthru
          _
        // Predicated region
        $region17: #{transformer_block.1} parent=11 // pred_check
          %p371 = pneg %p117
        $region18: #{transformer_block.1} parent=11 // pred_check_branch
          %373 = sbr.rel (%p371) target = $region20
        $region19: #{transformer_block.1} parent=11 // pred_region
          _
        $region20: #{transformer_block.1} parent=11 // pred_fallthru
          _
        // Predicated region
        $region21: #{transformer_block.1} parent=11 // pred_check
          %p374 = pneg %p138
        $region22: #{transformer_block.1} parent=11 // pred_check_branch
          %376 = sbr.rel (%p374) target = $region24
        $region23: #{transformer_block.1} parent=11 // pred_region
          _
        $region24: #{transformer_block.1} parent=11 // pred_fallthru
          _
        // Predicated region
        $region25: #{transformer_block.1} parent=11 // pred_check
          %p377 = pneg %p159
        $region26: #{transformer_block.1} parent=11 // pred_check_branch
          %379 = sbr.rel (%p377) target = $region28
        $region27: #{transformer_block.1} parent=11 // pred_region
          _
        $region28: #{transformer_block.1} parent=11 // pred_fallthru
          _
        // Predicated region
        $region29: #{transformer_block.1} parent=11 // pred_check
          %p380 = pneg %p180
        $region30: #{transformer_block.1} parent=11 // pred_check_branch
          %382 = sbr.rel (%p380) target = $region32
        $region31: #{transformer_block.1} parent=11 // pred_region
          _
        $region32: #{transformer_block.1} parent=11 // pred_fallthru
          _
        // Predicated region
        $region33: #{transformer_block.1} parent=11 // pred_check
          %p383 = pneg %p201
        $region34: #{transformer_block.1} parent=11 // pred_check_branch
          %385 = sbr.rel (%p383) target = $region36
        $region35: #{transformer_block.1} parent=11 // pred_region
          _
        $region36: #{transformer_block.1} parent=11 // pred_fallthru
          _
        // Predicated region
        $region37: #{transformer_block.1} parent=11 // pred_check
          %p386 = pneg %p222
        $region38: #{transformer_block.1} parent=11 // pred_check_branch
          %388 = sbr.rel (%p386) target = $region40
        $region39: #{transformer_block.1} parent=11 // pred_region
          _
        $region40: #{transformer_block.1} parent=11 // pred_fallthru
          _
        // Predicated region
        $region41: #{transformer_block.1} parent=11 // pred_check
          %p389 = pneg %p243
        $region42: #{transformer_block.1} parent=11 // pred_check_branch
          %391 = sbr.rel (%p389) target = $region44
        $region43: #{transformer_block.1} parent=11 // pred_region
          _
        $region44: #{transformer_block.1} parent=11 // pred_fallthru
          _
        // Predicated region
        $region45: #{transformer_block.1} parent=11 // pred_check
          %p392 = pneg %p264
        $region46: #{transformer_block.1} parent=11 // pred_check_branch
          %394 = sbr.rel (%p392) target = $region48
        $region47: #{transformer_block.1} parent=11 // pred_region
          _
        $region48: #{transformer_block.1} parent=11 // pred_fallthru
          _
        // Predicated region
        $region49: #{transformer_block.1} parent=11 // pred_check
          %p395 = pneg %p285
        $region50: #{transformer_block.1} parent=11 // pred_check_branch
          %397 = sbr.rel (%p395) target = $region52
        $region51: #{transformer_block.1} parent=11 // pred_region
          _
        $region52: #{transformer_block.1} parent=11 // pred_fallthru
          _
        // Predicated region
        $region53: #{transformer_block.1} parent=11 // pred_check
          %p398 = pneg %p306
        $region54: #{transformer_block.1} parent=11 // pred_check_branch
          %400 = sbr.rel (%p398) target = $region56
        $region55: #{transformer_block.1} parent=11 // pred_region
          _
        $region56: #{transformer_block.1} parent=11 // pred_fallthru
          _
        // Predicated region
        $region57: #{transformer_block.1} parent=11 // pred_check
          %p401 = pneg %p327
        $region58: #{transformer_block.1} parent=11 // pred_check_branch
          %403 = sbr.rel (%p401) target = $region60
        $region59: #{transformer_block.1} parent=11 // pred_region
          _
        $region60: #{transformer_block.1} parent=11 // pred_fallthru
          _
      $region12: #{transformer_block.1} parent=5 // pred_fallthru
        _
      %p404 = scmp.lt.s32.totalorder %s23, 2
      // Predicated region
      $region61: #{transformer_block.1} parent=5 // pred_check
        %p405 = pneg %p404
      $region62: #{transformer_block.1} parent=5 // pred_check_branch
        %407 = sbr.rel (%p405) target = $region64
      $region63: #{transformer_block.1} parent=5 // pred_region
        // Predicated region
        $region65: #{transformer_block.1} parent=63 // pred_check
          %p408 = pneg %p43
        $region66: #{transformer_block.1} parent=63 // pred_check_branch
          %410 = sbr.rel (%p408) target = $region68
        $region67: #{transformer_block.1} parent=63 // pred_region
          %s411 = smul.u32 4, %s23
          %p412 = scmp.lt.s32.totalorder %s411, 7
          %s413 = scalar_select %p412, %s411, 7
          %s414 = smul.addr %s413, 8
          %s415 = scalar_lea.vmem %s0, %s414
          %s416 = smul.u32 4, %s23
        $region68: #{transformer_block.1} parent=63 // pred_fallthru
          _
        // Predicated region
        $region69: #{transformer_block.1} parent=63 // pred_check
          %p417 = pneg %p69
        $region70: #{transformer_block.1} parent=63 // pred_check_branch
          %419 = sbr.rel (%p417) target = $region72
        $region71: #{transformer_block.1} parent=63 // pred_region
          %s420 = smul.u32 4, %s23
          %p421 = scmp.lt.s32.totalorder %s420, 7
          %s422 = scalar_select %p421, %s420, 7
          %s423 = smul.addr %s422, 8
          %s424 = scalar_lea.vmem %s1, %s423
          %s425 = smul.u32 4, %s23
        $region72: #{transformer_block.1} parent=63 // pred_fallthru
          _
      $region64: #{transformer_block.1} parent=5 // pred_fallthru
        _
      %p426 = scmp.le.s32.totalorder 1, %s23
      %p427 = scmp.lt.s32.totalorder %s23, 3
      %p428 = pnand %p426, %p427
      %p429 = pneg %p428
      // Predicated region
      $region73: #{transformer_block.1} parent=5 // pred_check
        _
      $region74: #{transformer_block.1} parent=5 // pred_check_branch
        %431 = sbr.rel (%p428) target = $region76
      $region75: #{transformer_block.1} parent=5 // pred_region
        %s432 = ssub.s32 %s23, 1
        %s433 = smul.u32 4, %s28
        %p434 = scmp.lt.s32.totalorder %s433, 7
        %s435 = scalar_select %p434, %s433, 7
        %s436 = smul.addr %s435, 8
        %s437 = scalar_lea.vmem %s0, %s436
        %p438 = pneg %p49
        %p439 = pneg %p46
        %s440 = smul.u32 4, %s28
        %p441 = scmp.lt.s32.totalorder %s440, 7
        %s442 = scalar_select %p441, %s440, 7
        %s443 = smul.addr %s442, 8
        %s444 = scalar_lea.vmem %s1, %s443
        %p445 = pneg %p75
        %p446 = pneg %p72
        %p447 = pneg %p96
        %p448 = pneg %p93
        %p449 = pneg %p117
        %p450 = pneg %p114
        %p451 = pneg %p138
        %p452 = pneg %p135
        %p453 = pneg %p159
        %p454 = pneg %p156
        %p455 = pneg %p180
        %p456 = pneg %p177
        %p457 = pneg %p201
        %p458 = pneg %p198
        %p459 = pneg %p222
        %p460 = pneg %p219
        %p461 = pneg %p243
        %p462 = pneg %p240
        %p463 = pneg %p264
        %p464 = pneg %p261
        %p465 = pneg %p285
        %p466 = pneg %p282
        %p467 = pneg %p306
        %p468 = pneg %p303
        %p469 = pneg %p327
        %p470 = pneg %p324
        %p471 = pneg %p353
        %p472 = pneg %p350
        %s473 = sand.u32 %s340, 1
        %s474 = scalar_lea.sflag [#allocation3], %s473
        %s475 = sand.u32 %s340, 1
        %s476 = smul.addr %s475, 32
        %s477 = scalar_lea.vmem [#allocation2], %s476
        %s478 = smul.u32 4, %s28
        %p479 = scmp.lt.s32.totalorder %s478, 7
        %s480 = scalar_select %p479, %s478, 7
        %s481 = smul.addr %s480, 8
        %s482 = scalar_lea.vmem %s0, %s481
        %s483 = smul.u32 4, %s28
        %s484 = smul.u32 4, %s28
        %p485 = scmp.lt.s32.totalorder %s484, 7
        %s486 = scalar_select %p485, %s484, 7
        %s487 = smul.addr %s486, 8
        %s488 = scalar_lea.vmem %s1, %s487
        %s489 = smul.u32 4, %s28
        %s490 = smul.u32 4, %s28
        %v492 = vld [vmem:[%s482] sm:$0xff]
        %v493 = vld [vmem:[%s482 + $0x8] sm:$0xff]
        %v494 = vld [vmem:[%s482 + $0x10] sm:$0xff]
        %v495 = vld [vmem:[%s482 + $0x18] sm:$0xff]
        %v496 = vld [vmem:[%s488] sm:$0xff]
        %v497 = vld [vmem:[%s488 + $0x8] sm:$0xff]
        %v498 = vld [vmem:[%s488 + $0x10] sm:$0xff]
        %v499 = vld [vmem:[%s488 + $0x18] sm:$0xff]
        %v500 = vld [vmem:[%s2] sm:$0x1]
        %v501 = vld [vmem:[%s3] sm:$0x1]
        %502 = vadd.xlane.f32.xlu0 %v492
        %v503 = vpop.xlane.xlu0 %502
        %504 = vadd.xlane.f32.xlu0 %v493
        %v505 = vpop.xlane.xlu0 %504
        %506 = vadd.xlane.f32.xlu0 %v494
        %v507 = vpop.xlane.xlu0 %506
        %508 = vadd.xlane.f32.xlu0 %v495
        %v509 = vpop.xlane.xlu0 %508
        %v510 = vrcp.pop 128.0
        %v511 = vmul.f32 %v503, %v510
        %v512 = vmul.f32 %v505, %v510
        %v513 = vmul.f32 %v507, %v510
        %v514 = vmul.f32 %v509, %v510
        %v515 = vsub.f32 %v492, %v511
        %v516 = vsub.f32 %v493, %v512
        %v517 = vsub.f32 %v494, %v513
        %v518 = vsub.f32 %v495, %v514
        %v519 = vmul.f32 %v515, %v515
        %v520 = vmul.f32 %v516, %v516
        %v521 = vmul.f32 %v517, %v517
        %v522 = vmul.f32 %v518, %v518
        %523 = vadd.xlane.f32.xlu0 %v519
        %v524 = vpop.xlane.xlu0 %523
        %525 = vadd.xlane.f32.xlu0 %v520
        %v526 = vpop.xlane.xlu0 %525
        %527 = vadd.xlane.f32.xlu0 %v521
        %v528 = vpop.xlane.xlu0 %527
        %529 = vadd.xlane.f32.xlu0 %v522
        %v530 = vpop.xlane.xlu0 %529
        %v531 = vrcp.pop 127.0
        %v532 = vmul.f32 %v524, %v531
        %v533 = vmul.f32 %v526, %v531
        %v534 = vmul.f32 %v528, %v531
        %v535 = vmul.f32 %v530, %v531
        %v536 = vrsqrt.pop %v532
        %v537 = vmul.f32 %v532, %v536
        %vm538 = vcmp.eq.f32.partialorder %v532, inf
        %v539 = vsel %vm538, %v532, %v537
        %vm540 = vcmp.eq.f32.partialorder %v532, 0.0
        %v541 = vand.u32 %v532, 2147483648
        %v542 = vsel %vm540, %v541, %v539
        %v543 = vrsqrt.pop %v533
        %v544 = vmul.f32 %v533, %v543
        %vm545 = vcmp.eq.f32.partialorder %v533, inf
        %v546 = vsel %vm545, %v533, %v544
        %vm547 = vcmp.eq.f32.partialorder %v533, 0.0
        %v548 = vand.u32 %v533, 2147483648
        %v549 = vsel %vm547, %v548, %v546
        %v550 = vrsqrt.pop %v534
        %v551 = vmul.f32 %v534, %v550
        %vm552 = vcmp.eq.f32.partialorder %v534, inf
        %v553 = vsel %vm552, %v534, %v551
        %vm554 = vcmp.eq.f32.partialorder %v534, 0.0
        %v555 = vand.u32 %v534, 2147483648
        %v556 = vsel %vm554, %v555, %v553
        %v557 = vrsqrt.pop %v535
        %v558 = vmul.f32 %v535, %v557
        %vm559 = vcmp.eq.f32.partialorder %v535, inf
        %v560 = vsel %vm559, %v535, %v558
        %vm561 = vcmp.eq.f32.partialorder %v535, 0.0
        %v562 = vand.u32 %v535, 2147483648
        %v563 = vsel %vm561, %v562, %v560
        %v565 = vlaneseq
        %v566 = vshrl.u32 %v565, 7
        %v567 = vsub.s32 0, %v566
        %v568 = vrot.slane %v500, %v567
        %v570 = vmul.f32 %v568, %v515
        %v571 = vmul.f32 %v568, %v516
        %v572 = vmul.f32 %v568, %v517
        %v573 = vmul.f32 %v568, %v518
        %v574 = vadd.f32 %v542, 1e-06
        %v575 = vadd.f32 %v549, 1e-06
        %v576 = vadd.f32 %v556, 1e-06
        %v577 = vadd.f32 %v563, 1e-06
        %v578 = vrcp.pop %v574
        %v579 = vmul.f32 %v570, %v578
        %v580 = vrcp.pop %v575
        %v581 = vmul.f32 %v571, %v580
        %v582 = vrcp.pop %v576
        %v583 = vmul.f32 %v572, %v582
        %v584 = vrcp.pop %v577
        %v585 = vmul.f32 %v573, %v584
        %v587 = vlaneseq
        %v588 = vshrl.u32 %v587, 7
        %v589 = vsub.s32 0, %v588
        %v590 = vrot.slane %v501, %v589
        %v592 = vadd.f32 %v579, %v590
        %v593 = vadd.f32 %v581, %v590
        %v594 = vadd.f32 %v583, %v590
        %v595 = vadd.f32 %v585, %v590
        %v596 = vpack.c.bf16 %v593, %v592
        %v597 = vpack.c.bf16 %v595, %v594
        %v598 = vld [vmem:[%s4] sm:$0xff]
        %v599 = vld [vmem:[%s4 + $0x8] sm:$0xf]
        %v600 = vld [vmem:[%s4 + $0xc] sm:$0xff]
        %v601 = vld [vmem:[%s4 + $0x14] sm:$0xf]
        %v602 = vld [vmem:[%s4 + $0x18] sm:$0xff]
        %v603 = vld [vmem:[%s4 + $0x20] sm:$0xf]
        %v604 = vld [vmem:[%s4 + $0x24] sm:$0xff]
        %v605 = vld [vmem:[%s4 + $0x2c] sm:$0xf]
        %v606 = vld [vmem:[%s4 + $0x30] sm:$0xff]
        %v607 = vld [vmem:[%s4 + $0x38] sm:$0xf]
        %v608 = vld [vmem:[%s4 + $0x3c] sm:$0xff]
        %v609 = vld [vmem:[%s4 + $0x44] sm:$0xf]
        %v610 = vld [vmem:[%s4 + $0x48] sm:$0xff]
        %v611 = vld [vmem:[%s4 + $0x50] sm:$0xf]
        %v612 = vld [vmem:[%s4 + $0x54] sm:$0xff]
        %v613 = vld [vmem:[%s4 + $0x5c] sm:$0xf]
        %v614 = vld [vmem:[%s4 + $0x60] sm:$0xff]
        %v615 = vld [vmem:[%s4 + $0x68] sm:$0xf]
        %v616 = vld [vmem:[%s4 + $0x6c] sm:$0xff]
        %v617 = vld [vmem:[%s4 + $0x74] sm:$0xf]
        %v618 = vld [vmem:[%s4 + $0x78] sm:$0xff]
        %v619 = vld [vmem:[%s4 + $0x80] sm:$0xf]
        %v620 = vld [vmem:[%s4 + $0x84] sm:$0xff]
        %v621 = vld [vmem:[%s4 + $0x8c] sm:$0xf]
        %v622 = vld [vmem:[%s4 + $0x90] sm:$0xff]
        %v623 = vld [vmem:[%s4 + $0x98] sm:$0xf]
        %v624 = vld [vmem:[%s4 + $0x9c] sm:$0xff]
        %v625 = vld [vmem:[%s4 + $0xa4] sm:$0xf]
        %v626 = vld [vmem:[%s4 + $0xa8] sm:$0xff]
        %v627 = vld [vmem:[%s4 + $0xb0] sm:$0xf]
        %v628 = vld [vmem:[%s4 + $0xb4] sm:$0xff]
        %v629 = vld [vmem:[%s4 + $0xbc] sm:$0xf]
        %v630 = vld [vmem:[%s5] sm:$0x7]
        %v632 = vlaneseq
        %v633 = vshrl.u32 %v632, 7
        %v634 = vsub.s32 0, %v633
        %v635 = vrot.slane %v630, %v634
        %v636 = vlaneseq
        %v637 = vshrl.u32 %v636, 7
        %v638 = vsub.s32 1, %v637
        %v639 = vrot.slane %v630, %v638
        %v640 = vlaneseq
        %v641 = vshrl.u32 %v640, 7
        %v642 = vsub.s32 2, %v641
        %v643 = vrot.slane %v630, %v642
        %v679 = vunpack.c.l.b16 %v598
        %v680 = vunpack.c.h.b16 %v598
        %v681 = vunpack.c.l.b16 %v599
        %v682 = vunpack.c.l.b16 %v600
        %v683 = vunpack.c.h.b16 %v600
        %v684 = vunpack.c.l.b16 %v601
        %v685 = vunpack.c.l.b16 %v602
        %v686 = vunpack.c.h.b16 %v602
        %v687 = vunpack.c.l.b16 %v603
        %v688 = vunpack.c.l.b16 %v604
        %v689 = vunpack.c.h.b16 %v604
        %v690 = vunpack.c.l.b16 %v605
        %v691 = vunpack.c.l.b16 %v606
        %v692 = vunpack.c.h.b16 %v606
        %v693 = vunpack.c.l.b16 %v607
        %v694 = vunpack.c.l.b16 %v608
        %v695 = vunpack.c.h.b16 %v608
        %v696 = vunpack.c.l.b16 %v609
        %v697 = vunpack.c.l.b16 %v610
        %v698 = vunpack.c.h.b16 %v610
        %v699 = vunpack.c.l.b16 %v611
        %v700 = vunpack.c.l.b16 %v612
        %v701 = vunpack.c.h.b16 %v612
        %v702 = vunpack.c.l.b16 %v613
        %v703 = vunpack.c.l.b16 %v614
        %v704 = vunpack.c.h.b16 %v614
        %v705 = vunpack.c.l.b16 %v615
        %v706 = vunpack.c.l.b16 %v616
        %v707 = vunpack.c.h.b16 %v616
        %v708 = vunpack.c.l.b16 %v617
        %v709 = vunpack.c.l.b16 %v618
        %v710 = vunpack.c.h.b16 %v618
        %v711 = vunpack.c.l.b16 %v619
        %v712 = vunpack.c.l.b16 %v620
        %v713 = vunpack.c.h.b16 %v620
        %v714 = vunpack.c.l.b16 %v621
        %v715 = vunpack.c.l.b16 %v622
        %v716 = vunpack.c.h.b16 %v622
        %v717 = vunpack.c.l.b16 %v623
        %v718 = vunpack.c.l.b16 %v624
        %v719 = vunpack.c.h.b16 %v624
        %v720 = vunpack.c.l.b16 %v625
        %v721 = vunpack.c.l.b16 %v626
        %v722 = vunpack.c.h.b16 %v626
        %v723 = vunpack.c.l.b16 %v627
        %v724 = vunpack.c.l.b16 %v628
        %v725 = vunpack.c.h.b16 %v628
        %v726 = vunpack.c.l.b16 %v629
        %v727 = vpack.c.b16 %v682, %v679
        %v728 = vpack.c.b16 %v683, %v680
        %v729 = vpack.c.b16 %v684, %v681
        %v730 = vpack.c.b16 %v688, %v685
        %v731 = vpack.c.b16 %v689, %v686
        %v732 = vpack.c.b16 %v690, %v687
        %v733 = vpack.c.b16 %v694, %v691
        %v734 = vpack.c.b16 %v695, %v692
        %v735 = vpack.c.b16 %v696, %v693
        %v736 = vpack.c.b16 %v700, %v697
        %v737 = vpack.c.b16 %v701, %v698
        %v738 = vpack.c.b16 %v702, %v699
        %v739 = vpack.c.b16 %v706, %v703
        %v740 = vpack.c.b16 %v707, %v704
        %v741 = vpack.c.b16 %v708, %v705
        %v742 = vpack.c.b16 %v712, %v709
        %v743 = vpack.c.b16 %v713, %v710
        %v744 = vpack.c.b16 %v714, %v711
        %v745 = vpack.c.b16 %v718, %v715
        %v746 = vpack.c.b16 %v719, %v716
        %v747 = vpack.c.b16 %v720, %v717
        %v748 = vpack.c.b16 %v724, %v721
        %v749 = vpack.c.b16 %v725, %v722
        %v750 = vpack.c.b16 %v726, %v723
        %775 = vmatprep.subr.bf16.mxu0 %v728
        %776 = vmatpush1.bf16.msra.mxu0 %v727
        %777 = vmatprep.subr.bf16.mxu0 %v731
        %778 = vmatpush1.bf16.msra.mxu0 %v730
        %779 = vmatprep.subr.bf16.mxu0 %v734
        %780 = vmatpush1.bf16.msra.mxu0 %v733
        %781 = vmatprep.subr.bf16.mxu0 %v737
        %782 = vmatpush1.bf16.msra.mxu0 %v736
        %783 = vmatprep.subr.bf16.mxu0 %v740
        %784 = vmatpush1.bf16.msra.mxu0 %v739
        %785 = vmatprep.subr.bf16.mxu0 %v743
        %786 = vmatpush1.bf16.msra.mxu0 %v742
        %787 = vmatprep.subr.bf16.mxu0 %v746
        %788 = vmatpush1.bf16.msra.mxu0 %v745
        %789 = vmatprep.subr.bf16.mxu0 %v749
        %790 = vmatpush1.bf16.msra.mxu0 %v748
        %791 = vmatprep.subr.bf16.mxu0 0
        %792 = vmatpush1.bf16.msra.mxu0 0
        %793 = vmatprep.subr.bf16.mxu0 0
        %794 = vmatpush1.bf16.msra.mxu0 0
        %795 = vmatprep.subr.bf16.mxu0 0
        %796 = vmatpush1.bf16.msra.mxu0 0
        %797 = vmatprep.subr.bf16.mxu0 0
        %798 = vmatpush1.bf16.msra.mxu0 0
        %799 = vmatprep.subr.bf16.mxu0 0
        %800 = vmatpush1.bf16.msra.mxu0 0
        %801 = vmatprep.subr.bf16.mxu0 0
        %802 = vmatpush1.bf16.msra.mxu0 0
        %803 = vmatprep.subr.bf16.mxu0 0
        %804 = vmatpush1.bf16.msra.mxu0 0
        %805 = vmatprep.subr.bf16.mxu0 0
        %806 = vmatpush1.bf16.msra.mxu0 0
        %807 = vmatprep.mubr.bf16.mxu0 0
        %808 = vmatmul.mubr.bf16.gmra.mrb[0].mxu0 %v596
        %v809 = vpop.f32.mrb[0].mxu0
        %v810 = vadd.f32 %v635, %v809
        %v811 = vpop.f32.mrb[0].mxu0
        %v812 = vadd.f32 %v639, %v811
        %v813 = vpop.f32.mrb[0].mxu0
        %v814 = vadd.f32 %v635, %v813
        %v815 = vpop.f32.mrb[0].mxu0
        %v816 = vadd.f32 %v639, %v815
        %817 = vmatprep.mubr.bf16.mxu0 0
        %818 = vmatmul.mubr.bf16.gmra.mrb[0].mxu0 %v597
        %v819 = vpop.f32.mrb[0].mxu0
        %v820 = vadd.f32 %v635, %v819
        %v821 = vpop.f32.mrb[0].mxu0
        %v822 = vadd.f32 %v639, %v821
        %v823 = vpop.f32.mrb[0].mxu0
        %v824 = vadd.f32 %v635, %v823
        %v825 = vpop.f32.mrb[0].mxu0
        %v826 = vadd.f32 %v639, %v825
        %827 = vdwg.mxu0
        %828 = vmatprep.subr.bf16.mxu0 0
        %829 = vmatpush1.bf16.msra.mxu0 %v729
        %830 = vmatprep.subr.bf16.mxu0 0
        %831 = vmatpush1.bf16.msra.mxu0 %v732
        %832 = vmatprep.subr.bf16.mxu0 0
        %833 = vmatpush1.bf16.msra.mxu0 %v735
        %834 = vmatprep.subr.bf16.mxu0 0
        %835 = vmatpush1.bf16.msra.mxu0 %v738
        %836 = vmatprep.subr.bf16.mxu0 0
        %837 = vmatpush1.bf16.msra.mxu0 %v741
        %838 = vmatprep.subr.bf16.mxu0 0
        %839 = vmatpush1.bf16.msra.mxu0 %v744
        %840 = vmatprep.subr.bf16.mxu0 0
        %841 = vmatpush1.bf16.msra.mxu0 %v747
        %842 = vmatprep.subr.bf16.mxu0 0
        %843 = vmatpush1.bf16.msra.mxu0 %v750
        %844 = vmatprep.subr.bf16.mxu0 0
        %845 = vmatpush1.bf16.msra.mxu0 0
        %846 = vmatprep.subr.bf16.mxu0 0
        %847 = vmatpush1.bf16.msra.mxu0 0
        %848 = vmatprep.subr.bf16.mxu0 0
        %849 = vmatpush1.bf16.msra.mxu0 0
        %850 = vmatprep.subr.bf16.mxu0 0
        %851 = vmatpush1.bf16.msra.mxu0 0
        %852 = vmatprep.subr.bf16.mxu0 0
        %853 = vmatpush1.bf16.msra.mxu0 0
        %854 = vmatprep.subr.bf16.mxu0 0
        %855 = vmatpush1.bf16.msra.mxu0 0
        %856 = vmatprep.subr.bf16.mxu0 0
        %857 = vmatpush1.bf16.msra.mxu0 0
        %858 = vmatprep.subr.bf16.mxu0 0
        %859 = vmatpush1.bf16.msra.mxu0 0
        %860 = vmatprep.mubr.bf16.mxu0 0
        %861 = vmatmul.mubr.bf16.gmra.mrb[0].mxu0 %v596
        %v862 = vpop.f32.mrb[0].mxu0
        %v863 = vadd.f32 %v643, %v862
        %v864 = vpop.f32.mrb[0].mxu0
        %v865 = vpop.f32.mrb[0].mxu0
        %v866 = vadd.f32 %v643, %v865
        %v867 = vpop.f32.mrb[0].mxu0
        %868 = vmatprep.mubr.bf16.mxu0 0
        %869 = vmatmul.mubr.bf16.gmra.mrb[0].mxu0 %v597
        %v870 = vpop.f32.mrb[0].mxu0
        %v871 = vadd.f32 %v643, %v870
        %v872 = vpop.f32.mrb[0].mxu0
        %v873 = vpop.f32.mrb[0].mxu0
        %v874 = vadd.f32 %v643, %v873
        %v875 = vpop.f32.mrb[0].mxu0
        %876 = vdwg.mxu0
        %vm877 = vcmask 261120
        %v879 = vsel %vm877, %v810, 0
        %v882 = vsel %vm877, %v812, 0
        %884 = vmatprep.subr.mxu0 0.0
        %885 = vmatpush1.xpose.msra.mxu0 %v882
        %886 = vmatprep.subr.mxu0 0.0
        %887 = vmatpush1.xpose.msra.mxu0 0.0
        %888 = vmatprep.subr.mxu0 0.0
        %889 = vmatpush1.xpose.msra.mxu0 0.0
        %890 = vmatprep.subr.mxu0 0.0
        %891 = vmatpush1.xpose.msra.mxu0 0.0
        %892 = vmatprep.subr.mxu0 0.0
        %893 = vmatpush1.xpose.msra.mxu0 0.0
        %894 = vmatprep.subr.mxu0 0.0
        %895 = vmatpush1.xpose.msra.mxu0 0.0
        %896 = vmatprep.subr.mxu0 0.0
        %897 = vmatpush1.xpose.msra.mxu0 0.0
        %898 = vmatprep.subr.mxu0 0.0
        %899 = vmatpush1.xpose.msra.mxu0 0.0
        %900 = vmatprep.subr.mxu0 0.0
        %901 = vmatpush1.xpose.msra.mxu0 0.0
        %902 = vmatprep.subr.mxu0 0.0
        %903 = vmatpush1.xpose.msra.mxu0 0.0
        %904 = vmatprep.subr.mxu0 0.0
        %905 = vmatpush1.xpose.msra.mxu0 0.0
        %906 = vmatprep.subr.mxu0 0.0
        %907 = vmatpush1.xpose.msra.mxu0 0.0
        %908 = vmatprep.subr.mxu0 0.0
        %909 = vmatpush1.xpose.msra.mxu0 0.0
        %910 = vmatprep.subr.mxu0 0.0
        %911 = vmatpush1.xpose.msra.mxu0 0.0
        %912 = vmatprep.subr.mxu0 0.0
        %913 = vmatpush1.xpose.msra.mxu0 0.0
        %914 = vmatprep.subr.mxu0 0.0
        %915 = vmatpush1.xpose.msra.mxu0 0.0
        %916 = vmatprep.subr.mxu0 0.0
        %917 = vmatpush1.xpose.msra.mxu0 0.0
        %918 = vmatprep.subr.mxu0 0.0
        %919 = vmatpush1.xpose.msra.mxu0 0.0
        %920 = vmatprep.subr.mxu0 0.0
        %921 = vmatpush1.xpose.msra.mxu0 0.0
        %922 = vmatprep.subr.mxu0 0.0
        %923 = vmatpush1.xpose.msra.mxu0 0.0
        %924 = vmatprep.subr.mxu0 0.0
        %925 = vmatpush1.xpose.msra.mxu0 0.0
        %926 = vmatprep.subr.mxu0 0.0
        %927 = vmatpush1.xpose.msra.mxu0 0.0
        %928 = vmatprep.subr.mxu0 0.0
        %929 = vmatpush1.xpose.msra.mxu0 0.0
        %930 = vmatprep.subr.mxu0 0.0
        %931 = vmatpush1.xpose.msra.mxu0 0.0
        %932 = vmatprep.subr.mxu0 0.0
        %933 = vmatpush1.xpose.msra.mxu0 0.0
        %934 = vmatprep.subr.mxu0 0.0
        %935 = vmatpush1.xpose.msra.mxu0 0.0
        %936 = vmatprep.subr.mxu0 0.0
        %937 = vmatpush1.xpose.msra.mxu0 0.0
        %938 = vmatprep.subr.mxu0 0.0
        %939 = vmatpush1.xpose.msra.mxu0 0.0
        %940 = vmatprep.subr.mxu0 0.0
        %941 = vmatpush1.xpose.msra.mxu0 0.0
        %942 = vmatprep.subr.mxu0 0.0
        %943 = vmatpush1.xpose.msra.mxu0 0.0
        %944 = vmatprep.subr.mxu0 0.0
        %945 = vmatpush1.xpose.msra.mxu0 0.0
        %946 = vmatprep.subr.mxu0 0.0
        %947 = vmatpush1.xpose.msra.mxu0 0.0
        %948 = vmatprep.mubr.f32.mxu0 0.0
        %949 = vmatmul.mubr.f32.gmra.mrb[0].mxu0 %v879
        %v950 = vpop.f32.mrb[0].mxu0
        %v951 = vadd.f32 0.0, %v950
        %v952 = vpop.f32.mrb[0].mxu0
        %953 = vdwg.mxu0
        %v955 = vsel %vm877, %v814, 0
        %v958 = vsel %vm877, %v816, 0
        %960 = vmatprep.subr.mxu0 0.0
        %961 = vmatpush1.xpose.msra.mxu0 %v958
        %962 = vmatprep.subr.mxu0 0.0
        %963 = vmatpush1.xpose.msra.mxu0 0.0
        %964 = vmatprep.subr.mxu0 0.0
        %965 = vmatpush1.xpose.msra.mxu0 0.0
        %966 = vmatprep.subr.mxu0 0.0
        %967 = vmatpush1.xpose.msra.mxu0 0.0
        %968 = vmatprep.subr.mxu0 0.0
        %969 = vmatpush1.xpose.msra.mxu0 0.0
        %970 = vmatprep.subr.mxu0 0.0
        %971 = vmatpush1.xpose.msra.mxu0 0.0
        %972 = vmatprep.subr.mxu0 0.0
        %973 = vmatpush1.xpose.msra.mxu0 0.0
        %974 = vmatprep.subr.mxu0 0.0
        %975 = vmatpush1.xpose.msra.mxu0 0.0
        %976 = vmatprep.subr.mxu0 0.0
        %977 = vmatpush1.xpose.msra.mxu0 0.0
        %978 = vmatprep.subr.mxu0 0.0
        %979 = vmatpush1.xpose.msra.mxu0 0.0
        %980 = vmatprep.subr.mxu0 0.0
        %981 = vmatpush1.xpose.msra.mxu0 0.0
        %982 = vmatprep.subr.mxu0 0.0
        %983 = vmatpush1.xpose.msra.mxu0 0.0
        %984 = vmatprep.subr.mxu0 0.0
        %985 = vmatpush1.xpose.msra.mxu0 0.0
        %986 = vmatprep.subr.mxu0 0.0
        %987 = vmatpush1.xpose.msra.mxu0 0.0
        %988 = vmatprep.subr.mxu0 0.0
        %989 = vmatpush1.xpose.msra.mxu0 0.0
        %990 = vmatprep.subr.mxu0 0.0
        %991 = vmatpush1.xpose.msra.mxu0 0.0
        %992 = vmatprep.subr.mxu0 0.0
        %993 = vmatpush1.xpose.msra.mxu0 0.0
        %994 = vmatprep.subr.mxu0 0.0
        %995 = vmatpush1.xpose.msra.mxu0 0.0
        %996 = vmatprep.subr.mxu0 0.0
        %997 = vmatpush1.xpose.msra.mxu0 0.0
        %998 = vmatprep.subr.mxu0 0.0
        %999 = vmatpush1.xpose.msra.mxu0 0.0
        %1000 = vmatprep.subr.mxu0 0.0
        %1001 = vmatpush1.xpose.msra.mxu0 0.0
        %1002 = vmatprep.subr.mxu0 0.0
        %1003 = vmatpush1.xpose.msra.mxu0 0.0
        %1004 = vmatprep.subr.mxu0 0.0
        %1005 = vmatpush1.xpose.msra.mxu0 0.0
        %1006 = vmatprep.subr.mxu0 0.0
        %1007 = vmatpush1.xpose.msra.mxu0 0.0
        %1008 = vmatprep.subr.mxu0 0.0
        %1009 = vmatpush1.xpose.msra.mxu0 0.0
        %1010 = vmatprep.subr.mxu0 0.0
        %1011 = vmatpush1.xpose.msra.mxu0 0.0
        %1012 = vmatprep.subr.mxu0 0.0
        %1013 = vmatpush1.xpose.msra.mxu0 0.0
        %1014 = vmatprep.subr.mxu0 0.0
        %1015 = vmatpush1.xpose.msra.mxu0 0.0
        %1016 = vmatprep.subr.mxu0 0.0
        %1017 = vmatpush1.xpose.msra.mxu0 0.0
        %1018 = vmatprep.subr.mxu0 0.0
        %1019 = vmatpush1.xpose.msra.mxu0 0.0
        %1020 = vmatprep.subr.mxu0 0.0
        %1021 = vmatpush1.xpose.msra.mxu0 0.0
        %1022 = vmatprep.subr.mxu0 0.0
        %1023 = vmatpush1.xpose.msra.mxu0 0.0
        %1024 = vmatprep.mubr.f32.mxu0 0.0
        %1025 = vmatmul.mubr.f32.gmra.mrb[0].mxu0 %v955
        %v1026 = vpop.f32.mrb[0].mxu0
        %v1027 = vadd.f32 0.0, %v1026
        %v1028 = vpop.f32.mrb[0].mxu0
        %1029 = vdwg.mxu0
        %v1031 = vsel %vm877, %v820, 0
        %v1034 = vsel %vm877, %v822, 0
        %1036 = vmatprep.subr.mxu0 0.0
        %1037 = vmatpush1.xpose.msra.mxu0 %v1034
        %1038 = vmatprep.subr.mxu0 0.0
        %1039 = vmatpush1.xpose.msra.mxu0 0.0
        %1040 = vmatprep.subr.mxu0 0.0
        %1041 = vmatpush1.xpose.msra.mxu0 0.0
        %1042 = vmatprep.subr.mxu0 0.0
        %1043 = vmatpush1.xpose.msra.mxu0 0.0
        %1044 = vmatprep.subr.mxu0 0.0
        %1045 = vmatpush1.xpose.msra.mxu0 0.0
        %1046 = vmatprep.subr.mxu0 0.0
        %1047 = vmatpush1.xpose.msra.mxu0 0.0
        %1048 = vmatprep.subr.mxu0 0.0
        %1049 = vmatpush1.xpose.msra.mxu0 0.0
        %1050 = vmatprep.subr.mxu0 0.0
        %1051 = vmatpush1.xpose.msra.mxu0 0.0
        %1052 = vmatprep.subr.mxu0 0.0
        %1053 = vmatpush1.xpose.msra.mxu0 0.0
        %1054 = vmatprep.subr.mxu0 0.0
        %1055 = vmatpush1.xpose.msra.mxu0 0.0
        %1056 = vmatprep.subr.mxu0 0.0
        %1057 = vmatpush1.xpose.msra.mxu0 0.0
        %1058 = vmatprep.subr.mxu0 0.0
        %1059 = vmatpush1.xpose.msra.mxu0 0.0
        %1060 = vmatprep.subr.mxu0 0.0
        %1061 = vmatpush1.xpose.msra.mxu0 0.0
        %1062 = vmatprep.subr.mxu0 0.0
        %1063 = vmatpush1.xpose.msra.mxu0 0.0
        %1064 = vmatprep.subr.mxu0 0.0
        %1065 = vmatpush1.xpose.msra.mxu0 0.0
        %1066 = vmatprep.subr.mxu0 0.0
        %1067 = vmatpush1.xpose.msra.mxu0 0.0
        %1068 = vmatprep.subr.mxu0 0.0
        %1069 = vmatpush1.xpose.msra.mxu0 0.0
        %1070 = vmatprep.subr.mxu0 0.0
        %1071 = vmatpush1.xpose.msra.mxu0 0.0
        %1072 = vmatprep.subr.mxu0 0.0
        %1073 = vmatpush1.xpose.msra.mxu0 0.0
        %1074 = vmatprep.subr.mxu0 0.0
        %1075 = vmatpush1.xpose.msra.mxu0 0.0
        %1076 = vmatprep.subr.mxu0 0.0
        %1077 = vmatpush1.xpose.msra.mxu0 0.0
        %1078 = vmatprep.subr.mxu0 0.0
        %1079 = vmatpush1.xpose.msra.mxu0 0.0
        %1080 = vmatprep.subr.mxu0 0.0
        %1081 = vmatpush1.xpose.msra.mxu0 0.0
        %1082 = vmatprep.subr.mxu0 0.0
        %1083 = vmatpush1.xpose.msra.mxu0 0.0
        %1084 = vmatprep.subr.mxu0 0.0
        %1085 = vmatpush1.xpose.msra.mxu0 0.0
        %1086 = vmatprep.subr.mxu0 0.0
        %1087 = vmatpush1.xpose.msra.mxu0 0.0
        %1088 = vmatprep.subr.mxu0 0.0
        %1089 = vmatpush1.xpose.msra.mxu0 0.0
        %1090 = vmatprep.subr.mxu0 0.0
        %1091 = vmatpush1.xpose.msra.mxu0 0.0
        %1092 = vmatprep.subr.mxu0 0.0
        %1093 = vmatpush1.xpose.msra.mxu0 0.0
        %1094 = vmatprep.subr.mxu0 0.0
        %1095 = vmatpush1.xpose.msra.mxu0 0.0
        %1096 = vmatprep.subr.mxu0 0.0
        %1097 = vmatpush1.xpose.msra.mxu0 0.0
        %1098 = vmatprep.subr.mxu0 0.0
        %1099 = vmatpush1.xpose.msra.mxu0 0.0
        %1100 = vmatprep.mubr.f32.mxu0 0.0
        %1101 = vmatmul.mubr.f32.gmra.mrb[0].mxu0 %v1031
        %v1102 = vpop.f32.mrb[0].mxu0
        %v1103 = vadd.f32 0.0, %v1102
        %v1104 = vpop.f32.mrb[0].mxu0
        %1105 = vdwg.mxu0
        %v1107 = vsel %vm877, %v824, 0
        %v1110 = vsel %vm877, %v826, 0
        %1112 = vmatprep.subr.mxu0 0.0
        %1113 = vmatpush1.xpose.msra.mxu0 %v1110
        %1114 = vmatprep.subr.mxu0 0.0
        %1115 = vmatpush1.xpose.msra.mxu0 0.0
        %1116 = vmatprep.subr.mxu0 0.0
        %1117 = vmatpush1.xpose.msra.mxu0 0.0
        %1118 = vmatprep.subr.mxu0 0.0
        %1119 = vmatpush1.xpose.msra.mxu0 0.0
        %1120 = vmatprep.subr.mxu0 0.0
        %1121 = vmatpush1.xpose.msra.mxu0 0.0
        %1122 = vmatprep.subr.mxu0 0.0
        %1123 = vmatpush1.xpose.msra.mxu0 0.0
        %1124 = vmatprep.subr.mxu0 0.0
        %1125 = vmatpush1.xpose.msra.mxu0 0.0
        %1126 = vmatprep.subr.mxu0 0.0
        %1127 = vmatpush1.xpose.msra.mxu0 0.0
        %1128 = vmatprep.subr.mxu0 0.0
        %1129 = vmatpush1.xpose.msra.mxu0 0.0
        %1130 = vmatprep.subr.mxu0 0.0
        %1131 = vmatpush1.xpose.msra.mxu0 0.0
        %1132 = vmatprep.subr.mxu0 0.0
        %1133 = vmatpush1.xpose.msra.mxu0 0.0
        %1134 = vmatprep.subr.mxu0 0.0
        %1135 = vmatpush1.xpose.msra.mxu0 0.0
        %1136 = vmatprep.subr.mxu0 0.0
        %1137 = vmatpush1.xpose.msra.mxu0 0.0
        %1138 = vmatprep.subr.mxu0 0.0
        %1139 = vmatpush1.xpose.msra.mxu0 0.0
        %1140 = vmatprep.subr.mxu0 0.0
        %1141 = vmatpush1.xpose.msra.mxu0 0.0
        %1142 = vmatprep.subr.mxu0 0.0
        %1143 = vmatpush1.xpose.msra.mxu0 0.0
        %1144 = vmatprep.subr.mxu0 0.0
        %1145 = vmatpush1.xpose.msra.mxu0 0.0
        %1146 = vmatprep.subr.mxu0 0.0
        %1147 = vmatpush1.xpose.msra.mxu0 0.0
        %1148 = vmatprep.subr.mxu0 0.0
        %1149 = vmatpush1.xpose.msra.mxu0 0.0
        %1150 = vmatprep.subr.mxu0 0.0
        %1151 = vmatpush1.xpose.msra.mxu0 0.0
        %1152 = vmatprep.subr.mxu0 0.0
        %1153 = vmatpush1.xpose.msra.mxu0 0.0
        %1154 = vmatprep.subr.mxu0 0.0
        %1155 = vmatpush1.xpose.msra.mxu0 0.0
        %1156 = vmatprep.subr.mxu0 0.0
        %1157 = vmatpush1.xpose.msra.mxu0 0.0
        %1158 = vmatprep.subr.mxu0 0.0
        %1159 = vmatpush1.xpose.msra.mxu0 0.0
        %1160 = vmatprep.subr.mxu0 0.0
        %1161 = vmatpush1.xpose.msra.mxu0 0.0
        %1162 = vmatprep.subr.mxu0 0.0
        %1163 = vmatpush1.xpose.msra.mxu0 0.0
        %1164 = vmatprep.subr.mxu0 0.0
        %1165 = vmatpush1.xpose.msra.mxu0 0.0
        %1166 = vmatprep.subr.mxu0 0.0
        %1167 = vmatpush1.xpose.msra.mxu0 0.0
        %1168 = vmatprep.subr.mxu0 0.0
        %1169 = vmatpush1.xpose.msra.mxu0 0.0
        %1170 = vmatprep.subr.mxu0 0.0
        %1171 = vmatpush1.xpose.msra.mxu0 0.0
        %1172 = vmatprep.subr.mxu0 0.0
        %1173 = vmatpush1.xpose.msra.mxu0 0.0
        %1174 = vmatprep.subr.mxu0 0.0
        %1175 = vmatpush1.xpose.msra.mxu0 0.0
        %1176 = vmatprep.mubr.f32.mxu0 0.0
        %1177 = vmatmul.mubr.f32.gmra.mrb[0].mxu0 %v1107
        %v1178 = vpop.f32.mrb[0].mxu0
        %v1179 = vadd.f32 0.0, %v1178
        %v1180 = vpop.f32.mrb[0].mxu0
        %1181 = vdwg.mxu0
        %v1182 = vmul.f32 %v951, 0.17677669
        %v1183 = vmul.f32 %v1027, 0.17677669
        %v1184 = vmul.f32 %v1103, 0.17677669
        %v1185 = vmul.f32 %v1179, 0.17677669
        %v1186 = vadd.f32 %v1182, %v496
        %v1187 = vadd.f32 %v1183, %v497
        %v1188 = vadd.f32 %v1184, %v498
        %v1189 = vadd.f32 %v1185, %v499
        %vm1190 = vcmask 64512
        %v1191 = vsel %vm1190, %v1186, -inf
        %1192 = vmax.xlane.f32.xlu0 %v1191
        %v1193 = vpop.xlane.xlu0 %1192
        %v1194 = vsel %vm1190, %v1187, -inf
        %1195 = vmax.xlane.f32.xlu0 %v1194
        %v1196 = vpop.xlane.xlu0 %1195
        %v1197 = vsel %vm1190, %v1188, -inf
        %1198 = vmax.xlane.f32.xlu0 %v1197
        %v1199 = vpop.xlane.xlu0 %1198
        %v1200 = vsel %vm1190, %v1189, -inf
        %1201 = vmax.xlane.f32.xlu0 %v1200
        %v1202 = vpop.xlane.xlu0 %1201
        %v1203 = vsub.f32 %v1186, %v1193
        %v1204 = vsub.f32 %v1187, %v1196
        %v1205 = vsub.f32 %v1188, %v1199
        %v1206 = vsub.f32 %v1189, %v1202
        %v1207 = vmul.f32 %v1203, 1.442695
        %v1208 = vpow.pop %v1207
        %v1209 = vmul.f32 %v1204, 1.442695
        %v1210 = vpow.pop %v1209
        %v1211 = vmul.f32 %v1205, 1.442695
        %v1212 = vpow.pop %v1211
        %v1213 = vmul.f32 %v1206, 1.442695
        %v1214 = vpow.pop %v1213
        %v1215 = vsel %vm1190, %v1208, 0.0
        %1216 = vadd.xlane.f32.xlu0 %v1215
        %v1217 = vpop.xlane.xlu0 %1216
        %v1218 = vsel %vm1190, %v1210, 0.0
        %1219 = vadd.xlane.f32.xlu0 %v1218
        %v1220 = vpop.xlane.xlu0 %1219
        %v1221 = vsel %vm1190, %v1212, 0.0
        %1222 = vadd.xlane.f32.xlu0 %v1221
        %v1223 = vpop.xlane.xlu0 %1222
        %v1224 = vsel %vm1190, %v1214, 0.0
        %1225 = vadd.xlane.f32.xlu0 %v1224
        %v1226 = vpop.xlane.xlu0 %1225
        %v1227 = vrcp.pop %v1217
        %v1228 = vrcp.pop %v1220
        %v1229 = vrcp.pop %v1223
        %v1230 = vrcp.pop %v1226
        %v1231 = vmul.f32 %v1208, %v1227
        %v1232 = vmul.f32 %v1210, %v1228
        %v1233 = vmul.f32 %v1212, %v1229
        %v1234 = vmul.f32 %v1214, %v1230
        %v1236 = vsel %vm1190, %v1231, 0
        %1238 = vmatprep.subr.mxu0 0.0
        %1239 = vmatpush1.msra.mxu0 %v863
        %1240 = vmatprep.subr.mxu0 0.0
        %1241 = vmatpush1.msra.mxu0 0.0
        %1242 = vmatprep.subr.mxu0 0.0
        %1243 = vmatpush1.msra.mxu0 0.0
        %1244 = vmatprep.subr.mxu0 0.0
        %1245 = vmatpush1.msra.mxu0 0.0
        %1246 = vmatprep.subr.mxu0 0.0
        %1247 = vmatpush1.msra.mxu0 0.0
        %1248 = vmatprep.subr.mxu0 0.0
        %1249 = vmatpush1.msra.mxu0 0.0
        %1250 = vmatprep.subr.mxu0 0.0
        %1251 = vmatpush1.msra.mxu0 0.0
        %1252 = vmatprep.subr.mxu0 0.0
        %1253 = vmatpush1.msra.mxu0 0.0
        %1254 = vmatprep.subr.mxu0 0.0
        %1255 = vmatpush1.msra.mxu0 0.0
        %1256 = vmatprep.subr.mxu0 0.0
        %1257 = vmatpush1.msra.mxu0 0.0
        %1258 = vmatprep.subr.mxu0 0.0
        %1259 = vmatpush1.msra.mxu0 0.0
        %1260 = vmatprep.subr.mxu0 0.0
        %1261 = vmatpush1.msra.mxu0 0.0
        %1262 = vmatprep.subr.mxu0 0.0
        %1263 = vmatpush1.msra.mxu0 0.0
        %1264 = vmatprep.subr.mxu0 0.0
        %1265 = vmatpush1.msra.mxu0 0.0
        %1266 = vmatprep.subr.mxu0 0.0
        %1267 = vmatpush1.msra.mxu0 0.0
        %1268 = vmatprep.subr.mxu0 0.0
        %1269 = vmatpush1.msra.mxu0 0.0
        %1270 = vmatprep.subr.mxu0 0.0
        %1271 = vmatpush1.msra.mxu0 0.0
        %1272 = vmatprep.subr.mxu0 0.0
        %1273 = vmatpush1.msra.mxu0 0.0
        %1274 = vmatprep.subr.mxu0 0.0
        %1275 = vmatpush1.msra.mxu0 0.0
        %1276 = vmatprep.subr.mxu0 0.0
        %1277 = vmatpush1.msra.mxu0 0.0
        %1278 = vmatprep.subr.mxu0 0.0
        %1279 = vmatpush1.msra.mxu0 0.0
        %1280 = vmatprep.subr.mxu0 0.0
        %1281 = vmatpush1.msra.mxu0 0.0
        %1282 = vmatprep.subr.mxu0 0.0
        %1283 = vmatpush1.msra.mxu0 0.0
        %1284 = vmatprep.subr.mxu0 0.0
        %1285 = vmatpush1.msra.mxu0 0.0
        %1286 = vmatprep.subr.mxu0 0.0
        %1287 = vmatpush1.msra.mxu0 0.0
        %1288 = vmatprep.subr.mxu0 0.0
        %1289 = vmatpush1.msra.mxu0 0.0
        %1290 = vmatprep.subr.mxu0 0.0
        %1291 = vmatpush1.msra.mxu0 0.0
        %1292 = vmatprep.subr.mxu0 0.0
        %1293 = vmatpush1.msra.mxu0 0.0
        %1294 = vmatprep.subr.mxu0 0.0
        %1295 = vmatpush1.msra.mxu0 0.0
        %1296 = vmatprep.subr.mxu0 0.0
        %1297 = vmatpush1.msra.mxu0 0.0
        %1298 = vmatprep.subr.mxu0 0.0
        %1299 = vmatpush1.msra.mxu0 0.0
        %1300 = vmatprep.subr.mxu0 0.0
        %1301 = vmatpush1.msra.mxu0 0.0
        %1302 = vmatprep.mubr.f32.mxu0 0.0
        %1303 = vmatmul.mubr.f32.gmra.mrb[0].mxu0 %v1236
        %v1304 = vpop.f32.mrb[0].mxu0
        %v1305 = vadd.f32 0.0, %v1304
        %v1306 = vpop.f32.mrb[0].mxu0
        %1307 = vdwg.mxu0
        %v1309 = vsel %vm1190, %v1232, 0
        %1311 = vmatprep.subr.mxu0 0.0
        %1312 = vmatpush1.msra.mxu0 %v866
        %1313 = vmatprep.subr.mxu0 0.0
        %1314 = vmatpush1.msra.mxu0 0.0
        %1315 = vmatprep.subr.mxu0 0.0
        %1316 = vmatpush1.msra.mxu0 0.0
        %1317 = vmatprep.subr.mxu0 0.0
        %1318 = vmatpush1.msra.mxu0 0.0
        %1319 = vmatprep.subr.mxu0 0.0
        %1320 = vmatpush1.msra.mxu0 0.0
        %1321 = vmatprep.subr.mxu0 0.0
        %1322 = vmatpush1.msra.mxu0 0.0
        %1323 = vmatprep.subr.mxu0 0.0
        %1324 = vmatpush1.msra.mxu0 0.0
        %1325 = vmatprep.subr.mxu0 0.0
        %1326 = vmatpush1.msra.mxu0 0.0
        %1327 = vmatprep.subr.mxu0 0.0
        %1328 = vmatpush1.msra.mxu0 0.0
        %1329 = vmatprep.subr.mxu0 0.0
        %1330 = vmatpush1.msra.mxu0 0.0
        %1331 = vmatprep.subr.mxu0 0.0
        %1332 = vmatpush1.msra.mxu0 0.0
        %1333 = vmatprep.subr.mxu0 0.0
        %1334 = vmatpush1.msra.mxu0 0.0
        %1335 = vmatprep.subr.mxu0 0.0
        %1336 = vmatpush1.msra.mxu0 0.0
        %1337 = vmatprep.subr.mxu0 0.0
        %1338 = vmatpush1.msra.mxu0 0.0
        %1339 = vmatprep.subr.mxu0 0.0
        %1340 = vmatpush1.msra.mxu0 0.0
        %1341 = vmatprep.subr.mxu0 0.0
        %1342 = vmatpush1.msra.mxu0 0.0
        %1343 = vmatprep.subr.mxu0 0.0
        %1344 = vmatpush1.msra.mxu0 0.0
        %1345 = vmatprep.subr.mxu0 0.0
        %1346 = vmatpush1.msra.mxu0 0.0
        %1347 = vmatprep.subr.mxu0 0.0
        %1348 = vmatpush1.msra.mxu0 0.0
        %1349 = vmatprep.subr.mxu0 0.0
        %1350 = vmatpush1.msra.mxu0 0.0
        %1351 = vmatprep.subr.mxu0 0.0
        %1352 = vmatpush1.msra.mxu0 0.0
        %1353 = vmatprep.subr.mxu0 0.0
        %1354 = vmatpush1.msra.mxu0 0.0
        %1355 = vmatprep.subr.mxu0 0.0
        %1356 = vmatpush1.msra.mxu0 0.0
        %1357 = vmatprep.subr.mxu0 0.0
        %1358 = vmatpush1.msra.mxu0 0.0
        %1359 = vmatprep.subr.mxu0 0.0
        %1360 = vmatpush1.msra.mxu0 0.0
        %1361 = vmatprep.subr.mxu0 0.0
        %1362 = vmatpush1.msra.mxu0 0.0
        %1363 = vmatprep.subr.mxu0 0.0
        %1364 = vmatpush1.msra.mxu0 0.0
        %1365 = vmatprep.subr.mxu0 0.0
        %1366 = vmatpush1.msra.mxu0 0.0
        %1367 = vmatprep.subr.mxu0 0.0
        %1368 = vmatpush1.msra.mxu0 0.0
        %1369 = vmatprep.subr.mxu0 0.0
        %1370 = vmatpush1.msra.mxu0 0.0
        %1371 = vmatprep.subr.mxu0 0.0
        %1372 = vmatpush1.msra.mxu0 0.0
        %1373 = vmatprep.subr.mxu0 0.0
        %1374 = vmatpush1.msra.mxu0 0.0
        %1375 = vmatprep.mubr.f32.mxu0 0.0
        %1376 = vmatmul.mubr.f32.gmra.mrb[0].mxu0 %v1309
        %v1377 = vpop.f32.mrb[0].mxu0
        %v1378 = vadd.f32 0.0, %v1377
        %v1379 = vpop.f32.mrb[0].mxu0
        %1380 = vdwg.mxu0
        %v1382 = vsel %vm1190, %v1233, 0
        %1384 = vmatprep.subr.mxu0 0.0
        %1385 = vmatpush1.msra.mxu0 %v871
        %1386 = vmatprep.subr.mxu0 0.0
        %1387 = vmatpush1.msra.mxu0 0.0
        %1388 = vmatprep.subr.mxu0 0.0
        %1389 = vmatpush1.msra.mxu0 0.0
        %1390 = vmatprep.subr.mxu0 0.0
        %1391 = vmatpush1.msra.mxu0 0.0
        %1392 = vmatprep.subr.mxu0 0.0
        %1393 = vmatpush1.msra.mxu0 0.0
        %1394 = vmatprep.subr.mxu0 0.0
        %1395 = vmatpush1.msra.mxu0 0.0
        %1396 = vmatprep.subr.mxu0 0.0
        %1397 = vmatpush1.msra.mxu0 0.0
        %1398 = vmatprep.subr.mxu0 0.0
        %1399 = vmatpush1.msra.mxu0 0.0
        %1400 = vmatprep.subr.mxu0 0.0
        %1401 = vmatpush1.msra.mxu0 0.0
        %1402 = vmatprep.subr.mxu0 0.0
        %1403 = vmatpush1.msra.mxu0 0.0
        %1404 = vmatprep.subr.mxu0 0.0
        %1405 = vmatpush1.msra.mxu0 0.0
        %1406 = vmatprep.subr.mxu0 0.0
        %1407 = vmatpush1.msra.mxu0 0.0
        %1408 = vmatprep.subr.mxu0 0.0
        %1409 = vmatpush1.msra.mxu0 0.0
        %1410 = vmatprep.subr.mxu0 0.0
        %1411 = vmatpush1.msra.mxu0 0.0
        %1412 = vmatprep.subr.mxu0 0.0
        %1413 = vmatpush1.msra.mxu0 0.0
        %1414 = vmatprep.subr.mxu0 0.0
        %1415 = vmatpush1.msra.mxu0 0.0
        %1416 = vmatprep.subr.mxu0 0.0
        %1417 = vmatpush1.msra.mxu0 0.0
        %1418 = vmatprep.subr.mxu0 0.0
        %1419 = vmatpush1.msra.mxu0 0.0
        %1420 = vmatprep.subr.mxu0 0.0
        %1421 = vmatpush1.msra.mxu0 0.0
        %1422 = vmatprep.subr.mxu0 0.0
        %1423 = vmatpush1.msra.mxu0 0.0
        %1424 = vmatprep.subr.mxu0 0.0
        %1425 = vmatpush1.msra.mxu0 0.0
        %1426 = vmatprep.subr.mxu0 0.0
        %1427 = vmatpush1.msra.mxu0 0.0
        %1428 = vmatprep.subr.mxu0 0.0
        %1429 = vmatpush1.msra.mxu0 0.0
        %1430 = vmatprep.subr.mxu0 0.0
        %1431 = vmatpush1.msra.mxu0 0.0
        %1432 = vmatprep.subr.mxu0 0.0
        %1433 = vmatpush1.msra.mxu0 0.0
        %1434 = vmatprep.subr.mxu0 0.0
        %1435 = vmatpush1.msra.mxu0 0.0
        %1436 = vmatprep.subr.mxu0 0.0
        %1437 = vmatpush1.msra.mxu0 0.0
        %1438 = vmatprep.subr.mxu0 0.0
        %1439 = vmatpush1.msra.mxu0 0.0
        %1440 = vmatprep.subr.mxu0 0.0
        %1441 = vmatpush1.msra.mxu0 0.0
        %1442 = vmatprep.subr.mxu0 0.0
        %1443 = vmatpush1.msra.mxu0 0.0
        %1444 = vmatprep.subr.mxu0 0.0
        %1445 = vmatpush1.msra.mxu0 0.0
        %1446 = vmatprep.subr.mxu0 0.0
        %1447 = vmatpush1.msra.mxu0 0.0
        %1448 = vmatprep.mubr.f32.mxu0 0.0
        %1449 = vmatmul.mubr.f32.gmra.mrb[0].mxu0 %v1382
        %v1450 = vpop.f32.mrb[0].mxu0
        %v1451 = vadd.f32 0.0, %v1450
        %v1452 = vpop.f32.mrb[0].mxu0
        %1453 = vdwg.mxu0
        %v1455 = vsel %vm1190, %v1234, 0
        %1457 = vmatprep.subr.mxu0 0.0
        %1458 = vmatpush1.msra.mxu0 %v874
        %1459 = vmatprep.subr.mxu0 0.0
        %1460 = vmatpush1.msra.mxu0 0.0
        %1461 = vmatprep.subr.mxu0 0.0
        %1462 = vmatpush1.msra.mxu0 0.0
        %1463 = vmatprep.subr.mxu0 0.0
        %1464 = vmatpush1.msra.mxu0 0.0
        %1465 = vmatprep.subr.mxu0 0.0
        %1466 = vmatpush1.msra.mxu0 0.0
        %1467 = vmatprep.subr.mxu0 0.0
        %1468 = vmatpush1.msra.mxu0 0.0
        %1469 = vmatprep.subr.mxu0 0.0
        %1470 = vmatpush1.msra.mxu0 0.0
        %1471 = vmatprep.subr.mxu0 0.0
        %1472 = vmatpush1.msra.mxu0 0.0
        %1473 = vmatprep.subr.mxu0 0.0
        %1474 = vmatpush1.msra.mxu0 0.0
        %1475 = vmatprep.subr.mxu0 0.0
        %1476 = vmatpush1.msra.mxu0 0.0
        %1477 = vmatprep.subr.mxu0 0.0
        %1478 = vmatpush1.msra.mxu0 0.0
        %1479 = vmatprep.subr.mxu0 0.0
        %1480 = vmatpush1.msra.mxu0 0.0
        %1481 = vmatprep.subr.mxu0 0.0
        %1482 = vmatpush1.msra.mxu0 0.0
        %1483 = vmatprep.subr.mxu0 0.0
        %1484 = vmatpush1.msra.mxu0 0.0
        %1485 = vmatprep.subr.mxu0 0.0
        %1486 = vmatpush1.msra.mxu0 0.0
        %1487 = vmatprep.subr.mxu0 0.0
        %1488 = vmatpush1.msra.mxu0 0.0
        %1489 = vmatprep.subr.mxu0 0.0
        %1490 = vmatpush1.msra.mxu0 0.0
        %1491 = vmatprep.subr.mxu0 0.0
        %1492 = vmatpush1.msra.mxu0 0.0
        %1493 = vmatprep.subr.mxu0 0.0
        %1494 = vmatpush1.msra.mxu0 0.0
        %1495 = vmatprep.subr.mxu0 0.0
        %1496 = vmatpush1.msra.mxu0 0.0
        %1497 = vmatprep.subr.mxu0 0.0
        %1498 = vmatpush1.msra.mxu0 0.0
        %1499 = vmatprep.subr.mxu0 0.0
        %1500 = vmatpush1.msra.mxu0 0.0
        %1501 = vmatprep.subr.mxu0 0.0
        %1502 = vmatpush1.msra.mxu0 0.0
        %1503 = vmatprep.subr.mxu0 0.0
        %1504 = vmatpush1.msra.mxu0 0.0
        %1505 = vmatprep.subr.mxu0 0.0
        %1506 = vmatpush1.msra.mxu0 0.0
        %1507 = vmatprep.subr.mxu0 0.0
        %1508 = vmatpush1.msra.mxu0 0.0
        %1509 = vmatprep.subr.mxu0 0.0
        %1510 = vmatpush1.msra.mxu0 0.0
        %1511 = vmatprep.subr.mxu0 0.0
        %1512 = vmatpush1.msra.mxu0 0.0
        %1513 = vmatprep.subr.mxu0 0.0
        %1514 = vmatpush1.msra.mxu0 0.0
        %1515 = vmatprep.subr.mxu0 0.0
        %1516 = vmatpush1.msra.mxu0 0.0
        %1517 = vmatprep.subr.mxu0 0.0
        %1518 = vmatpush1.msra.mxu0 0.0
        %1519 = vmatprep.subr.mxu0 0.0
        %1520 = vmatpush1.msra.mxu0 0.0
        %1521 = vmatprep.mubr.f32.mxu0 0.0
        %1522 = vmatmul.mubr.f32.gmra.mrb[0].mxu0 %v1455
        %v1523 = vpop.f32.mrb[0].mxu0
        %v1524 = vadd.f32 0.0, %v1523
        %v1525 = vpop.f32.mrb[0].mxu0
        %1526 = vdwg.mxu0
        %v1527 = vpack.c.bf16 %v1378, %v1305
        %v1528 = vpack.c.bf16 %v1524, %v1451
        %v1529 = vld [vmem:[%s6] sm:$0xf]
        %v1530 = vld [vmem:[%s6 + $0x4] sm:$0xf]
        %v1531 = vld [vmem:[%s6 + $0x8] sm:$0xf]
        %v1532 = vld [vmem:[%s6 + $0xc] sm:$0xf]
        %1533 = vrot.lane.b32.xlu0 %v810, 96
        %v1534 = vpop.permute.xlu0 %1533
        %1535 = vrot.lane.b32.xlu0 %v812, 96
        %v1536 = vpop.permute.xlu0 %1535
        %v1537 = vsel %vm877, %v1534, 0
        %v1539 = vsel %vm877, %v1536, 0
        %1541 = vmatprep.subr.mxu0 0.0
        %1542 = vmatpush1.xpose.msra.mxu0 %v1539
        %1543 = vmatprep.subr.mxu0 0.0
        %1544 = vmatpush1.xpose.msra.mxu0 0.0
        %1545 = vmatprep.subr.mxu0 0.0
        %1546 = vmatpush1.xpose.msra.mxu0 0.0
        %1547 = vmatprep.subr.mxu0 0.0
        %1548 = vmatpush1.xpose.msra.mxu0 0.0
        %1549 = vmatprep.subr.mxu0 0.0
        %1550 = vmatpush1.xpose.msra.mxu0 0.0
        %1551 = vmatprep.subr.mxu0 0.0
        %1552 = vmatpush1.xpose.msra.mxu0 0.0
        %1553 = vmatprep.subr.mxu0 0.0
        %1554 = vmatpush1.xpose.msra.mxu0 0.0
        %1555 = vmatprep.subr.mxu0 0.0
        %1556 = vmatpush1.xpose.msra.mxu0 0.0
        %1557 = vmatprep.subr.mxu0 0.0
        %1558 = vmatpush1.xpose.msra.mxu0 0.0
        %1559 = vmatprep.subr.mxu0 0.0
        %1560 = vmatpush1.xpose.msra.mxu0 0.0
        %1561 = vmatprep.subr.mxu0 0.0
        %1562 = vmatpush1.xpose.msra.mxu0 0.0
        %1563 = vmatprep.subr.mxu0 0.0
        %1564 = vmatpush1.xpose.msra.mxu0 0.0
        %1565 = vmatprep.subr.mxu0 0.0
        %1566 = vmatpush1.xpose.msra.mxu0 0.0
        %1567 = vmatprep.subr.mxu0 0.0
        %1568 = vmatpush1.xpose.msra.mxu0 0.0
        %1569 = vmatprep.subr.mxu0 0.0
        %1570 = vmatpush1.xpose.msra.mxu0 0.0
        %1571 = vmatprep.subr.mxu0 0.0
        %1572 = vmatpush1.xpose.msra.mxu0 0.0
        %1573 = vmatprep.subr.mxu0 0.0
        %1574 = vmatpush1.xpose.msra.mxu0 0.0
        %1575 = vmatprep.subr.mxu0 0.0
        %1576 = vmatpush1.xpose.msra.mxu0 0.0
        %1577 = vmatprep.subr.mxu0 0.0
        %1578 = vmatpush1.xpose.msra.mxu0 0.0
        %1579 = vmatprep.subr.mxu0 0.0
        %1580 = vmatpush1.xpose.msra.mxu0 0.0
        %1581 = vmatprep.subr.mxu0 0.0
        %1582 = vmatpush1.xpose.msra.mxu0 0.0
        %1583 = vmatprep.subr.mxu0 0.0
        %1584 = vmatpush1.xpose.msra.mxu0 0.0
        %1585 = vmatprep.subr.mxu0 0.0
        %1586 = vmatpush1.xpose.msra.mxu0 0.0
        %1587 = vmatprep.subr.mxu0 0.0
        %1588 = vmatpush1.xpose.msra.mxu0 0.0
        %1589 = vmatprep.subr.mxu0 0.0
        %1590 = vmatpush1.xpose.msra.mxu0 0.0
        %1591 = vmatprep.subr.mxu0 0.0
        %1592 = vmatpush1.xpose.msra.mxu0 0.0
        %1593 = vmatprep.subr.mxu0 0.0
        %1594 = vmatpush1.xpose.msra.mxu0 0.0
        %1595 = vmatprep.subr.mxu0 0.0
        %1596 = vmatpush1.xpose.msra.mxu0 0.0
        %1597 = vmatprep.subr.mxu0 0.0
        %1598 = vmatpush1.xpose.msra.mxu0 0.0
        %1599 = vmatprep.subr.mxu0 0.0
        %1600 = vmatpush1.xpose.msra.mxu0 0.0
        %1601 = vmatprep.subr.mxu0 0.0
        %1602 = vmatpush1.xpose.msra.mxu0 0.0
        %1603 = vmatprep.subr.mxu0 0.0
        %1604 = vmatpush1.xpose.msra.mxu0 0.0
        %1605 = vmatprep.mubr.f32.mxu0 0.0
        %1606 = vmatmul.mubr.f32.gmra.mrb[0].mxu0 %v1537
        %v1607 = vpop.f32.mrb[0].mxu0
        %v1608 = vadd.f32 0.0, %v1607
        %v1609 = vpop.f32.mrb[0].mxu0
        %1610 = vdwg.mxu0
        %1611 = vrot.lane.b32.xlu0 %v814, 96
        %v1612 = vpop.permute.xlu0 %1611
        %1613 = vrot.lane.b32.xlu0 %v816, 96
        %v1614 = vpop.permute.xlu0 %1613
        %v1615 = vsel %vm877, %v1612, 0
        %v1617 = vsel %vm877, %v1614, 0
        %1619 = vmatprep.subr.mxu0 0.0
        %1620 = vmatpush1.xpose.msra.mxu0 %v1617
        %1621 = vmatprep.subr.mxu0 0.0
        %1622 = vmatpush1.xpose.msra.mxu0 0.0
        %1623 = vmatprep.subr.mxu0 0.0
        %1624 = vmatpush1.xpose.msra.mxu0 0.0
        %1625 = vmatprep.subr.mxu0 0.0
        %1626 = vmatpush1.xpose.msra.mxu0 0.0
        %1627 = vmatprep.subr.mxu0 0.0
        %1628 = vmatpush1.xpose.msra.mxu0 0.0
        %1629 = vmatprep.subr.mxu0 0.0
        %1630 = vmatpush1.xpose.msra.mxu0 0.0
        %1631 = vmatprep.subr.mxu0 0.0
        %1632 = vmatpush1.xpose.msra.mxu0 0.0
        %1633 = vmatprep.subr.mxu0 0.0
        %1634 = vmatpush1.xpose.msra.mxu0 0.0
        %1635 = vmatprep.subr.mxu0 0.0
        %1636 = vmatpush1.xpose.msra.mxu0 0.0
        %1637 = vmatprep.subr.mxu0 0.0
        %1638 = vmatpush1.xpose.msra.mxu0 0.0
        %1639 = vmatprep.subr.mxu0 0.0
        %1640 = vmatpush1.xpose.msra.mxu0 0.0
        %1641 = vmatprep.subr.mxu0 0.0
        %1642 = vmatpush1.xpose.msra.mxu0 0.0
        %1643 = vmatprep.subr.mxu0 0.0
        %1644 = vmatpush1.xpose.msra.mxu0 0.0
        %1645 = vmatprep.subr.mxu0 0.0
        %1646 = vmatpush1.xpose.msra.mxu0 0.0
        %1647 = vmatprep.subr.mxu0 0.0
        %1648 = vmatpush1.xpose.msra.mxu0 0.0
        %1649 = vmatprep.subr.mxu0 0.0
        %1650 = vmatpush1.xpose.msra.mxu0 0.0
        %1651 = vmatprep.subr.mxu0 0.0
        %1652 = vmatpush1.xpose.msra.mxu0 0.0
        %1653 = vmatprep.subr.mxu0 0.0
        %1654 = vmatpush1.xpose.msra.mxu0 0.0
        %1655 = vmatprep.subr.mxu0 0.0
        %1656 = vmatpush1.xpose.msra.mxu0 0.0
        %1657 = vmatprep.subr.mxu0 0.0
        %1658 = vmatpush1.xpose.msra.mxu0 0.0
        %1659 = vmatprep.subr.mxu0 0.0
        %1660 = vmatpush1.xpose.msra.mxu0 0.0
        %1661 = vmatprep.subr.mxu0 0.0
        %1662 = vmatpush1.xpose.msra.mxu0 0.0
        %1663 = vmatprep.subr.mxu0 0.0
        %1664 = vmatpush1.xpose.msra.mxu0 0.0
        %1665 = vmatprep.subr.mxu0 0.0
        %1666 = vmatpush1.xpose.msra.mxu0 0.0
        %1667 = vmatprep.subr.mxu0 0.0
        %1668 = vmatpush1.xpose.msra.mxu0 0.0
        %1669 = vmatprep.subr.mxu0 0.0
        %1670 = vmatpush1.xpose.msra.mxu0 0.0
        %1671 = vmatprep.subr.mxu0 0.0
        %1672 = vmatpush1.xpose.msra.mxu0 0.0
        %1673 = vmatprep.subr.mxu0 0.0
        %1674 = vmatpush1.xpose.msra.mxu0 0.0
        %1675 = vmatprep.subr.mxu0 0.0
        %1676 = vmatpush1.xpose.msra.mxu0 0.0
        %1677 = vmatprep.subr.mxu0 0.0
        %1678 = vmatpush1.xpose.msra.mxu0 0.0
        %1679 = vmatprep.subr.mxu0 0.0
        %1680 = vmatpush1.xpose.msra.mxu0 0.0
        %1681 = vmatprep.subr.mxu0 0.0
        %1682 = vmatpush1.xpose.msra.mxu0 0.0
        %1683 = vmatprep.mubr.f32.mxu0 0.0
        %1684 = vmatmul.mubr.f32.gmra.mrb[0].mxu0 %v1615
        %v1685 = vpop.f32.mrb[0].mxu0
        %v1686 = vadd.f32 0.0, %v1685
        %v1687 = vpop.f32.mrb[0].mxu0
        %1688 = vdwg.mxu0
        %1689 = vrot.lane.b32.xlu0 %v820, 96
        %v1690 = vpop.permute.xlu0 %1689
        %1691 = vrot.lane.b32.xlu0 %v822, 96
        %v1692 = vpop.permute.xlu0 %1691
        %v1693 = vsel %vm877, %v1690, 0
        %v1695 = vsel %vm877, %v1692, 0
        %1697 = vmatprep.subr.mxu0 0.0
        %1698 = vmatpush1.xpose.msra.mxu0 %v1695
        %1699 = vmatprep.subr.mxu0 0.0
        %1700 = vmatpush1.xpose.msra.mxu0 0.0
        %1701 = vmatprep.subr.mxu0 0.0
        %1702 = vmatpush1.xpose.msra.mxu0 0.0
        %1703 = vmatprep.subr.mxu0 0.0
        %1704 = vmatpush1.xpose.msra.mxu0 0.0
        %1705 = vmatprep.subr.mxu0 0.0
        %1706 = vmatpush1.xpose.msra.mxu0 0.0
        %1707 = vmatprep.subr.mxu0 0.0
        %1708 = vmatpush1.xpose.msra.mxu0 0.0
        %1709 = vmatprep.subr.mxu0 0.0
        %1710 = vmatpush1.xpose.msra.mxu0 0.0
        %1711 = vmatprep.subr.mxu0 0.0
        %1712 = vmatpush1.xpose.msra.mxu0 0.0
        %1713 = vmatprep.subr.mxu0 0.0
        %1714 = vmatpush1.xpose.msra.mxu0 0.0
        %1715 = vmatprep.subr.mxu0 0.0
        %1716 = vmatpush1.xpose.msra.mxu0 0.0
        %1717 = vmatprep.subr.mxu0 0.0
        %1718 = vmatpush1.xpose.msra.mxu0 0.0
        %1719 = vmatprep.subr.mxu0 0.0
        %1720 = vmatpush1.xpose.msra.mxu0 0.0
        %1721 = vmatprep.subr.mxu0 0.0
        %1722 = vmatpush1.xpose.msra.mxu0 0.0
        %1723 = vmatprep.subr.mxu0 0.0
        %1724 = vmatpush1.xpose.msra.mxu0 0.0
        %1725 = vmatprep.subr.mxu0 0.0
        %1726 = vmatpush1.xpose.msra.mxu0 0.0
        %1727 = vmatprep.subr.mxu0 0.0
        %1728 = vmatpush1.xpose.msra.mxu0 0.0
        %1729 = vmatprep.subr.mxu0 0.0
        %1730 = vmatpush1.xpose.msra.mxu0 0.0
        %1731 = vmatprep.subr.mxu0 0.0
        %1732 = vmatpush1.xpose.msra.mxu0 0.0
        %1733 = vmatprep.subr.mxu0 0.0
        %1734 = vmatpush1.xpose.msra.mxu0 0.0
        %1735 = vmatprep.subr.mxu0 0.0
        %1736 = vmatpush1.xpose.msra.mxu0 0.0
        %1737 = vmatprep.subr.mxu0 0.0
        %1738 = vmatpush1.xpose.msra.mxu0 0.0
        %1739 = vmatprep.subr.mxu0 0.0
        %1740 = vmatpush1.xpose.msra.mxu0 0.0
        %1741 = vmatprep.subr.mxu0 0.0
        %1742 = vmatpush1.xpose.msra.mxu0 0.0
        %1743 = vmatprep.subr.mxu0 0.0
        %1744 = vmatpush1.xpose.msra.mxu0 0.0
        %1745 = vmatprep.subr.mxu0 0.0
        %1746 = vmatpush1.xpose.msra.mxu0 0.0
        %1747 = vmatprep.subr.mxu0 0.0
        %1748 = vmatpush1.xpose.msra.mxu0 0.0
        %1749 = vmatprep.subr.mxu0 0.0
        %1750 = vmatpush1.xpose.msra.mxu0 0.0
        %1751 = vmatprep.subr.mxu0 0.0
        %1752 = vmatpush1.xpose.msra.mxu0 0.0
        %1753 = vmatprep.subr.mxu0 0.0
        %1754 = vmatpush1.xpose.msra.mxu0 0.0
        %1755 = vmatprep.subr.mxu0 0.0
        %1756 = vmatpush1.xpose.msra.mxu0 0.0
        %1757 = vmatprep.subr.mxu0 0.0
        %1758 = vmatpush1.xpose.msra.mxu0 0.0
        %1759 = vmatprep.subr.mxu0 0.0
        %1760 = vmatpush1.xpose.msra.mxu0 0.0
        %1761 = vmatprep.mubr.f32.mxu0 0.0
        %1762 = vmatmul.mubr.f32.gmra.mrb[0].mxu0 %v1693
        %v1763 = vpop.f32.mrb[0].mxu0
        %v1764 = vadd.f32 0.0, %v1763
        %v1765 = vpop.f32.mrb[0].mxu0
        %1766 = vdwg.mxu0
        %1767 = vrot.lane.b32.xlu0 %v824, 96
        %v1768 = vpop.permute.xlu0 %1767
        %1769 = vrot.lane.b32.xlu0 %v826, 96
        %v1770 = vpop.permute.xlu0 %1769
        %v1771 = vsel %vm877, %v1768, 0
        %v1773 = vsel %vm877, %v1770, 0
        %1775 = vmatprep.subr.mxu0 0.0
        %1776 = vmatpush1.xpose.msra.mxu0 %v1773
        %1777 = vmatprep.subr.mxu0 0.0
        %1778 = vmatpush1.xpose.msra.mxu0 0.0
        %1779 = vmatprep.subr.mxu0 0.0
        %1780 = vmatpush1.xpose.msra.mxu0 0.0
        %1781 = vmatprep.subr.mxu0 0.0
        %1782 = vmatpush1.xpose.msra.mxu0 0.0
        %1783 = vmatprep.subr.mxu0 0.0
        %1784 = vmatpush1.xpose.msra.mxu0 0.0
        %1785 = vmatprep.subr.mxu0 0.0
        %1786 = vmatpush1.xpose.msra.mxu0 0.0
        %1787 = vmatprep.subr.mxu0 0.0
        %1788 = vmatpush1.xpose.msra.mxu0 0.0
        %1789 = vmatprep.subr.mxu0 0.0
        %1790 = vmatpush1.xpose.msra.mxu0 0.0
        %1791 = vmatprep.subr.mxu0 0.0
        %1792 = vmatpush1.xpose.msra.mxu0 0.0
        %1793 = vmatprep.subr.mxu0 0.0
        %1794 = vmatpush1.xpose.msra.mxu0 0.0
        %1795 = vmatprep.subr.mxu0 0.0
        %1796 = vmatpush1.xpose.msra.mxu0 0.0
        %1797 = vmatprep.subr.mxu0 0.0
        %1798 = vmatpush1.xpose.msra.mxu0 0.0
        %1799 = vmatprep.subr.mxu0 0.0
        %1800 = vmatpush1.xpose.msra.mxu0 0.0
        %1801 = vmatprep.subr.mxu0 0.0
        %1802 = vmatpush1.xpose.msra.mxu0 0.0
        %1803 = vmatprep.subr.mxu0 0.0
        %1804 = vmatpush1.xpose.msra.mxu0 0.0
        %1805 = vmatprep.subr.mxu0 0.0
        %1806 = vmatpush1.xpose.msra.mxu0 0.0
        %1807 = vmatprep.subr.mxu0 0.0
        %1808 = vmatpush1.xpose.msra.mxu0 0.0
        %1809 = vmatprep.subr.mxu0 0.0
        %1810 = vmatpush1.xpose.msra.mxu0 0.0
        %1811 = vmatprep.subr.mxu0 0.0
        %1812 = vmatpush1.xpose.msra.mxu0 0.0
        %1813 = vmatprep.subr.mxu0 0.0
        %1814 = vmatpush1.xpose.msra.mxu0 0.0
        %1815 = vmatprep.subr.mxu0 0.0
        %1816 = vmatpush1.xpose.msra.mxu0 0.0
        %1817 = vmatprep.subr.mxu0 0.0
        %1818 = vmatpush1.xpose.msra.mxu0 0.0
        %1819 = vmatprep.subr.mxu0 0.0
        %1820 = vmatpush1.xpose.msra.mxu0 0.0
        %1821 = vmatprep.subr.mxu0 0.0
        %1822 = vmatpush1.xpose.msra.mxu0 0.0
        %1823 = vmatprep.subr.mxu0 0.0
        %1824 = vmatpush1.xpose.msra.mxu0 0.0
        %1825 = vmatprep.subr.mxu0 0.0
        %1826 = vmatpush1.xpose.msra.mxu0 0.0
        %1827 = vmatprep.subr.mxu0 0.0
        %1828 = vmatpush1.xpose.msra.mxu0 0.0
        %1829 = vmatprep.subr.mxu0 0.0
        %1830 = vmatpush1.xpose.msra.mxu0 0.0
        %1831 = vmatprep.subr.mxu0 0.0
        %1832 = vmatpush1.xpose.msra.mxu0 0.0
        %1833 = vmatprep.subr.mxu0 0.0
        %1834 = vmatpush1.xpose.msra.mxu0 0.0
        %1835 = vmatprep.subr.mxu0 0.0
        %1836 = vmatpush1.xpose.msra.mxu0 0.0
        %1837 = vmatprep.subr.mxu0 0.0
        %1838 = vmatpush1.xpose.msra.mxu0 0.0
        %1839 = vmatprep.mubr.f32.mxu0 0.0
        %1840 = vmatmul.mubr.f32.gmra.mrb[0].mxu0 %v1771
        %v1841 = vpop.f32.mrb[0].mxu0
        %v1842 = vadd.f32 0.0, %v1841
        %v1843 = vpop.f32.mrb[0].mxu0
        %1844 = vdwg.mxu0
        %v1845 = vmul.f32 %v1608, 0.17677669
        %v1846 = vmul.f32 %v1686, 0.17677669
        %v1847 = vmul.f32 %v1764, 0.17677669
        %v1848 = vmul.f32 %v1842, 0.17677669
        %v1849 = vadd.f32 %v1845, %v496
        %v1850 = vadd.f32 %v1846, %v497
        %v1851 = vadd.f32 %v1847, %v498
        %v1852 = vadd.f32 %v1848, %v499
        %v1853 = vsel %vm1190, %v1849, -inf
        %1854 = vmax.xlane.f32.xlu0 %v1853
        %v1855 = vpop.xlane.xlu0 %1854
        %v1856 = vsel %vm1190, %v1850, -inf
        %1857 = vmax.xlane.f32.xlu0 %v1856
        %v1858 = vpop.xlane.xlu0 %1857
        %v1859 = vsel %vm1190, %v1851, -inf
        %1860 = vmax.xlane.f32.xlu0 %v1859
        %v1861 = vpop.xlane.xlu0 %1860
        %v1862 = vsel %vm1190, %v1852, -inf
        %1863 = vmax.xlane.f32.xlu0 %v1862
        %v1864 = vpop.xlane.xlu0 %1863
        %v1865 = vsub.f32 %v1849, %v1855
        %v1866 = vsub.f32 %v1850, %v1858
        %v1867 = vsub.f32 %v1851, %v1861
        %v1868 = vsub.f32 %v1852, %v1864
        %v1869 = vmul.f32 %v1865, 1.442695
        %v1870 = vpow.pop %v1869
        %v1871 = vmul.f32 %v1866, 1.442695
        %v1872 = vpow.pop %v1871
        %v1873 = vmul.f32 %v1867, 1.442695
        %v1874 = vpow.pop %v1873
        %v1875 = vmul.f32 %v1868, 1.442695
        %v1876 = vpow.pop %v1875
        %v1877 = vsel %vm1190, %v1870, 0.0
        %1878 = vadd.xlane.f32.xlu0 %v1877
        %v1879 = vpop.xlane.xlu0 %1878
        %v1880 = vsel %vm1190, %v1872, 0.0
        %1881 = vadd.xlane.f32.xlu0 %v1880
        %v1882 = vpop.xlane.xlu0 %1881
        %v1883 = vsel %vm1190, %v1874, 0.0
        %1884 = vadd.xlane.f32.xlu0 %v1883
        %v1885 = vpop.xlane.xlu0 %1884
        %v1886 = vsel %vm1190, %v1876, 0.0
        %1887 = vadd.xlane.f32.xlu0 %v1886
        %v1888 = vpop.xlane.xlu0 %1887
        %v1889 = vrcp.pop %v1879
        %v1890 = vrcp.pop %v1882
        %v1891 = vrcp.pop %v1885
        %v1892 = vrcp.pop %v1888
        %v1893 = vmul.f32 %v1870, %v1889
        %v1894 = vmul.f32 %v1872, %v1890
        %v1895 = vmul.f32 %v1874, %v1891
        %v1896 = vmul.f32 %v1876, %v1892
        %1898 = vrot.lane.b32.xlu0 %v863, 96
        %v1899 = vpop.permute.xlu0 %1898
        %v1902 = vsel %vm1190, %v1893, 0
        %1904 = vmatprep.subr.mxu0 0.0
        %1905 = vmatpush1.msra.mxu0 %v1899
        %1906 = vmatprep.subr.mxu0 0.0
        %1907 = vmatpush1.msra.mxu0 0.0
        %1908 = vmatprep.subr.mxu0 0.0
        %1909 = vmatpush1.msra.mxu0 0.0
        %1910 = vmatprep.subr.mxu0 0.0
        %1911 = vmatpush1.msra.mxu0 0.0
        %1912 = vmatprep.subr.mxu0 0.0
        %1913 = vmatpush1.msra.mxu0 0.0
        %1914 = vmatprep.subr.mxu0 0.0
        %1915 = vmatpush1.msra.mxu0 0.0
        %1916 = vmatprep.subr.mxu0 0.0
        %1917 = vmatpush1.msra.mxu0 0.0
        %1918 = vmatprep.subr.mxu0 0.0
        %1919 = vmatpush1.msra.mxu0 0.0
        %1920 = vmatprep.subr.mxu0 0.0
        %1921 = vmatpush1.msra.mxu0 0.0
        %1922 = vmatprep.subr.mxu0 0.0
        %1923 = vmatpush1.msra.mxu0 0.0
        %1924 = vmatprep.subr.mxu0 0.0
        %1925 = vmatpush1.msra.mxu0 0.0
        %1926 = vmatprep.subr.mxu0 0.0
        %1927 = vmatpush1.msra.mxu0 0.0
        %1928 = vmatprep.subr.mxu0 0.0
        %1929 = vmatpush1.msra.mxu0 0.0
        %1930 = vmatprep.subr.mxu0 0.0
        %1931 = vmatpush1.msra.mxu0 0.0
        %1932 = vmatprep.subr.mxu0 0.0
        %1933 = vmatpush1.msra.mxu0 0.0
        %1934 = vmatprep.subr.mxu0 0.0
        %1935 = vmatpush1.msra.mxu0 0.0
        %1936 = vmatprep.subr.mxu0 0.0
        %1937 = vmatpush1.msra.mxu0 0.0
        %1938 = vmatprep.subr.mxu0 0.0
        %1939 = vmatpush1.msra.mxu0 0.0
        %1940 = vmatprep.subr.mxu0 0.0
        %1941 = vmatpush1.msra.mxu0 0.0
        %1942 = vmatprep.subr.mxu0 0.0
        %1943 = vmatpush1.msra.mxu0 0.0
        %1944 = vmatprep.subr.mxu0 0.0
        %1945 = vmatpush1.msra.mxu0 0.0
        %1946 = vmatprep.subr.mxu0 0.0
        %1947 = vmatpush1.msra.mxu0 0.0
        %1948 = vmatprep.subr.mxu0 0.0
        %1949 = vmatpush1.msra.mxu0 0.0
        %1950 = vmatprep.subr.mxu0 0.0
        %1951 = vmatpush1.msra.mxu0 0.0
        %1952 = vmatprep.subr.mxu0 0.0
        %1953 = vmatpush1.msra.mxu0 0.0
        %1954 = vmatprep.subr.mxu0 0.0
        %1955 = vmatpush1.msra.mxu0 0.0
        %1956 = vmatprep.subr.mxu0 0.0
        %1957 = vmatpush1.msra.mxu0 0.0
        %1958 = vmatprep.subr.mxu0 0.0
        %1959 = vmatpush1.msra.mxu0 0.0
        %1960 = vmatprep.subr.mxu0 0.0
        %1961 = vmatpush1.msra.mxu0 0.0
        %1962 = vmatprep.subr.mxu0 0.0
        %1963 = vmatpush1.msra.mxu0 0.0
        %1964 = vmatprep.subr.mxu0 0.0
        %1965 = vmatpush1.msra.mxu0 0.0
        %1966 = vmatprep.subr.mxu0 0.0
        %1967 = vmatpush1.msra.mxu0 0.0
        %1968 = vmatprep.mubr.f32.mxu0 0.0
        %1969 = vmatmul.mubr.f32.gmra.mrb[0].mxu0 %v1902
        %v1970 = vpop.f32.mrb[0].mxu0
        %v1971 = vadd.f32 0.0, %v1970
        %v1972 = vpop.f32.mrb[0].mxu0
        %1973 = vdwg.mxu0
        %1975 = vrot.lane.b32.xlu0 %v866, 96
        %v1976 = vpop.permute.xlu0 %1975
        %v1979 = vsel %vm1190, %v1894, 0
        %1981 = vmatprep.subr.mxu0 0.0
        %1982 = vmatpush1.msra.mxu0 %v1976
        %1983 = vmatprep.subr.mxu0 0.0
        %1984 = vmatpush1.msra.mxu0 0.0
        %1985 = vmatprep.subr.mxu0 0.0
        %1986 = vmatpush1.msra.mxu0 0.0
        %1987 = vmatprep.subr.mxu0 0.0
        %1988 = vmatpush1.msra.mxu0 0.0
        %1989 = vmatprep.subr.mxu0 0.0
        %1990 = vmatpush1.msra.mxu0 0.0
        %1991 = vmatprep.subr.mxu0 0.0
        %1992 = vmatpush1.msra.mxu0 0.0
        %1993 = vmatprep.subr.mxu0 0.0
        %1994 = vmatpush1.msra.mxu0 0.0
        %1995 = vmatprep.subr.mxu0 0.0
        %1996 = vmatpush1.msra.mxu0 0.0
        %1997 = vmatprep.subr.mxu0 0.0
        %1998 = vmatpush1.msra.mxu0 0.0
        %1999 = vmatprep.subr.mxu0 0.0
        %2000 = vmatpush1.msra.mxu0 0.0
        %2001 = vmatprep.subr.mxu0 0.0
        %2002 = vmatpush1.msra.mxu0 0.0
        %2003 = vmatprep.subr.mxu0 0.0
        %2004 = vmatpush1.msra.mxu0 0.0
        %2005 = vmatprep.subr.mxu0 0.0
        %2006 = vmatpush1.msra.mxu0 0.0
        %2007 = vmatprep.subr.mxu0 0.0
        %2008 = vmatpush1.msra.mxu0 0.0
        %2009 = vmatprep.subr.mxu0 0.0
        %2010 = vmatpush1.msra.mxu0 0.0
        %2011 = vmatprep.subr.mxu0 0.0
        %2012 = vmatpush1.msra.mxu0 0.0
        %2013 = vmatprep.subr.mxu0 0.0
        %2014 = vmatpush1.msra.mxu0 0.0
        %2015 = vmatprep.subr.mxu0 0.0
        %2016 = vmatpush1.msra.mxu0 0.0
        %2017 = vmatprep.subr.mxu0 0.0
        %2018 = vmatpush1.msra.mxu0 0.0
        %2019 = vmatprep.subr.mxu0 0.0
        %2020 = vmatpush1.msra.mxu0 0.0
        %2021 = vmatprep.subr.mxu0 0.0
        %2022 = vmatpush1.msra.mxu0 0.0
        %2023 = vmatprep.subr.mxu0 0.0
        %2024 = vmatpush1.msra.mxu0 0.0
        %2025 = vmatprep.subr.mxu0 0.0
        %2026 = vmatpush1.msra.mxu0 0.0
        %2027 = vmatprep.subr.mxu0 0.0
        %2028 = vmatpush1.msra.mxu0 0.0
        %2029 = vmatprep.subr.mxu0 0.0
        %2030 = vmatpush1.msra.mxu0 0.0
        %2031 = vmatprep.subr.mxu0 0.0
        %2032 = vmatpush1.msra.mxu0 0.0
        %2033 = vmatprep.subr.mxu0 0.0
        %2034 = vmatpush1.msra.mxu0 0.0
        %2035 = vmatprep.subr.mxu0 0.0
        %2036 = vmatpush1.msra.mxu0 0.0
        %2037 = vmatprep.subr.mxu0 0.0
        %2038 = vmatpush1.msra.mxu0 0.0
        %2039 = vmatprep.subr.mxu0 0.0
        %2040 = vmatpush1.msra.mxu0 0.0
        %2041 = vmatprep.subr.mxu0 0.0
        %2042 = vmatpush1.msra.mxu0 0.0
        %2043 = vmatprep.subr.mxu0 0.0
        %2044 = vmatpush1.msra.mxu0 0.0
        %2045 = vmatprep.mubr.f32.mxu0 0.0
        %2046 = vmatmul.mubr.f32.gmra.mrb[0].mxu0 %v1979
        %v2047 = vpop.f32.mrb[0].mxu0
        %v2048 = vadd.f32 0.0, %v2047
        %v2049 = vpop.f32.mrb[0].mxu0
        %2050 = vdwg.mxu0
        %2052 = vrot.lane.b32.xlu0 %v871, 96
        %v2053 = vpop.permute.xlu0 %2052
        %v2056 = vsel %vm1190, %v1895, 0
        %2058 = vmatprep.subr.mxu0 0.0
        %2059 = vmatpush1.msra.mxu0 %v2053
        %2060 = vmatprep.subr.mxu0 0.0
        %2061 = vmatpush1.msra.mxu0 0.0
        %2062 = vmatprep.subr.mxu0 0.0
        %2063 = vmatpush1.msra.mxu0 0.0
        %2064 = vmatprep.subr.mxu0 0.0
        %2065 = vmatpush1.msra.mxu0 0.0
        %2066 = vmatprep.subr.mxu0 0.0
        %2067 = vmatpush1.msra.mxu0 0.0
        %2068 = vmatprep.subr.mxu0 0.0
        %2069 = vmatpush1.msra.mxu0 0.0
        %2070 = vmatprep.subr.mxu0 0.0
        %2071 = vmatpush1.msra.mxu0 0.0
        %2072 = vmatprep.subr.mxu0 0.0
        %2073 = vmatpush1.msra.mxu0 0.0
        %2074 = vmatprep.subr.mxu0 0.0
        %2075 = vmatpush1.msra.mxu0 0.0
        %2076 = vmatprep.subr.mxu0 0.0
        %2077 = vmatpush1.msra.mxu0 0.0
        %2078 = vmatprep.subr.mxu0 0.0
        %2079 = vmatpush1.msra.mxu0 0.0
        %2080 = vmatprep.subr.mxu0 0.0
        %2081 = vmatpush1.msra.mxu0 0.0
        %2082 = vmatprep.subr.mxu0 0.0
        %2083 = vmatpush1.msra.mxu0 0.0
        %2084 = vmatprep.subr.mxu0 0.0
        %2085 = vmatpush1.msra.mxu0 0.0
        %2086 = vmatprep.subr.mxu0 0.0
        %2087 = vmatpush1.msra.mxu0 0.0
        %2088 = vmatprep.subr.mxu0 0.0
        %2089 = vmatpush1.msra.mxu0 0.0
        %2090 = vmatprep.subr.mxu0 0.0
        %2091 = vmatpush1.msra.mxu0 0.0
        %2092 = vmatprep.subr.mxu0 0.0
        %2093 = vmatpush1.msra.mxu0 0.0
        %2094 = vmatprep.subr.mxu0 0.0
        %2095 = vmatpush1.msra.mxu0 0.0
        %2096 = vmatprep.subr.mxu0 0.0
        %2097 = vmatpush1.msra.mxu0 0.0
        %2098 = vmatprep.subr.mxu0 0.0
        %2099 = vmatpush1.msra.mxu0 0.0
        %2100 = vmatprep.subr.mxu0 0.0
        %2101 = vmatpush1.msra.mxu0 0.0
        %2102 = vmatprep.subr.mxu0 0.0
        %2103 = vmatpush1.msra.mxu0 0.0
        %2104 = vmatprep.subr.mxu0 0.0
        %2105 = vmatpush1.msra.mxu0 0.0
        %2106 = vmatprep.subr.mxu0 0.0
        %2107 = vmatpush1.msra.mxu0 0.0
        %2108 = vmatprep.subr.mxu0 0.0
        %2109 = vmatpush1.msra.mxu0 0.0
        %2110 = vmatprep.subr.mxu0 0.0
        %2111 = vmatpush1.msra.mxu0 0.0
        %2112 = vmatprep.subr.mxu0 0.0
        %2113 = vmatpush1.msra.mxu0 0.0
        %2114 = vmatprep.subr.mxu0 0.0
        %2115 = vmatpush1.msra.mxu0 0.0
        %2116 = vmatprep.subr.mxu0 0.0
        %2117 = vmatpush1.msra.mxu0 0.0
        %2118 = vmatprep.subr.mxu0 0.0
        %2119 = vmatpush1.msra.mxu0 0.0
        %2120 = vmatprep.subr.mxu0 0.0
        %2121 = vmatpush1.msra.mxu0 0.0
        %2122 = vmatprep.mubr.f32.mxu0 0.0
        %2123 = vmatmul.mubr.f32.gmra.mrb[0].mxu0 %v2056
        %v2124 = vpop.f32.mrb[0].mxu0
        %v2125 = vadd.f32 0.0, %v2124
        %v2126 = vpop.f32.mrb[0].mxu0
        %2127 = vdwg.mxu0
        %2129 = vrot.lane.b32.xlu0 %v874, 96
        %v2130 = vpop.permute.xlu0 %2129
        %v2133 = vsel %vm1190, %v1896, 0
        %2135 = vmatprep.subr.mxu0 0.0
        %2136 = vmatpush1.msra.mxu0 %v2130
        %2137 = vmatprep.subr.mxu0 0.0
        %2138 = vmatpush1.msra.mxu0 0.0
        %2139 = vmatprep.subr.mxu0 0.0
        %2140 = vmatpush1.msra.mxu0 0.0
        %2141 = vmatprep.subr.mxu0 0.0
        %2142 = vmatpush1.msra.mxu0 0.0
        %2143 = vmatprep.subr.mxu0 0.0
        %2144 = vmatpush1.msra.mxu0 0.0
        %2145 = vmatprep.subr.mxu0 0.0
        %2146 = vmatpush1.msra.mxu0 0.0
        %2147 = vmatprep.subr.mxu0 0.0
        %2148 = vmatpush1.msra.mxu0 0.0
        %2149 = vmatprep.subr.mxu0 0.0
        %2150 = vmatpush1.msra.mxu0 0.0
        %2151 = vmatprep.subr.mxu0 0.0
        %2152 = vmatpush1.msra.mxu0 0.0
        %2153 = vmatprep.subr.mxu0 0.0
        %2154 = vmatpush1.msra.mxu0 0.0
        %2155 = vmatprep.subr.mxu0 0.0
        %2156 = vmatpush1.msra.mxu0 0.0
        %2157 = vmatprep.subr.mxu0 0.0
        %2158 = vmatpush1.msra.mxu0 0.0
        %2159 = vmatprep.subr.mxu0 0.0
        %2160 = vmatpush1.msra.mxu0 0.0
        %2161 = vmatprep.subr.mxu0 0.0
        %2162 = vmatpush1.msra.mxu0 0.0
        %2163 = vmatprep.subr.mxu0 0.0
        %2164 = vmatpush1.msra.mxu0 0.0
        %2165 = vmatprep.subr.mxu0 0.0
        %2166 = vmatpush1.msra.mxu0 0.0
        %2167 = vmatprep.subr.mxu0 0.0
        %2168 = vmatpush1.msra.mxu0 0.0
        %2169 = vmatprep.subr.mxu0 0.0
        %2170 = vmatpush1.msra.mxu0 0.0
        %2171 = vmatprep.subr.mxu0 0.0
        %2172 = vmatpush1.msra.mxu0 0.0
        %2173 = vmatprep.subr.mxu0 0.0
        %2174 = vmatpush1.msra.mxu0 0.0
        %2175 = vmatprep.subr.mxu0 0.0
        %2176 = vmatpush1.msra.mxu0 0.0
        %2177 = vmatprep.subr.mxu0 0.0
        %2178 = vmatpush1.msra.mxu0 0.0
        %2179 = vmatprep.subr.mxu0 0.0
        %2180 = vmatpush1.msra.mxu0 0.0
        %2181 = vmatprep.subr.mxu0 0.0
        %2182 = vmatpush1.msra.mxu0 0.0
        %2183 = vmatprep.subr.mxu0 0.0
        %2184 = vmatpush1.msra.mxu0 0.0
        %2185 = vmatprep.subr.mxu0 0.0
        %2186 = vmatpush1.msra.mxu0 0.0
        %2187 = vmatprep.subr.mxu0 0.0
        %2188 = vmatpush1.msra.mxu0 0.0
        %2189 = vmatprep.subr.mxu0 0.0
        %2190 = vmatpush1.msra.mxu0 0.0
        %2191 = vmatprep.subr.mxu0 0.0
        %2192 = vmatpush1.msra.mxu0 0.0
        %2193 = vmatprep.subr.mxu0 0.0
        %2194 = vmatpush1.msra.mxu0 0.0
        %2195 = vmatprep.subr.mxu0 0.0
        %2196 = vmatpush1.msra.mxu0 0.0
        %2197 = vmatprep.subr.mxu0 0.0
        %2198 = vmatpush1.msra.mxu0 0.0
        %2199 = vmatprep.mubr.f32.mxu0 0.0
        %2200 = vmatmul.mubr.f32.gmra.mrb[0].mxu0 %v2133
        %v2201 = vpop.f32.mrb[0].mxu0
        %v2202 = vadd.f32 0.0, %v2201
        %v2203 = vpop.f32.mrb[0].mxu0
        %2204 = vdwg.mxu0
        %v2205 = vpack.c.bf16 %v2048, %v1971
        %v2206 = vpack.c.bf16 %v2202, %v2125
        %v2207 = vld [vmem:[%s6 + $0x10] sm:$0xf]
        %v2208 = vld [vmem:[%s6 + $0x14] sm:$0xf]
        %v2209 = vld [vmem:[%s6 + $0x18] sm:$0xf]
        %v2210 = vld [vmem:[%s6 + $0x1c] sm:$0xf]
        %v2215 = vunpack.c.l.b16 %v2207
        %v2216 = vunpack.c.l.b16 %v2208
        %v2217 = vunpack.c.l.b16 %v2209
        %v2218 = vunpack.c.l.b16 %v2210
        %v2219 = vpack.c.b16 %v2216, %v2215
        %v2220 = vpack.c.b16 %v2218, %v2217
        %v2224 = vsel %vm877, %v2205, 0
        %v2227 = vsel %vm877, %v2206, 0
        %2229 = vmatprep.subr.bf16.mxu0 0
        %2230 = vmatpush1.bf16.msra.mxu0 %v2219
        %2231 = vmatprep.subr.bf16.mxu0 0
        %2232 = vmatpush1.bf16.msra.mxu0 %v2220
        %2233 = vmatprep.subr.bf16.mxu0 0
        %2234 = vmatpush1.bf16.msra.mxu0 0
        %2235 = vmatprep.subr.bf16.mxu0 0
        %2236 = vmatpush1.bf16.msra.mxu0 0
        %2237 = vmatprep.subr.bf16.mxu0 0
        %2238 = vmatpush1.bf16.msra.mxu0 0
        %2239 = vmatprep.subr.bf16.mxu0 0
        %2240 = vmatpush1.bf16.msra.mxu0 0
        %2241 = vmatprep.subr.bf16.mxu0 0
        %2242 = vmatpush1.bf16.msra.mxu0 0
        %2243 = vmatprep.subr.bf16.mxu0 0
        %2244 = vmatpush1.bf16.msra.mxu0 0
        %2245 = vmatprep.subr.bf16.mxu0 0
        %2246 = vmatpush1.bf16.msra.mxu0 0
        %2247 = vmatprep.subr.bf16.mxu0 0
        %2248 = vmatpush1.bf16.msra.mxu0 0
        %2249 = vmatprep.subr.bf16.mxu0 0
        %2250 = vmatpush1.bf16.msra.mxu0 0
        %2251 = vmatprep.subr.bf16.mxu0 0
        %2252 = vmatpush1.bf16.msra.mxu0 0
        %2253 = vmatprep.subr.bf16.mxu0 0
        %2254 = vmatpush1.bf16.msra.mxu0 0
        %2255 = vmatprep.subr.bf16.mxu0 0
        %2256 = vmatpush1.bf16.msra.mxu0 0
        %2257 = vmatprep.subr.bf16.mxu0 0
        %2258 = vmatpush1.bf16.msra.mxu0 0
        %2259 = vmatprep.subr.bf16.mxu0 0
        %2260 = vmatpush1.bf16.msra.mxu0 0
        %2261 = vmatprep.mubr.bf16.mxu0 0
        %2262 = vmatmul.mubr.bf16.gmra.mrb[0].mxu0 %v2224
        %v2263 = vpop.f32.mrb[0].mxu0
        %v2264 = vadd.f32 0.0, %v2263
        %v2265 = vpop.f32.mrb[0].mxu0
        %v2266 = vpop.f32.mrb[0].mxu0
        %v2267 = vadd.f32 0.0, %v2266
        %v2268 = vpop.f32.mrb[0].mxu0
        %2269 = vmatprep.mubr.bf16.mxu0 0
        %2270 = vmatmul.mubr.bf16.gmra.mrb[0].mxu0 %v2227
        %v2271 = vpop.f32.mrb[0].mxu0
        %v2272 = vadd.f32 0.0, %v2271
        %v2273 = vpop.f32.mrb[0].mxu0
        %v2274 = vpop.f32.mrb[0].mxu0
        %v2275 = vadd.f32 0.0, %v2274
        %v2276 = vpop.f32.mrb[0].mxu0
        %2277 = vdwg.mxu0
        %v2282 = vunpack.c.l.b16 %v1529
        %v2283 = vunpack.c.l.b16 %v1530
        %v2284 = vunpack.c.l.b16 %v1531
        %v2285 = vunpack.c.l.b16 %v1532
        %v2286 = vpack.c.b16 %v2283, %v2282
        %v2287 = vpack.c.b16 %v2285, %v2284
        %v2291 = vsel %vm877, %v1527, 0
        %v2294 = vsel %vm877, %v1528, 0
        %2296 = vmatprep.subr.bf16.mxu0 0
        %2297 = vmatpush1.bf16.msra.mxu0 %v2286
        %2298 = vmatprep.subr.bf16.mxu0 0
        %2299 = vmatpush1.bf16.msra.mxu0 %v2287
        %2300 = vmatprep.subr.bf16.mxu0 0
        %2301 = vmatpush1.bf16.msra.mxu0 0
        %2302 = vmatprep.subr.bf16.mxu0 0
        %2303 = vmatpush1.bf16.msra.mxu0 0
        %2304 = vmatprep.subr.bf16.mxu0 0
        %2305 = vmatpush1.bf16.msra.mxu0 0
        %2306 = vmatprep.subr.bf16.mxu0 0
        %2307 = vmatpush1.bf16.msra.mxu0 0
        %2308 = vmatprep.subr.bf16.mxu0 0
        %2309 = vmatpush1.bf16.msra.mxu0 0
        %2310 = vmatprep.subr.bf16.mxu0 0
        %2311 = vmatpush1.bf16.msra.mxu0 0
        %2312 = vmatprep.subr.bf16.mxu0 0
        %2313 = vmatpush1.bf16.msra.mxu0 0
        %2314 = vmatprep.subr.bf16.mxu0 0
        %2315 = vmatpush1.bf16.msra.mxu0 0
        %2316 = vmatprep.subr.bf16.mxu0 0
        %2317 = vmatpush1.bf16.msra.mxu0 0
        %2318 = vmatprep.subr.bf16.mxu0 0
        %2319 = vmatpush1.bf16.msra.mxu0 0
        %2320 = vmatprep.subr.bf16.mxu0 0
        %2321 = vmatpush1.bf16.msra.mxu0 0
        %2322 = vmatprep.subr.bf16.mxu0 0
        %2323 = vmatpush1.bf16.msra.mxu0 0
        %2324 = vmatprep.subr.bf16.mxu0 0
        %2325 = vmatpush1.bf16.msra.mxu0 0
        %2326 = vmatprep.subr.bf16.mxu0 0
        %2327 = vmatpush1.bf16.msra.mxu0 0
        %2328 = vmatprep.mubr.bf16.mxu0 0
        %2329 = vmatmul.mubr.bf16.gmra.mrb[0].mxu0 %v2291
        %v2330 = vpop.f32.mrb[0].mxu0
        %v2331 = vadd.f32 %v2264, %v2330
        %v2332 = vpop.f32.mrb[0].mxu0
        %v2333 = vpop.f32.mrb[0].mxu0
        %v2334 = vadd.f32 %v2267, %v2333
        %v2335 = vpop.f32.mrb[0].mxu0
        %2336 = vmatprep.mubr.bf16.mxu0 0
        %2337 = vmatmul.mubr.bf16.gmra.mrb[0].mxu0 %v2294
        %v2338 = vpop.f32.mrb[0].mxu0
        %v2339 = vadd.f32 %v2272, %v2338
        %v2340 = vpop.f32.mrb[0].mxu0
        %v2341 = vpop.f32.mrb[0].mxu0
        %v2342 = vadd.f32 %v2275, %v2341
        %v2343 = vpop.f32.mrb[0].mxu0
        %2344 = vdwg.mxu0
        %2345 = vrot.lane.b32.xlu0 %v810, 64
        %v2346 = vpop.permute.xlu0 %2345
        %2347 = vrot.lane.b32.xlu0 %v812, 64
        %v2348 = vpop.permute.xlu0 %2347
        %v2349 = vsel %vm877, %v2346, 0
        %v2351 = vsel %vm877, %v2348, 0
        %2353 = vmatprep.subr.mxu0 0.0
        %2354 = vmatpush1.xpose.msra.mxu0 %v2351
        %2355 = vmatprep.subr.mxu0 0.0
        %2356 = vmatpush1.xpose.msra.mxu0 0.0
        %2357 = vmatprep.subr.mxu0 0.0
        %2358 = vmatpush1.xpose.msra.mxu0 0.0
        %2359 = vmatprep.subr.mxu0 0.0
        %2360 = vmatpush1.xpose.msra.mxu0 0.0
        %2361 = vmatprep.subr.mxu0 0.0
        %2362 = vmatpush1.xpose.msra.mxu0 0.0
        %2363 = vmatprep.subr.mxu0 0.0
        %2364 = vmatpush1.xpose.msra.mxu0 0.0
        %2365 = vmatprep.subr.mxu0 0.0
        %2366 = vmatpush1.xpose.msra.mxu0 0.0
        %2367 = vmatprep.subr.mxu0 0.0
        %2368 = vmatpush1.xpose.msra.mxu0 0.0
        %2369 = vmatprep.subr.mxu0 0.0
        %2370 = vmatpush1.xpose.msra.mxu0 0.0
        %2371 = vmatprep.subr.mxu0 0.0
        %2372 = vmatpush1.xpose.msra.mxu0 0.0
        %2373 = vmatprep.subr.mxu0 0.0
        %2374 = vmatpush1.xpose.msra.mxu0 0.0
        %2375 = vmatprep.subr.mxu0 0.0
        %2376 = vmatpush1.xpose.msra.mxu0 0.0
        %2377 = vmatprep.subr.mxu0 0.0
        %2378 = vmatpush1.xpose.msra.mxu0 0.0
        %2379 = vmatprep.subr.mxu0 0.0
        %2380 = vmatpush1.xpose.msra.mxu0 0.0
        %2381 = vmatprep.subr.mxu0 0.0
        %2382 = vmatpush1.xpose.msra.mxu0 0.0
        %2383 = vmatprep.subr.mxu0 0.0
        %2384 = vmatpush1.xpose.msra.mxu0 0.0
        %2385 = vmatprep.subr.mxu0 0.0
        %2386 = vmatpush1.xpose.msra.mxu0 0.0
        %2387 = vmatprep.subr.mxu0 0.0
        %2388 = vmatpush1.xpose.msra.mxu0 0.0
        %2389 = vmatprep.subr.mxu0 0.0
        %2390 = vmatpush1.xpose.msra.mxu0 0.0
        %2391 = vmatprep.subr.mxu0 0.0
        %2392 = vmatpush1.xpose.msra.mxu0 0.0
        %2393 = vmatprep.subr.mxu0 0.0
        %2394 = vmatpush1.xpose.msra.mxu0 0.0
        %2395 = vmatprep.subr.mxu0 0.0
        %2396 = vmatpush1.xpose.msra.mxu0 0.0
        %2397 = vmatprep.subr.mxu0 0.0
        %2398 = vmatpush1.xpose.msra.mxu0 0.0
        %2399 = vmatprep.subr.mxu0 0.0
        %2400 = vmatpush1.xpose.msra.mxu0 0.0
        %2401 = vmatprep.subr.mxu0 0.0
        %2402 = vmatpush1.xpose.msra.mxu0 0.0
        %2403 = vmatprep.subr.mxu0 0.0
        %2404 = vmatpush1.xpose.msra.mxu0 0.0
        %2405 = vmatprep.subr.mxu0 0.0
        %2406 = vmatpush1.xpose.msra.mxu0 0.0
        %2407 = vmatprep.subr.mxu0 0.0
        %2408 = vmatpush1.xpose.msra.mxu0 0.0
        %2409 = vmatprep.subr.mxu0 0.0
        %2410 = vmatpush1.xpose.msra.mxu0 0.0
        %2411 = vmatprep.subr.mxu0 0.0
        %2412 = vmatpush1.xpose.msra.mxu0 0.0
        %2413 = vmatprep.subr.mxu0 0.0
        %2414 = vmatpush1.xpose.msra.mxu0 0.0
        %2415 = vmatprep.subr.mxu0 0.0
        %2416 = vmatpush1.xpose.msra.mxu0 0.0
        %2417 = vmatprep.mubr.f32.mxu0 0.0
        %2418 = vmatmul.mubr.f32.gmra.mrb[0].mxu0 %v2349
        %v2419 = vpop.f32.mrb[0].mxu0
        %v2420 = vadd.f32 0.0, %v2419
        %v2421 = vpop.f32.mrb[0].mxu0
        %2422 = vdwg.mxu0
        %2423 = vrot.lane.b32.xlu0 %v814, 64
        %v2424 = vpop.permute.xlu0 %2423
        %2425 = vrot.lane.b32.xlu0 %v816, 64
        %v2426 = vpop.permute.xlu0 %2425
        %v2427 = vsel %vm877, %v2424, 0
        %v2429 = vsel %vm877, %v2426, 0
        %2431 = vmatprep.subr.mxu0 0.0
        %2432 = vmatpush1.xpose.msra.mxu0 %v2429
        %2433 = vmatprep.subr.mxu0 0.0
        %2434 = vmatpush1.xpose.msra.mxu0 0.0
        %2435 = vmatprep.subr.mxu0 0.0
        %2436 = vmatpush1.xpose.msra.mxu0 0.0
        %2437 = vmatprep.subr.mxu0 0.0
        %2438 = vmatpush1.xpose.msra.mxu0 0.0
        %2439 = vmatprep.subr.mxu0 0.0
        %2440 = vmatpush1.xpose.msra.mxu0 0.0
        %2441 = vmatprep.subr.mxu0 0.0
        %2442 = vmatpush1.xpose.msra.mxu0 0.0
        %2443 = vmatprep.subr.mxu0 0.0
        %2444 = vmatpush1.xpose.msra.mxu0 0.0
        %2445 = vmatprep.subr.mxu0 0.0
        %2446 = vmatpush1.xpose.msra.mxu0 0.0
        %2447 = vmatprep.subr.mxu0 0.0
        %2448 = vmatpush1.xpose.msra.mxu0 0.0
        %2449 = vmatprep.subr.mxu0 0.0
        %2450 = vmatpush1.xpose.msra.mxu0 0.0
        %2451 = vmatprep.subr.mxu0 0.0
        %2452 = vmatpush1.xpose.msra.mxu0 0.0
        %2453 = vmatprep.subr.mxu0 0.0
        %2454 = vmatpush1.xpose.msra.mxu0 0.0
        %2455 = vmatprep.subr.mxu0 0.0
        %2456 = vmatpush1.xpose.msra.mxu0 0.0
        %2457 = vmatprep.subr.mxu0 0.0
        %2458 = vmatpush1.xpose.msra.mxu0 0.0
        %2459 = vmatprep.subr.mxu0 0.0
        %2460 = vmatpush1.xpose.msra.mxu0 0.0
        %2461 = vmatprep.subr.mxu0 0.0
        %2462 = vmatpush1.xpose.msra.mxu0 0.0
        %2463 = vmatprep.subr.mxu0 0.0
        %2464 = vmatpush1.xpose.msra.mxu0 0.0
        %2465 = vmatprep.subr.mxu0 0.0
        %2466 = vmatpush1.xpose.msra.mxu0 0.0
        %2467 = vmatprep.subr.mxu0 0.0
        %2468 = vmatpush1.xpose.msra.mxu0 0.0
        %2469 = vmatprep.subr.mxu0 0.0
        %2470 = vmatpush1.xpose.msra.mxu0 0.0
        %2471 = vmatprep.subr.mxu0 0.0
        %2472 = vmatpush1.xpose.msra.mxu0 0.0
        %2473 = vmatprep.subr.mxu0 0.0
        %2474 = vmatpush1.xpose.msra.mxu0 0.0
        %2475 = vmatprep.subr.mxu0 0.0
        %2476 = vmatpush1.xpose.msra.mxu0 0.0
        %2477 = vmatprep.subr.mxu0 0.0
        %2478 = vmatpush1.xpose.msra.mxu0 0.0
        %2479 = vmatprep.subr.mxu0 0.0
        %2480 = vmatpush1.xpose.msra.mxu0 0.0
        %2481 = vmatprep.subr.mxu0 0.0
        %2482 = vmatpush1.xpose.msra.mxu0 0.0
        %2483 = vmatprep.subr.mxu0 0.0
        %2484 = vmatpush1.xpose.msra.mxu0 0.0
        %2485 = vmatprep.subr.mxu0 0.0
        %2486 = vmatpush1.xpose.msra.mxu0 0.0
        %2487 = vmatprep.subr.mxu0 0.0
        %2488 = vmatpush1.xpose.msra.mxu0 0.0
        %2489 = vmatprep.subr.mxu0 0.0
        %2490 = vmatpush1.xpose.msra.mxu0 0.0
        %2491 = vmatprep.subr.mxu0 0.0
        %2492 = vmatpush1.xpose.msra.mxu0 0.0
        %2493 = vmatprep.subr.mxu0 0.0
        %2494 = vmatpush1.xpose.msra.mxu0 0.0
        %2495 = vmatprep.mubr.f32.mxu0 0.0
        %2496 = vmatmul.mubr.f32.gmra.mrb[0].mxu0 %v2427
        %v2497 = vpop.f32.mrb[0].mxu0
        %v2498 = vadd.f32 0.0, %v2497
        %v2499 = vpop.f32.mrb[0].mxu0
        %2500 = vdwg.mxu0
        %2501 = vrot.lane.b32.xlu0 %v820, 64
        %v2502 = vpop.permute.xlu0 %2501
        %2503 = vrot.lane.b32.xlu0 %v822, 64
        %v2504 = vpop.permute.xlu0 %2503
        %v2505 = vsel %vm877, %v2502, 0
        %v2507 = vsel %vm877, %v2504, 0
        %2509 = vmatprep.subr.mxu0 0.0
        %2510 = vmatpush1.xpose.msra.mxu0 %v2507
        %2511 = vmatprep.subr.mxu0 0.0
        %2512 = vmatpush1.xpose.msra.mxu0 0.0
        %2513 = vmatprep.subr.mxu0 0.0
        %2514 = vmatpush1.xpose.msra.mxu0 0.0
        %2515 = vmatprep.subr.mxu0 0.0
        %2516 = vmatpush1.xpose.msra.mxu0 0.0
        %2517 = vmatprep.subr.mxu0 0.0
        %2518 = vmatpush1.xpose.msra.mxu0 0.0
        %2519 = vmatprep.subr.mxu0 0.0
        %2520 = vmatpush1.xpose.msra.mxu0 0.0
        %2521 = vmatprep.subr.mxu0 0.0
        %2522 = vmatpush1.xpose.msra.mxu0 0.0
        %2523 = vmatprep.subr.mxu0 0.0
        %2524 = vmatpush1.xpose.msra.mxu0 0.0
        %2525 = vmatprep.subr.mxu0 0.0
        %2526 = vmatpush1.xpose.msra.mxu0 0.0
        %2527 = vmatprep.subr.mxu0 0.0
        %2528 = vmatpush1.xpose.msra.mxu0 0.0
        %2529 = vmatprep.subr.mxu0 0.0
        %2530 = vmatpush1.xpose.msra.mxu0 0.0
        %2531 = vmatprep.subr.mxu0 0.0
        %2532 = vmatpush1.xpose.msra.mxu0 0.0
        %2533 = vmatprep.subr.mxu0 0.0
        %2534 = vmatpush1.xpose.msra.mxu0 0.0
        %2535 = vmatprep.subr.mxu0 0.0
        %2536 = vmatpush1.xpose.msra.mxu0 0.0
        %2537 = vmatprep.subr.mxu0 0.0
        %2538 = vmatpush1.xpose.msra.mxu0 0.0
        %2539 = vmatprep.subr.mxu0 0.0
        %2540 = vmatpush1.xpose.msra.mxu0 0.0
        %2541 = vmatprep.subr.mxu0 0.0
        %2542 = vmatpush1.xpose.msra.mxu0 0.0
        %2543 = vmatprep.subr.mxu0 0.0
        %2544 = vmatpush1.xpose.msra.mxu0 0.0
        %2545 = vmatprep.subr.mxu0 0.0
        %2546 = vmatpush1.xpose.msra.mxu0 0.0
        %2547 = vmatprep.subr.mxu0 0.0
        %2548 = vmatpush1.xpose.msra.mxu0 0.0
        %2549 = vmatprep.subr.mxu0 0.0
        %2550 = vmatpush1.xpose.msra.mxu0 0.0
        %2551 = vmatprep.subr.mxu0 0.0
        %2552 = vmatpush1.xpose.msra.mxu0 0.0
        %2553 = vmatprep.subr.mxu0 0.0
        %2554 = vmatpush1.xpose.msra.mxu0 0.0
        %2555 = vmatprep.subr.mxu0 0.0
        %2556 = vmatpush1.xpose.msra.mxu0 0.0
        %2557 = vmatprep.subr.mxu0 0.0
        %2558 = vmatpush1.xpose.msra.mxu0 0.0
        %2559 = vmatprep.subr.mxu0 0.0
        %2560 = vmatpush1.xpose.msra.mxu0 0.0
        %2561 = vmatprep.subr.mxu0 0.0
        %2562 = vmatpush1.xpose.msra.mxu0 0.0
        %2563 = vmatprep.subr.mxu0 0.0
        %2564 = vmatpush1.xpose.msra.mxu0 0.0
        %2565 = vmatprep.subr.mxu0 0.0
        %2566 = vmatpush1.xpose.msra.mxu0 0.0
        %2567 = vmatprep.subr.mxu0 0.0
        %2568 = vmatpush1.xpose.msra.mxu0 0.0
        %2569 = vmatprep.subr.mxu0 0.0
        %2570 = vmatpush1.xpose.msra.mxu0 0.0
        %2571 = vmatprep.subr.mxu0 0.0
        %2572 = vmatpush1.xpose.msra.mxu0 0.0
        %2573 = vmatprep.mubr.f32.mxu0 0.0
        %2574 = vmatmul.mubr.f32.gmra.mrb[0].mxu0 %v2505
        %v2575 = vpop.f32.mrb[0].mxu0
        %v2576 = vadd.f32 0.0, %v2575
        %v2577 = vpop.f32.mrb[0].mxu0
        %2578 = vdwg.mxu0
        %2579 = vrot.lane.b32.xlu0 %v824, 64
        %v2580 = vpop.permute.xlu0 %2579
        %2581 = vrot.lane.b32.xlu0 %v826, 64
        %v2582 = vpop.permute.xlu0 %2581
        %v2583 = vsel %vm877, %v2580, 0
        %v2585 = vsel %vm877, %v2582, 0
        %2587 = vmatprep.subr.mxu0 0.0
        %2588 = vmatpush1.xpose.msra.mxu0 %v2585
        %2589 = vmatprep.subr.mxu0 0.0
        %2590 = vmatpush1.xpose.msra.mxu0 0.0
        %2591 = vmatprep.subr.mxu0 0.0
        %2592 = vmatpush1.xpose.msra.mxu0 0.0
        %2593 = vmatprep.subr.mxu0 0.0
        %2594 = vmatpush1.xpose.msra.mxu0 0.0
        %2595 = vmatprep.subr.mxu0 0.0
        %2596 = vmatpush1.xpose.msra.mxu0 0.0
        %2597 = vmatprep.subr.mxu0 0.0
        %2598 = vmatpush1.xpose.msra.mxu0 0.0
        %2599 = vmatprep.subr.mxu0 0.0
        %2600 = vmatpush1.xpose.msra.mxu0 0.0
        %2601 = vmatprep.subr.mxu0 0.0
        %2602 = vmatpush1.xpose.msra.mxu0 0.0
        %2603 = vmatprep.subr.mxu0 0.0
        %2604 = vmatpush1.xpose.msra.mxu0 0.0
        %2605 = vmatprep.subr.mxu0 0.0
        %2606 = vmatpush1.xpose.msra.mxu0 0.0
        %2607 = vmatprep.subr.mxu0 0.0
        %2608 = vmatpush1.xpose.msra.mxu0 0.0
        %2609 = vmatprep.subr.mxu0 0.0
        %2610 = vmatpush1.xpose.msra.mxu0 0.0
        %2611 = vmatprep.subr.mxu0 0.0
        %2612 = vmatpush1.xpose.msra.mxu0 0.0
        %2613 = vmatprep.subr.mxu0 0.0
        %2614 = vmatpush1.xpose.msra.mxu0 0.0
        %2615 = vmatprep.subr.mxu0 0.0
        %2616 = vmatpush1.xpose.msra.mxu0 0.0
        %2617 = vmatprep.subr.mxu0 0.0
        %2618 = vmatpush1.xpose.msra.mxu0 0.0
        %2619 = vmatprep.subr.mxu0 0.0
        %2620 = vmatpush1.xpose.msra.mxu0 0.0
        %2621 = vmatprep.subr.mxu0 0.0
        %2622 = vmatpush1.xpose.msra.mxu0 0.0
        %2623 = vmatprep.subr.mxu0 0.0
        %2624 = vmatpush1.xpose.msra.mxu0 0.0
        %2625 = vmatprep.subr.mxu0 0.0
        %2626 = vmatpush1.xpose.msra.mxu0 0.0
        %2627 = vmatprep.subr.mxu0 0.0
        %2628 = vmatpush1.xpose.msra.mxu0 0.0
        %2629 = vmatprep.subr.mxu0 0.0
        %2630 = vmatpush1.xpose.msra.mxu0 0.0
        %2631 = vmatprep.subr.mxu0 0.0
        %2632 = vmatpush1.xpose.msra.mxu0 0.0
        %2633 = vmatprep.subr.mxu0 0.0
        %2634 = vmatpush1.xpose.msra.mxu0 0.0
        %2635 = vmatprep.subr.mxu0 0.0
        %2636 = vmatpush1.xpose.msra.mxu0 0.0
        %2637 = vmatprep.subr.mxu0 0.0
        %2638 = vmatpush1.xpose.msra.mxu0 0.0
        %2639 = vmatprep.subr.mxu0 0.0
        %2640 = vmatpush1.xpose.msra.mxu0 0.0
        %2641 = vmatprep.subr.mxu0 0.0
        %2642 = vmatpush1.xpose.msra.mxu0 0.0
        %2643 = vmatprep.subr.mxu0 0.0
        %2644 = vmatpush1.xpose.msra.mxu0 0.0
        %2645 = vmatprep.subr.mxu0 0.0
        %2646 = vmatpush1.xpose.msra.mxu0 0.0
        %2647 = vmatprep.subr.mxu0 0.0
        %2648 = vmatpush1.xpose.msra.mxu0 0.0
        %2649 = vmatprep.subr.mxu0 0.0
        %2650 = vmatpush1.xpose.msra.mxu0 0.0
        %2651 = vmatprep.mubr.f32.mxu0 0.0
        %2652 = vmatmul.mubr.f32.gmra.mrb[0].mxu0 %v2583
        %v2653 = vpop.f32.mrb[0].mxu0
        %v2654 = vadd.f32 0.0, %v2653
        %v2655 = vpop.f32.mrb[0].mxu0
        %2656 = vdwg.mxu0
        %v2657 = vmul.f32 %v2420, 0.17677669
        %v2658 = vmul.f32 %v2498, 0.17677669
        %v2659 = vmul.f32 %v2576, 0.17677669
        %v2660 = vmul.f32 %v2654, 0.17677669
        %v2661 = vadd.f32 %v2657, %v496
        %v2662 = vadd.f32 %v2658, %v497
        %v2663 = vadd.f32 %v2659, %v498
        %v2664 = vadd.f32 %v2660, %v499
        %v2665 = vsel %vm1190, %v2661, -inf
        %2666 = vmax.xlane.f32.xlu0 %v2665
        %v2667 = vpop.xlane.xlu0 %2666
        %v2668 = vsel %vm1190, %v2662, -inf
        %2669 = vmax.xlane.f32.xlu0 %v2668
        %v2670 = vpop.xlane.xlu0 %2669
        %v2671 = vsel %vm1190, %v2663, -inf
        %2672 = vmax.xlane.f32.xlu0 %v2671
        %v2673 = vpop.xlane.xlu0 %2672
        %v2674 = vsel %vm1190, %v2664, -inf
        %2675 = vmax.xlane.f32.xlu0 %v2674
        %v2676 = vpop.xlane.xlu0 %2675
        %v2677 = vsub.f32 %v2661, %v2667
        %v2678 = vsub.f32 %v2662, %v2670
        %v2679 = vsub.f32 %v2663, %v2673
        %v2680 = vsub.f32 %v2664, %v2676
        %v2681 = vmul.f32 %v2677, 1.442695
        %v2682 = vpow.pop %v2681
        %v2683 = vmul.f32 %v2678, 1.442695
        %v2684 = vpow.pop %v2683
        %v2685 = vmul.f32 %v2679, 1.442695
        %v2686 = vpow.pop %v2685
        %v2687 = vmul.f32 %v2680, 1.442695
        %v2688 = vpow.pop %v2687
        %v2689 = vsel %vm1190, %v2682, 0.0
        %2690 = vadd.xlane.f32.xlu0 %v2689
        %v2691 = vpop.xlane.xlu0 %2690
        %v2692 = vsel %vm1190, %v2684, 0.0
        %2693 = vadd.xlane.f32.xlu0 %v2692
        %v2694 = vpop.xlane.xlu0 %2693
        %v2695 = vsel %vm1190, %v2686, 0.0
        %2696 = vadd.xlane.f32.xlu0 %v2695
        %v2697 = vpop.xlane.xlu0 %2696
        %v2698 = vsel %vm1190, %v2688, 0.0
        %2699 = vadd.xlane.f32.xlu0 %v2698
        %v2700 = vpop.xlane.xlu0 %2699
        %v2701 = vrcp.pop %v2691
        %v2702 = vrcp.pop %v2694
        %v2703 = vrcp.pop %v2697
        %v2704 = vrcp.pop %v2700
        %v2705 = vmul.f32 %v2682, %v2701
        %v2706 = vmul.f32 %v2684, %v2702
        %v2707 = vmul.f32 %v2686, %v2703
        %v2708 = vmul.f32 %v2688, %v2704
        %2709 = vrot.lane.b32.xlu0 %v863, 64
        %v2710 = vpop.permute.xlu0 %2709
        %v2713 = vsel %vm1190, %v2705, 0
        %2715 = vmatprep.subr.mxu0 0.0
        %2716 = vmatpush1.msra.mxu0 %v2710
        %2717 = vmatprep.subr.mxu0 0.0
        %2718 = vmatpush1.msra.mxu0 0.0
        %2719 = vmatprep.subr.mxu0 0.0
        %2720 = vmatpush1.msra.mxu0 0.0
        %2721 = vmatprep.subr.mxu0 0.0
        %2722 = vmatpush1.msra.mxu0 0.0
        %2723 = vmatprep.subr.mxu0 0.0
        %2724 = vmatpush1.msra.mxu0 0.0
        %2725 = vmatprep.subr.mxu0 0.0
        %2726 = vmatpush1.msra.mxu0 0.0
        %2727 = vmatprep.subr.mxu0 0.0
        %2728 = vmatpush1.msra.mxu0 0.0
        %2729 = vmatprep.subr.mxu0 0.0
        %2730 = vmatpush1.msra.mxu0 0.0
        %2731 = vmatprep.subr.mxu0 0.0
        %2732 = vmatpush1.msra.mxu0 0.0
        %2733 = vmatprep.subr.mxu0 0.0
        %2734 = vmatpush1.msra.mxu0 0.0
        %2735 = vmatprep.subr.mxu0 0.0
        %2736 = vmatpush1.msra.mxu0 0.0
        %2737 = vmatprep.subr.mxu0 0.0
        %2738 = vmatpush1.msra.mxu0 0.0
        %2739 = vmatprep.subr.mxu0 0.0
        %2740 = vmatpush1.msra.mxu0 0.0
        %2741 = vmatprep.subr.mxu0 0.0
        %2742 = vmatpush1.msra.mxu0 0.0
        %2743 = vmatprep.subr.mxu0 0.0
        %2744 = vmatpush1.msra.mxu0 0.0
        %2745 = vmatprep.subr.mxu0 0.0
        %2746 = vmatpush1.msra.mxu0 0.0
        %2747 = vmatprep.subr.mxu0 0.0
        %2748 = vmatpush1.msra.mxu0 0.0
        %2749 = vmatprep.subr.mxu0 0.0
        %2750 = vmatpush1.msra.mxu0 0.0
        %2751 = vmatprep.subr.mxu0 0.0
        %2752 = vmatpush1.msra.mxu0 0.0
        %2753 = vmatprep.subr.mxu0 0.0
        %2754 = vmatpush1.msra.mxu0 0.0
        %2755 = vmatprep.subr.mxu0 0.0
        %2756 = vmatpush1.msra.mxu0 0.0
        %2757 = vmatprep.subr.mxu0 0.0
        %2758 = vmatpush1.msra.mxu0 0.0
        %2759 = vmatprep.subr.mxu0 0.0
        %2760 = vmatpush1.msra.mxu0 0.0
        %2761 = vmatprep.subr.mxu0 0.0
        %2762 = vmatpush1.msra.mxu0 0.0
        %2763 = vmatprep.subr.mxu0 0.0
        %2764 = vmatpush1.msra.mxu0 0.0
        %2765 = vmatprep.subr.mxu0 0.0
        %2766 = vmatpush1.msra.mxu0 0.0
        %2767 = vmatprep.subr.mxu0 0.0
        %2768 = vmatpush1.msra.mxu0 0.0
        %2769 = vmatprep.subr.mxu0 0.0
        %2770 = vmatpush1.msra.mxu0 0.0
        %2771 = vmatprep.subr.mxu0 0.0
        %2772 = vmatpush1.msra.mxu0 0.0
        %2773 = vmatprep.subr.mxu0 0.0
        %2774 = vmatpush1.msra.mxu0 0.0
        %2775 = vmatprep.subr.mxu0 0.0
        %2776 = vmatpush1.msra.mxu0 0.0
        %2777 = vmatprep.subr.mxu0 0.0
        %2778 = vmatpush1.msra.mxu0 0.0
        %2779 = vmatprep.mubr.f32.mxu0 0.0
        %2780 = vmatmul.mubr.f32.gmra.mrb[0].mxu0 %v2713
        %v2781 = vpop.f32.mrb[0].mxu0
        %v2782 = vadd.f32 0.0, %v2781
        %v2783 = vpop.f32.mrb[0].mxu0
        %2784 = vdwg.mxu0
        %2785 = vrot.lane.b32.xlu0 %v866, 64
        %v2786 = vpop.permute.xlu0 %2785
        %v2789 = vsel %vm1190, %v2706, 0
        %2791 = vmatprep.subr.mxu0 0.0
        %2792 = vmatpush1.msra.mxu0 %v2786
        %2793 = vmatprep.subr.mxu0 0.0
        %2794 = vmatpush1.msra.mxu0 0.0
        %2795 = vmatprep.subr.mxu0 0.0
        %2796 = vmatpush1.msra.mxu0 0.0
        %2797 = vmatprep.subr.mxu0 0.0
        %2798 = vmatpush1.msra.mxu0 0.0
        %2799 = vmatprep.subr.mxu0 0.0
        %2800 = vmatpush1.msra.mxu0 0.0
        %2801 = vmatprep.subr.mxu0 0.0
        %2802 = vmatpush1.msra.mxu0 0.0
        %2803 = vmatprep.subr.mxu0 0.0
        %2804 = vmatpush1.msra.mxu0 0.0
        %2805 = vmatprep.subr.mxu0 0.0
        %2806 = vmatpush1.msra.mxu0 0.0
        %2807 = vmatprep.subr.mxu0 0.0
        %2808 = vmatpush1.msra.mxu0 0.0
        %2809 = vmatprep.subr.mxu0 0.0
        %2810 = vmatpush1.msra.mxu0 0.0
        %2811 = vmatprep.subr.mxu0 0.0
        %2812 = vmatpush1.msra.mxu0 0.0
        %2813 = vmatprep.subr.mxu0 0.0
        %2814 = vmatpush1.msra.mxu0 0.0
        %2815 = vmatprep.subr.mxu0 0.0
        %2816 = vmatpush1.msra.mxu0 0.0
        %2817 = vmatprep.subr.mxu0 0.0
        %2818 = vmatpush1.msra.mxu0 0.0
        %2819 = vmatprep.subr.mxu0 0.0
        %2820 = vmatpush1.msra.mxu0 0.0
        %2821 = vmatprep.subr.mxu0 0.0
        %2822 = vmatpush1.msra.mxu0 0.0
        %2823 = vmatprep.subr.mxu0 0.0
        %2824 = vmatpush1.msra.mxu0 0.0
        %2825 = vmatprep.subr.mxu0 0.0
        %2826 = vmatpush1.msra.mxu0 0.0
        %2827 = vmatprep.subr.mxu0 0.0
        %2828 = vmatpush1.msra.mxu0 0.0
        %2829 = vmatprep.subr.mxu0 0.0
        %2830 = vmatpush1.msra.mxu0 0.0
        %2831 = vmatprep.subr.mxu0 0.0
        %2832 = vmatpush1.msra.mxu0 0.0
        %2833 = vmatprep.subr.mxu0 0.0
        %2834 = vmatpush1.msra.mxu0 0.0
        %2835 = vmatprep.subr.mxu0 0.0
        %2836 = vmatpush1.msra.mxu0 0.0
        %2837 = vmatprep.subr.mxu0 0.0
        %2838 = vmatpush1.msra.mxu0 0.0
        %2839 = vmatprep.subr.mxu0 0.0
        %2840 = vmatpush1.msra.mxu0 0.0
        %2841 = vmatprep.subr.mxu0 0.0
        %2842 = vmatpush1.msra.mxu0 0.0
        %2843 = vmatprep.subr.mxu0 0.0
        %2844 = vmatpush1.msra.mxu0 0.0
        %2845 = vmatprep.subr.mxu0 0.0
        %2846 = vmatpush1.msra.mxu0 0.0
        %2847 = vmatprep.subr.mxu0 0.0
        %2848 = vmatpush1.msra.mxu0 0.0
        %2849 = vmatprep.subr.mxu0 0.0
        %2850 = vmatpush1.msra.mxu0 0.0
        %2851 = vmatprep.subr.mxu0 0.0
        %2852 = vmatpush1.msra.mxu0 0.0
        %2853 = vmatprep.subr.mxu0 0.0
        %2854 = vmatpush1.msra.mxu0 0.0
        %2855 = vmatprep.mubr.f32.mxu0 0.0
        %2856 = vmatmul.mubr.f32.gmra.mrb[0].mxu0 %v2789
        %v2857 = vpop.f32.mrb[0].mxu0
        %v2858 = vadd.f32 0.0, %v2857
        %v2859 = vpop.f32.mrb[0].mxu0
        %2860 = vdwg.mxu0
        %2861 = vrot.lane.b32.xlu0 %v871, 64
        %v2862 = vpop.permute.xlu0 %2861
        %v2865 = vsel %vm1190, %v2707, 0
        %2867 = vmatprep.subr.mxu0 0.0
        %2868 = vmatpush1.msra.mxu0 %v2862
        %2869 = vmatprep.subr.mxu0 0.0
        %2870 = vmatpush1.msra.mxu0 0.0
        %2871 = vmatprep.subr.mxu0 0.0
        %2872 = vmatpush1.msra.mxu0 0.0
        %2873 = vmatprep.subr.mxu0 0.0
        %2874 = vmatpush1.msra.mxu0 0.0
        %2875 = vmatprep.subr.mxu0 0.0
        %2876 = vmatpush1.msra.mxu0 0.0
        %2877 = vmatprep.subr.mxu0 0.0
        %2878 = vmatpush1.msra.mxu0 0.0
        %2879 = vmatprep.subr.mxu0 0.0
        %2880 = vmatpush1.msra.mxu0 0.0
        %2881 = vmatprep.subr.mxu0 0.0
        %2882 = vmatpush1.msra.mxu0 0.0
        %2883 = vmatprep.subr.mxu0 0.0
        %2884 = vmatpush1.msra.mxu0 0.0
        %2885 = vmatprep.subr.mxu0 0.0
        %2886 = vmatpush1.msra.mxu0 0.0
        %2887 = vmatprep.subr.mxu0 0.0
        %2888 = vmatpush1.msra.mxu0 0.0
        %2889 = vmatprep.subr.mxu0 0.0
        %2890 = vmatpush1.msra.mxu0 0.0
        %2891 = vmatprep.subr.mxu0 0.0
        %2892 = vmatpush1.msra.mxu0 0.0
        %2893 = vmatprep.subr.mxu0 0.0
        %2894 = vmatpush1.msra.mxu0 0.0
        %2895 = vmatprep.subr.mxu0 0.0
        %2896 = vmatpush1.msra.mxu0 0.0
        %2897 = vmatprep.subr.mxu0 0.0
        %2898 = vmatpush1.msra.mxu0 0.0
        %2899 = vmatprep.subr.mxu0 0.0
        %2900 = vmatpush1.msra.mxu0 0.0
        %2901 = vmatprep.subr.mxu0 0.0
        %2902 = vmatpush1.msra.mxu0 0.0
        %2903 = vmatprep.subr.mxu0 0.0
        %2904 = vmatpush1.msra.mxu0 0.0
        %2905 = vmatprep.subr.mxu0 0.0
        %2906 = vmatpush1.msra.mxu0 0.0
        %2907 = vmatprep.subr.mxu0 0.0
        %2908 = vmatpush1.msra.mxu0 0.0
        %2909 = vmatprep.subr.mxu0 0.0
        %2910 = vmatpush1.msra.mxu0 0.0
        %2911 = vmatprep.subr.mxu0 0.0
        %2912 = vmatpush1.msra.mxu0 0.0
        %2913 = vmatprep.subr.mxu0 0.0
        %2914 = vmatpush1.msra.mxu0 0.0
        %2915 = vmatprep.subr.mxu0 0.0
        %2916 = vmatpush1.msra.mxu0 0.0
        %2917 = vmatprep.subr.mxu0 0.0
        %2918 = vmatpush1.msra.mxu0 0.0
        %2919 = vmatprep.subr.mxu0 0.0
        %2920 = vmatpush1.msra.mxu0 0.0
        %2921 = vmatprep.subr.mxu0 0.0
        %2922 = vmatpush1.msra.mxu0 0.0
        %2923 = vmatprep.subr.mxu0 0.0
        %2924 = vmatpush1.msra.mxu0 0.0
        %2925 = vmatprep.subr.mxu0 0.0
        %2926 = vmatpush1.msra.mxu0 0.0
        %2927 = vmatprep.subr.mxu0 0.0
        %2928 = vmatpush1.msra.mxu0 0.0
        %2929 = vmatprep.subr.mxu0 0.0
        %2930 = vmatpush1.msra.mxu0 0.0
        %2931 = vmatprep.mubr.f32.mxu0 0.0
        %2932 = vmatmul.mubr.f32.gmra.mrb[0].mxu0 %v2865
        %v2933 = vpop.f32.mrb[0].mxu0
        %v2934 = vadd.f32 0.0, %v2933
        %v2935 = vpop.f32.mrb[0].mxu0
        %2936 = vdwg.mxu0
        %2937 = vrot.lane.b32.xlu0 %v874, 64
        %v2938 = vpop.permute.xlu0 %2937
        %v2941 = vsel %vm1190, %v2708, 0
        %2943 = vmatprep.subr.mxu0 0.0
        %2944 = vmatpush1.msra.mxu0 %v2938
        %2945 = vmatprep.subr.mxu0 0.0
        %2946 = vmatpush1.msra.mxu0 0.0
        %2947 = vmatprep.subr.mxu0 0.0
        %2948 = vmatpush1.msra.mxu0 0.0
        %2949 = vmatprep.subr.mxu0 0.0
        %2950 = vmatpush1.msra.mxu0 0.0
        %2951 = vmatprep.subr.mxu0 0.0
        %2952 = vmatpush1.msra.mxu0 0.0
        %2953 = vmatprep.subr.mxu0 0.0
        %2954 = vmatpush1.msra.mxu0 0.0
        %2955 = vmatprep.subr.mxu0 0.0
        %2956 = vmatpush1.msra.mxu0 0.0
        %2957 = vmatprep.subr.mxu0 0.0
        %2958 = vmatpush1.msra.mxu0 0.0
        %2959 = vmatprep.subr.mxu0 0.0
        %2960 = vmatpush1.msra.mxu0 0.0
        %2961 = vmatprep.subr.mxu0 0.0
        %2962 = vmatpush1.msra.mxu0 0.0
        %2963 = vmatprep.subr.mxu0 0.0
        %2964 = vmatpush1.msra.mxu0 0.0
        %2965 = vmatprep.subr.mxu0 0.0
        %2966 = vmatpush1.msra.mxu0 0.0
        %2967 = vmatprep.subr.mxu0 0.0
        %2968 = vmatpush1.msra.mxu0 0.0
        %2969 = vmatprep.subr.mxu0 0.0
        %2970 = vmatpush1.msra.mxu0 0.0
        %2971 = vmatprep.subr.mxu0 0.0
        %2972 = vmatpush1.msra.mxu0 0.0
        %2973 = vmatprep.subr.mxu0 0.0
        %2974 = vmatpush1.msra.mxu0 0.0
        %2975 = vmatprep.subr.mxu0 0.0
        %2976 = vmatpush1.msra.mxu0 0.0
        %2977 = vmatprep.subr.mxu0 0.0
        %2978 = vmatpush1.msra.mxu0 0.0
        %2979 = vmatprep.subr.mxu0 0.0
        %2980 = vmatpush1.msra.mxu0 0.0
        %2981 = vmatprep.subr.mxu0 0.0
        %2982 = vmatpush1.msra.mxu0 0.0
        %2983 = vmatprep.subr.mxu0 0.0
        %2984 = vmatpush1.msra.mxu0 0.0
        %2985 = vmatprep.subr.mxu0 0.0
        %2986 = vmatpush1.msra.mxu0 0.0
        %2987 = vmatprep.subr.mxu0 0.0
        %2988 = vmatpush1.msra.mxu0 0.0
        %2989 = vmatprep.subr.mxu0 0.0
        %2990 = vmatpush1.msra.mxu0 0.0
        %2991 = vmatprep.subr.mxu0 0.0
        %2992 = vmatpush1.msra.mxu0 0.0
        %2993 = vmatprep.subr.mxu0 0.0
        %2994 = vmatpush1.msra.mxu0 0.0
        %2995 = vmatprep.subr.mxu0 0.0
        %2996 = vmatpush1.msra.mxu0 0.0
        %2997 = vmatprep.subr.mxu0 0.0
        %2998 = vmatpush1.msra.mxu0 0.0
        %2999 = vmatprep.subr.mxu0 0.0
        %3000 = vmatpush1.msra.mxu0 0.0
        %3001 = vmatprep.subr.mxu0 0.0
        %3002 = vmatpush1.msra.mxu0 0.0
        %3003 = vmatprep.subr.mxu0 0.0
        %3004 = vmatpush1.msra.mxu0 0.0
        %3005 = vmatprep.subr.mxu0 0.0
        %3006 = vmatpush1.msra.mxu0 0.0
        %3007 = vmatprep.mubr.f32.mxu0 0.0
        %3008 = vmatmul.mubr.f32.gmra.mrb[0].mxu0 %v2941
        %v3009 = vpop.f32.mrb[0].mxu0
        %v3010 = vadd.f32 0.0, %v3009
        %v3011 = vpop.f32.mrb[0].mxu0
        %3012 = vdwg.mxu0
        %v3013 = vpack.c.bf16 %v2858, %v2782
        %v3014 = vpack.c.bf16 %v3010, %v2934
        %v3015 = vld [vmem:[%s6 + $0x20] sm:$0xf]
        %v3016 = vld [vmem:[%s6 + $0x24] sm:$0xf]
        %v3017 = vld [vmem:[%s6 + $0x28] sm:$0xf]
        %v3018 = vld [vmem:[%s6 + $0x2c] sm:$0xf]
        %v3023 = vunpack.c.l.b16 %v3015
        %v3024 = vunpack.c.l.b16 %v3016
        %v3025 = vunpack.c.l.b16 %v3017
        %v3026 = vunpack.c.l.b16 %v3018
        %v3027 = vpack.c.b16 %v3024, %v3023
        %v3028 = vpack.c.b16 %v3026, %v3025
        %v3032 = vsel %vm877, %v3013, 0
        %v3035 = vsel %vm877, %v3014, 0
        %3037 = vmatprep.subr.bf16.mxu0 0
        %3038 = vmatpush1.bf16.msra.mxu0 %v3027
        %3039 = vmatprep.subr.bf16.mxu0 0
        %3040 = vmatpush1.bf16.msra.mxu0 %v3028
        %3041 = vmatprep.subr.bf16.mxu0 0
        %3042 = vmatpush1.bf16.msra.mxu0 0
        %3043 = vmatprep.subr.bf16.mxu0 0
        %3044 = vmatpush1.bf16.msra.mxu0 0
        %3045 = vmatprep.subr.bf16.mxu0 0
        %3046 = vmatpush1.bf16.msra.mxu0 0
        %3047 = vmatprep.subr.bf16.mxu0 0
        %3048 = vmatpush1.bf16.msra.mxu0 0
        %3049 = vmatprep.subr.bf16.mxu0 0
        %3050 = vmatpush1.bf16.msra.mxu0 0
        %3051 = vmatprep.subr.bf16.mxu0 0
        %3052 = vmatpush1.bf16.msra.mxu0 0
        %3053 = vmatprep.subr.bf16.mxu0 0
        %3054 = vmatpush1.bf16.msra.mxu0 0
        %3055 = vmatprep.subr.bf16.mxu0 0
        %3056 = vmatpush1.bf16.msra.mxu0 0
        %3057 = vmatprep.subr.bf16.mxu0 0
        %3058 = vmatpush1.bf16.msra.mxu0 0
        %3059 = vmatprep.subr.bf16.mxu0 0
        %3060 = vmatpush1.bf16.msra.mxu0 0
        %3061 = vmatprep.subr.bf16.mxu0 0
        %3062 = vmatpush1.bf16.msra.mxu0 0
        %3063 = vmatprep.subr.bf16.mxu0 0
        %3064 = vmatpush1.bf16.msra.mxu0 0
        %3065 = vmatprep.subr.bf16.mxu0 0
        %3066 = vmatpush1.bf16.msra.mxu0 0
        %3067 = vmatprep.subr.bf16.mxu0 0
        %3068 = vmatpush1.bf16.msra.mxu0 0
        %3069 = vmatprep.mubr.bf16.mxu0 0
        %3070 = vmatmul.mubr.bf16.gmra.mrb[0].mxu0 %v3032
        %v3071 = vpop.f32.mrb[0].mxu0
        %v3072 = vadd.f32 0.0, %v3071
        %v3073 = vpop.f32.mrb[0].mxu0
        %v3074 = vpop.f32.mrb[0].mxu0
        %v3075 = vadd.f32 0.0, %v3074
        %v3076 = vpop.f32.mrb[0].mxu0
        %3077 = vmatprep.mubr.bf16.mxu0 0
        %3078 = vmatmul.mubr.bf16.gmra.mrb[0].mxu0 %v3035
        %v3079 = vpop.f32.mrb[0].mxu0
        %v3080 = vadd.f32 0.0, %v3079
        %v3081 = vpop.f32.mrb[0].mxu0
        %v3082 = vpop.f32.mrb[0].mxu0
        %v3083 = vadd.f32 0.0, %v3082
        %v3084 = vpop.f32.mrb[0].mxu0
        %3085 = vdwg.mxu0
        %v3086 = vadd.f32 %v2331, %v3072
        %v3087 = vadd.f32 %v2334, %v3075
        %v3088 = vadd.f32 %v2339, %v3080
        %v3089 = vadd.f32 %v2342, %v3083
        %3090 = vrot.lane.b32.xlu0 %v810, 32
        %v3091 = vpop.permute.xlu0 %3090
        %3092 = vrot.lane.b32.xlu0 %v812, 32
        %v3093 = vpop.permute.xlu0 %3092
        %v3094 = vsel %vm877, %v3091, 0
        %v3096 = vsel %vm877, %v3093, 0
        %3098 = vmatprep.subr.mxu0 0.0
        %3099 = vmatpush1.xpose.msra.mxu0 %v3096
        %3100 = vmatprep.subr.mxu0 0.0
        %3101 = vmatpush1.xpose.msra.mxu0 0.0
        %3102 = vmatprep.subr.mxu0 0.0
        %3103 = vmatpush1.xpose.msra.mxu0 0.0
        %3104 = vmatprep.subr.mxu0 0.0
        %3105 = vmatpush1.xpose.msra.mxu0 0.0
        %3106 = vmatprep.subr.mxu0 0.0
        %3107 = vmatpush1.xpose.msra.mxu0 0.0
        %3108 = vmatprep.subr.mxu0 0.0
        %3109 = vmatpush1.xpose.msra.mxu0 0.0
        %3110 = vmatprep.subr.mxu0 0.0
        %3111 = vmatpush1.xpose.msra.mxu0 0.0
        %3112 = vmatprep.subr.mxu0 0.0
        %3113 = vmatpush1.xpose.msra.mxu0 0.0
        %3114 = vmatprep.subr.mxu0 0.0
        %3115 = vmatpush1.xpose.msra.mxu0 0.0
        %3116 = vmatprep.subr.mxu0 0.0
        %3117 = vmatpush1.xpose.msra.mxu0 0.0
        %3118 = vmatprep.subr.mxu0 0.0
        %3119 = vmatpush1.xpose.msra.mxu0 0.0
        %3120 = vmatprep.subr.mxu0 0.0
        %3121 = vmatpush1.xpose.msra.mxu0 0.0
        %3122 = vmatprep.subr.mxu0 0.0
        %3123 = vmatpush1.xpose.msra.mxu0 0.0
        %3124 = vmatprep.subr.mxu0 0.0
        %3125 = vmatpush1.xpose.msra.mxu0 0.0
        %3126 = vmatprep.subr.mxu0 0.0
        %3127 = vmatpush1.xpose.msra.mxu0 0.0
        %3128 = vmatprep.subr.mxu0 0.0
        %3129 = vmatpush1.xpose.msra.mxu0 0.0
        %3130 = vmatprep.subr.mxu0 0.0
        %3131 = vmatpush1.xpose.msra.mxu0 0.0
        %3132 = vmatprep.subr.mxu0 0.0
        %3133 = vmatpush1.xpose.msra.mxu0 0.0
        %3134 = vmatprep.subr.mxu0 0.0
        %3135 = vmatpush1.xpose.msra.mxu0 0.0
        %3136 = vmatprep.subr.mxu0 0.0
        %3137 = vmatpush1.xpose.msra.mxu0 0.0
        %3138 = vmatprep.subr.mxu0 0.0
        %3139 = vmatpush1.xpose.msra.mxu0 0.0
        %3140 = vmatprep.subr.mxu0 0.0
        %3141 = vmatpush1.xpose.msra.mxu0 0.0
        %3142 = vmatprep.subr.mxu0 0.0
        %3143 = vmatpush1.xpose.msra.mxu0 0.0
        %3144 = vmatprep.subr.mxu0 0.0
        %3145 = vmatpush1.xpose.msra.mxu0 0.0
        %3146 = vmatprep.subr.mxu0 0.0
        %3147 = vmatpush1.xpose.msra.mxu0 0.0
        %3148 = vmatprep.subr.mxu0 0.0
        %3149 = vmatpush1.xpose.msra.mxu0 0.0
        %3150 = vmatprep.subr.mxu0 0.0
        %3151 = vmatpush1.xpose.msra.mxu0 0.0
        %3152 = vmatprep.subr.mxu0 0.0
        %3153 = vmatpush1.xpose.msra.mxu0 0.0
        %3154 = vmatprep.subr.mxu0 0.0
        %3155 = vmatpush1.xpose.msra.mxu0 0.0
        %3156 = vmatprep.subr.mxu0 0.0
        %3157 = vmatpush1.xpose.msra.mxu0 0.0
        %3158 = vmatprep.subr.mxu0 0.0
        %3159 = vmatpush1.xpose.msra.mxu0 0.0
        %3160 = vmatprep.subr.mxu0 0.0
        %3161 = vmatpush1.xpose.msra.mxu0 0.0
        %3162 = vmatprep.mubr.f32.mxu0 0.0
        %3163 = vmatmul.mubr.f32.gmra.mrb[0].mxu0 %v3094
        %v3164 = vpop.f32.mrb[0].mxu0
        %v3165 = vadd.f32 0.0, %v3164
        %v3166 = vpop.f32.mrb[0].mxu0
        %3167 = vdwg.mxu0
        %3168 = vrot.lane.b32.xlu0 %v814, 32
        %v3169 = vpop.permute.xlu0 %3168
        %3170 = vrot.lane.b32.xlu0 %v816, 32
        %v3171 = vpop.permute.xlu0 %3170
        %v3172 = vsel %vm877, %v3169, 0
        %v3174 = vsel %vm877, %v3171, 0
        %3176 = vmatprep.subr.mxu0 0.0
        %3177 = vmatpush1.xpose.msra.mxu0 %v3174
        %3178 = vmatprep.subr.mxu0 0.0
        %3179 = vmatpush1.xpose.msra.mxu0 0.0
        %3180 = vmatprep.subr.mxu0 0.0
        %3181 = vmatpush1.xpose.msra.mxu0 0.0
        %3182 = vmatprep.subr.mxu0 0.0
        %3183 = vmatpush1.xpose.msra.mxu0 0.0
        %3184 = vmatprep.subr.mxu0 0.0
        %3185 = vmatpush1.xpose.msra.mxu0 0.0
        %3186 = vmatprep.subr.mxu0 0.0
        %3187 = vmatpush1.xpose.msra.mxu0 0.0
        %3188 = vmatprep.subr.mxu0 0.0
        %3189 = vmatpush1.xpose.msra.mxu0 0.0
        %3190 = vmatprep.subr.mxu0 0.0
        %3191 = vmatpush1.xpose.msra.mxu0 0.0
        %3192 = vmatprep.subr.mxu0 0.0
        %3193 = vmatpush1.xpose.msra.mxu0 0.0
        %3194 = vmatprep.subr.mxu0 0.0
        %3195 = vmatpush1.xpose.msra.mxu0 0.0
        %3196 = vmatprep.subr.mxu0 0.0
        %3197 = vmatpush1.xpose.msra.mxu0 0.0
        %3198 = vmatprep.subr.mxu0 0.0
        %3199 = vmatpush1.xpose.msra.mxu0 0.0
        %3200 = vmatprep.subr.mxu0 0.0
        %3201 = vmatpush1.xpose.msra.mxu0 0.0
        %3202 = vmatprep.subr.mxu0 0.0
        %3203 = vmatpush1.xpose.msra.mxu0 0.0
        %3204 = vmatprep.subr.mxu0 0.0
        %3205 = vmatpush1.xpose.msra.mxu0 0.0
        %3206 = vmatprep.subr.mxu0 0.0
        %3207 = vmatpush1.xpose.msra.mxu0 0.0
        %3208 = vmatprep.subr.mxu0 0.0
        %3209 = vmatpush1.xpose.msra.mxu0 0.0
        %3210 = vmatprep.subr.mxu0 0.0
        %3211 = vmatpush1.xpose.msra.mxu0 0.0
        %3212 = vmatprep.subr.mxu0 0.0
        %3213 = vmatpush1.xpose.msra.mxu0 0.0
        %3214 = vmatprep.subr.mxu0 0.0
        %3215 = vmatpush1.xpose.msra.mxu0 0.0
        %3216 = vmatprep.subr.mxu0 0.0
        %3217 = vmatpush1.xpose.msra.mxu0 0.0
        %3218 = vmatprep.subr.mxu0 0.0
        %3219 = vmatpush1.xpose.msra.mxu0 0.0
        %3220 = vmatprep.subr.mxu0 0.0
        %3221 = vmatpush1.xpose.msra.mxu0 0.0
        %3222 = vmatprep.subr.mxu0 0.0
        %3223 = vmatpush1.xpose.msra.mxu0 0.0
        %3224 = vmatprep.subr.mxu0 0.0
        %3225 = vmatpush1.xpose.msra.mxu0 0.0
        %3226 = vmatprep.subr.mxu0 0.0
        %3227 = vmatpush1.xpose.msra.mxu0 0.0
        %3228 = vmatprep.subr.mxu0 0.0
        %3229 = vmatpush1.xpose.msra.mxu0 0.0
        %3230 = vmatprep.subr.mxu0 0.0
        %3231 = vmatpush1.xpose.msra.mxu0 0.0
        %3232 = vmatprep.subr.mxu0 0.0
        %3233 = vmatpush1.xpose.msra.mxu0 0.0
        %3234 = vmatprep.subr.mxu0 0.0
        %3235 = vmatpush1.xpose.msra.mxu0 0.0
        %3236 = vmatprep.subr.mxu0 0.0
        %3237 = vmatpush1.xpose.msra.mxu0 0.0
        %3238 = vmatprep.subr.mxu0 0.0
        %3239 = vmatpush1.xpose.msra.mxu0 0.0
        %3240 = vmatprep.mubr.f32.mxu0 0.0
        %3241 = vmatmul.mubr.f32.gmra.mrb[0].mxu0 %v3172
        %v3242 = vpop.f32.mrb[0].mxu0
        %v3243 = vadd.f32 0.0, %v3242
        %v3244 = vpop.f32.mrb[0].mxu0
        %3245 = vdwg.mxu0
        %3246 = vrot.lane.b32.xlu0 %v820, 32
        %v3247 = vpop.permute.xlu0 %3246
        %3248 = vrot.lane.b32.xlu0 %v822, 32
        %v3249 = vpop.permute.xlu0 %3248
        %v3250 = vsel %vm877, %v3247, 0
        %v3252 = vsel %vm877, %v3249, 0
        %3254 = vmatprep.subr.mxu0 0.0
        %3255 = vmatpush1.xpose.msra.mxu0 %v3252
        %3256 = vmatprep.subr.mxu0 0.0
        %3257 = vmatpush1.xpose.msra.mxu0 0.0
        %3258 = vmatprep.subr.mxu0 0.0
        %3259 = vmatpush1.xpose.msra.mxu0 0.0
        %3260 = vmatprep.subr.mxu0 0.0
        %3261 = vmatpush1.xpose.msra.mxu0 0.0
        %3262 = vmatprep.subr.mxu0 0.0
        %3263 = vmatpush1.xpose.msra.mxu0 0.0
        %3264 = vmatprep.subr.mxu0 0.0
        %3265 = vmatpush1.xpose.msra.mxu0 0.0
        %3266 = vmatprep.subr.mxu0 0.0
        %3267 = vmatpush1.xpose.msra.mxu0 0.0
        %3268 = vmatprep.subr.mxu0 0.0
        %3269 = vmatpush1.xpose.msra.mxu0 0.0
        %3270 = vmatprep.subr.mxu0 0.0
        %3271 = vmatpush1.xpose.msra.mxu0 0.0
        %3272 = vmatprep.subr.mxu0 0.0
        %3273 = vmatpush1.xpose.msra.mxu0 0.0
        %3274 = vmatprep.subr.mxu0 0.0
        %3275 = vmatpush1.xpose.msra.mxu0 0.0
        %3276 = vmatprep.subr.mxu0 0.0
        %3277 = vmatpush1.xpose.msra.mxu0 0.0
        %3278 = vmatprep.subr.mxu0 0.0
        %3279 = vmatpush1.xpose.msra.mxu0 0.0
        %3280 = vmatprep.subr.mxu0 0.0
        %3281 = vmatpush1.xpose.msra.mxu0 0.0
        %3282 = vmatprep.subr.mxu0 0.0
        %3283 = vmatpush1.xpose.msra.mxu0 0.0
        %3284 = vmatprep.subr.mxu0 0.0
        %3285 = vmatpush1.xpose.msra.mxu0 0.0
        %3286 = vmatprep.subr.mxu0 0.0
        %3287 = vmatpush1.xpose.msra.mxu0 0.0
        %3288 = vmatprep.subr.mxu0 0.0
        %3289 = vmatpush1.xpose.msra.mxu0 0.0
        %3290 = vmatprep.subr.mxu0 0.0
        %3291 = vmatpush1.xpose.msra.mxu0 0.0
        %3292 = vmatprep.subr.mxu0 0.0
        %3293 = vmatpush1.xpose.msra.mxu0 0.0
        %3294 = vmatprep.subr.mxu0 0.0
        %3295 = vmatpush1.xpose.msra.mxu0 0.0
        %3296 = vmatprep.subr.mxu0 0.0
        %3297 = vmatpush1.xpose.msra.mxu0 0.0
        %3298 = vmatprep.subr.mxu0 0.0
        %3299 = vmatpush1.xpose.msra.mxu0 0.0
        %3300 = vmatprep.subr.mxu0 0.0
        %3301 = vmatpush1.xpose.msra.mxu0 0.0
        %3302 = vmatprep.subr.mxu0 0.0
        %3303 = vmatpush1.xpose.msra.mxu0 0.0
        %3304 = vmatprep.subr.mxu0 0.0
        %3305 = vmatpush1.xpose.msra.mxu0 0.0
        %3306 = vmatprep.subr.mxu0 0.0
        %3307 = vmatpush1.xpose.msra.mxu0 0.0
        %3308 = vmatprep.subr.mxu0 0.0
        %3309 = vmatpush1.xpose.msra.mxu0 0.0
        %3310 = vmatprep.subr.mxu0 0.0
        %3311 = vmatpush1.xpose.msra.mxu0 0.0
        %3312 = vmatprep.subr.mxu0 0.0
        %3313 = vmatpush1.xpose.msra.mxu0 0.0
        %3314 = vmatprep.subr.mxu0 0.0
        %3315 = vmatpush1.xpose.msra.mxu0 0.0
        %3316 = vmatprep.subr.mxu0 0.0
        %3317 = vmatpush1.xpose.msra.mxu0 0.0
        %3318 = vmatprep.mubr.f32.mxu0 0.0
        %3319 = vmatmul.mubr.f32.gmra.mrb[0].mxu0 %v3250
        %v3320 = vpop.f32.mrb[0].mxu0
        %v3321 = vadd.f32 0.0, %v3320
        %v3322 = vpop.f32.mrb[0].mxu0
        %3323 = vdwg.mxu0
        %3324 = vrot.lane.b32.xlu0 %v824, 32
        %v3325 = vpop.permute.xlu0 %3324
        %3326 = vrot.lane.b32.xlu0 %v826, 32
        %v3327 = vpop.permute.xlu0 %3326
        %v3328 = vsel %vm877, %v3325, 0
        %v3330 = vsel %vm877, %v3327, 0
        %3332 = vmatprep.subr.mxu0 0.0
        %3333 = vmatpush1.xpose.msra.mxu0 %v3330
        %3334 = vmatprep.subr.mxu0 0.0
        %3335 = vmatpush1.xpose.msra.mxu0 0.0
        %3336 = vmatprep.subr.mxu0 0.0
        %3337 = vmatpush1.xpose.msra.mxu0 0.0
        %3338 = vmatprep.subr.mxu0 0.0
        %3339 = vmatpush1.xpose.msra.mxu0 0.0
        %3340 = vmatprep.subr.mxu0 0.0
        %3341 = vmatpush1.xpose.msra.mxu0 0.0
        %3342 = vmatprep.subr.mxu0 0.0
        %3343 = vmatpush1.xpose.msra.mxu0 0.0
        %3344 = vmatprep.subr.mxu0 0.0
        %3345 = vmatpush1.xpose.msra.mxu0 0.0
        %3346 = vmatprep.subr.mxu0 0.0
        %3347 = vmatpush1.xpose.msra.mxu0 0.0
        %3348 = vmatprep.subr.mxu0 0.0
        %3349 = vmatpush1.xpose.msra.mxu0 0.0
        %3350 = vmatprep.subr.mxu0 0.0
        %3351 = vmatpush1.xpose.msra.mxu0 0.0
        %3352 = vmatprep.subr.mxu0 0.0
        %3353 = vmatpush1.xpose.msra.mxu0 0.0
        %3354 = vmatprep.subr.mxu0 0.0
        %3355 = vmatpush1.xpose.msra.mxu0 0.0
        %3356 = vmatprep.subr.mxu0 0.0
        %3357 = vmatpush1.xpose.msra.mxu0 0.0
        %3358 = vmatprep.subr.mxu0 0.0
        %3359 = vmatpush1.xpose.msra.mxu0 0.0
        %3360 = vmatprep.subr.mxu0 0.0
        %3361 = vmatpush1.xpose.msra.mxu0 0.0
        %3362 = vmatprep.subr.mxu0 0.0
        %3363 = vmatpush1.xpose.msra.mxu0 0.0
        %3364 = vmatprep.subr.mxu0 0.0
        %3365 = vmatpush1.xpose.msra.mxu0 0.0
        %3366 = vmatprep.subr.mxu0 0.0
        %3367 = vmatpush1.xpose.msra.mxu0 0.0
        %3368 = vmatprep.subr.mxu0 0.0
        %3369 = vmatpush1.xpose.msra.mxu0 0.0
        %3370 = vmatprep.subr.mxu0 0.0
        %3371 = vmatpush1.xpose.msra.mxu0 0.0
        %3372 = vmatprep.subr.mxu0 0.0
        %3373 = vmatpush1.xpose.msra.mxu0 0.0
        %3374 = vmatprep.subr.mxu0 0.0
        %3375 = vmatpush1.xpose.msra.mxu0 0.0
        %3376 = vmatprep.subr.mxu0 0.0
        %3377 = vmatpush1.xpose.msra.mxu0 0.0
        %3378 = vmatprep.subr.mxu0 0.0
        %3379 = vmatpush1.xpose.msra.mxu0 0.0
        %3380 = vmatprep.subr.mxu0 0.0
        %3381 = vmatpush1.xpose.msra.mxu0 0.0
        %3382 = vmatprep.subr.mxu0 0.0
        %3383 = vmatpush1.xpose.msra.mxu0 0.0
        %3384 = vmatprep.subr.mxu0 0.0
        %3385 = vmatpush1.xpose.msra.mxu0 0.0
        %3386 = vmatprep.subr.mxu0 0.0
        %3387 = vmatpush1.xpose.msra.mxu0 0.0
        %3388 = vmatprep.subr.mxu0 0.0
        %3389 = vmatpush1.xpose.msra.mxu0 0.0
        %3390 = vmatprep.subr.mxu0 0.0
        %3391 = vmatpush1.xpose.msra.mxu0 0.0
        %3392 = vmatprep.subr.mxu0 0.0
        %3393 = vmatpush1.xpose.msra.mxu0 0.0
        %3394 = vmatprep.subr.mxu0 0.0
        %3395 = vmatpush1.xpose.msra.mxu0 0.0
        %3396 = vmatprep.mubr.f32.mxu0 0.0
        %3397 = vmatmul.mubr.f32.gmra.mrb[0].mxu0 %v3328
        %v3398 = vpop.f32.mrb[0].mxu0
        %v3399 = vadd.f32 0.0, %v3398
        %v3400 = vpop.f32.mrb[0].mxu0
        %3401 = vdwg.mxu0
        %v3402 = vmul.f32 %v3165, 0.17677669
        %v3403 = vmul.f32 %v3243, 0.17677669
        %v3404 = vmul.f32 %v3321, 0.17677669
        %v3405 = vmul.f32 %v3399, 0.17677669
        %v3406 = vadd.f32 %v3402, %v496
        %v3407 = vadd.f32 %v3403, %v497
        %v3408 = vadd.f32 %v3404, %v498
        %v3409 = vadd.f32 %v3405, %v499
        %v3410 = vsel %vm1190, %v3406, -inf
        %3411 = vmax.xlane.f32.xlu0 %v3410
        %v3412 = vpop.xlane.xlu0 %3411
        %v3413 = vsel %vm1190, %v3407, -inf
        %3414 = vmax.xlane.f32.xlu0 %v3413
        %v3415 = vpop.xlane.xlu0 %3414
        %v3416 = vsel %vm1190, %v3408, -inf
        %3417 = vmax.xlane.f32.xlu0 %v3416
        %v3418 = vpop.xlane.xlu0 %3417
        %v3419 = vsel %vm1190, %v3409, -inf
        %3420 = vmax.xlane.f32.xlu0 %v3419
        %v3421 = vpop.xlane.xlu0 %3420
        %v3422 = vsub.f32 %v3406, %v3412
        %v3423 = vsub.f32 %v3407, %v3415
        %v3424 = vsub.f32 %v3408, %v3418
        %v3425 = vsub.f32 %v3409, %v3421
        %v3426 = vmul.f32 %v3422, 1.442695
        %v3427 = vpow.pop %v3426
        %v3428 = vmul.f32 %v3423, 1.442695
        %v3429 = vpow.pop %v3428
        %v3430 = vmul.f32 %v3424, 1.442695
        %v3431 = vpow.pop %v3430
        %v3432 = vmul.f32 %v3425, 1.442695
        %v3433 = vpow.pop %v3432
        %v3434 = vsel %vm1190, %v3427, 0.0
        %3435 = vadd.xlane.f32.xlu0 %v3434
        %v3436 = vpop.xlane.xlu0 %3435
        %v3437 = vsel %vm1190, %v3429, 0.0
        %3438 = vadd.xlane.f32.xlu0 %v3437
        %v3439 = vpop.xlane.xlu0 %3438
        %v3440 = vsel %vm1190, %v3431, 0.0
        %3441 = vadd.xlane.f32.xlu0 %v3440
        %v3442 = vpop.xlane.xlu0 %3441
        %v3443 = vsel %vm1190, %v3433, 0.0
        %3444 = vadd.xlane.f32.xlu0 %v3443
        %v3445 = vpop.xlane.xlu0 %3444
        %v3446 = vrcp.pop %v3436
        %v3447 = vrcp.pop %v3439
        %v3448 = vrcp.pop %v3442
        %v3449 = vrcp.pop %v3445
        %v3450 = vmul.f32 %v3427, %v3446
        %v3451 = vmul.f32 %v3429, %v3447
        %v3452 = vmul.f32 %v3431, %v3448
        %v3453 = vmul.f32 %v3433, %v3449
        %3454 = vrot.lane.b32.xlu0 %v863, 32
        %v3455 = vpop.permute.xlu0 %3454
        %v3458 = vsel %vm1190, %v3450, 0
        %3460 = vmatprep.subr.mxu0 0.0
        %3461 = vmatpush1.msra.mxu0 %v3455
        %3462 = vmatprep.subr.mxu0 0.0
        %3463 = vmatpush1.msra.mxu0 0.0
        %3464 = vmatprep.subr.mxu0 0.0
        %3465 = vmatpush1.msra.mxu0 0.0
        %3466 = vmatprep.subr.mxu0 0.0
        %3467 = vmatpush1.msra.mxu0 0.0
        %3468 = vmatprep.subr.mxu0 0.0
        %3469 = vmatpush1.msra.mxu0 0.0
        %3470 = vmatprep.subr.mxu0 0.0
        %3471 = vmatpush1.msra.mxu0 0.0
        %3472 = vmatprep.subr.mxu0 0.0
        %3473 = vmatpush1.msra.mxu0 0.0
        %3474 = vmatprep.subr.mxu0 0.0
        %3475 = vmatpush1.msra.mxu0 0.0
        %3476 = vmatprep.subr.mxu0 0.0
        %3477 = vmatpush1.msra.mxu0 0.0
        %3478 = vmatprep.subr.mxu0 0.0
        %3479 = vmatpush1.msra.mxu0 0.0
        %3480 = vmatprep.subr.mxu0 0.0
        %3481 = vmatpush1.msra.mxu0 0.0
        %3482 = vmatprep.subr.mxu0 0.0
        %3483 = vmatpush1.msra.mxu0 0.0
        %3484 = vmatprep.subr.mxu0 0.0
        %3485 = vmatpush1.msra.mxu0 0.0
        %3486 = vmatprep.subr.mxu0 0.0
        %3487 = vmatpush1.msra.mxu0 0.0
        %3488 = vmatprep.subr.mxu0 0.0
        %3489 = vmatpush1.msra.mxu0 0.0
        %3490 = vmatprep.subr.mxu0 0.0
        %3491 = vmatpush1.msra.mxu0 0.0
        %3492 = vmatprep.subr.mxu0 0.0
        %3493 = vmatpush1.msra.mxu0 0.0
        %3494 = vmatprep.subr.mxu0 0.0
        %3495 = vmatpush1.msra.mxu0 0.0
        %3496 = vmatprep.subr.mxu0 0.0
        %3497 = vmatpush1.msra.mxu0 0.0
        %3498 = vmatprep.subr.mxu0 0.0
        %3499 = vmatpush1.msra.mxu0 0.0
        %3500 = vmatprep.subr.mxu0 0.0
        %3501 = vmatpush1.msra.mxu0 0.0
        %3502 = vmatprep.subr.mxu0 0.0
        %3503 = vmatpush1.msra.mxu0 0.0
        %3504 = vmatprep.subr.mxu0 0.0
        %3505 = vmatpush1.msra.mxu0 0.0
        %3506 = vmatprep.subr.mxu0 0.0
        %3507 = vmatpush1.msra.mxu0 0.0
        %3508 = vmatprep.subr.mxu0 0.0
        %3509 = vmatpush1.msra.mxu0 0.0
        %3510 = vmatprep.subr.mxu0 0.0
        %3511 = vmatpush1.msra.mxu0 0.0
        %3512 = vmatprep.subr.mxu0 0.0
        %3513 = vmatpush1.msra.mxu0 0.0
        %3514 = vmatprep.subr.mxu0 0.0
        %3515 = vmatpush1.msra.mxu0 0.0
        %3516 = vmatprep.subr.mxu0 0.0
        %3517 = vmatpush1.msra.mxu0 0.0
        %3518 = vmatprep.subr.mxu0 0.0
        %3519 = vmatpush1.msra.mxu0 0.0
        %3520 = vmatprep.subr.mxu0 0.0
        %3521 = vmatpush1.msra.mxu0 0.0
        %3522 = vmatprep.subr.mxu0 0.0
        %3523 = vmatpush1.msra.mxu0 0.0
        %3524 = vmatprep.mubr.f32.mxu0 0.0
        %3525 = vmatmul.mubr.f32.gmra.mrb[0].mxu0 %v3458
        %v3526 = vpop.f32.mrb[0].mxu0
        %v3527 = vadd.f32 0.0, %v3526
        %v3528 = vpop.f32.mrb[0].mxu0
        %3529 = vdwg.mxu0
        %3530 = vrot.lane.b32.xlu0 %v866, 32
        %v3531 = vpop.permute.xlu0 %3530
        %v3534 = vsel %vm1190, %v3451, 0
        %3536 = vmatprep.subr.mxu0 0.0
        %3537 = vmatpush1.msra.mxu0 %v3531
        %3538 = vmatprep.subr.mxu0 0.0
        %3539 = vmatpush1.msra.mxu0 0.0
        %3540 = vmatprep.subr.mxu0 0.0
        %3541 = vmatpush1.msra.mxu0 0.0
        %3542 = vmatprep.subr.mxu0 0.0
        %3543 = vmatpush1.msra.mxu0 0.0
        %3544 = vmatprep.subr.mxu0 0.0
        %3545 = vmatpush1.msra.mxu0 0.0
        %3546 = vmatprep.subr.mxu0 0.0
        %3547 = vmatpush1.msra.mxu0 0.0
        %3548 = vmatprep.subr.mxu0 0.0
        %3549 = vmatpush1.msra.mxu0 0.0
        %3550 = vmatprep.subr.mxu0 0.0
        %3551 = vmatpush1.msra.mxu0 0.0
        %3552 = vmatprep.subr.mxu0 0.0
        %3553 = vmatpush1.msra.mxu0 0.0
        %3554 = vmatprep.subr.mxu0 0.0
        %3555 = vmatpush1.msra.mxu0 0.0
        %3556 = vmatprep.subr.mxu0 0.0
        %3557 = vmatpush1.msra.mxu0 0.0
        %3558 = vmatprep.subr.mxu0 0.0
        %3559 = vmatpush1.msra.mxu0 0.0
        %3560 = vmatprep.subr.mxu0 0.0
        %3561 = vmatpush1.msra.mxu0 0.0
        %3562 = vmatprep.subr.mxu0 0.0
        %3563 = vmatpush1.msra.mxu0 0.0
        %3564 = vmatprep.subr.mxu0 0.0
        %3565 = vmatpush1.msra.mxu0 0.0
        %3566 = vmatprep.subr.mxu0 0.0
        %3567 = vmatpush1.msra.mxu0 0.0
        %3568 = vmatprep.subr.mxu0 0.0
        %3569 = vmatpush1.msra.mxu0 0.0
        %3570 = vmatprep.subr.mxu0 0.0
        %3571 = vmatpush1.msra.mxu0 0.0
        %3572 = vmatprep.subr.mxu0 0.0
        %3573 = vmatpush1.msra.mxu0 0.0
        %3574 = vmatprep.subr.mxu0 0.0
        %3575 = vmatpush1.msra.mxu0 0.0
        %3576 = vmatprep.subr.mxu0 0.0
        %3577 = vmatpush1.msra.mxu0 0.0
        %3578 = vmatprep.subr.mxu0 0.0
        %3579 = vmatpush1.msra.mxu0 0.0
        %3580 = vmatprep.subr.mxu0 0.0
        %3581 = vmatpush1.msra.mxu0 0.0
        %3582 = vmatprep.subr.mxu0 0.0
        %3583 = vmatpush1.msra.mxu0 0.0
        %3584 = vmatprep.subr.mxu0 0.0
        %3585 = vmatpush1.msra.mxu0 0.0
        %3586 = vmatprep.subr.mxu0 0.0
        %3587 = vmatpush1.msra.mxu0 0.0
        %3588 = vmatprep.subr.mxu0 0.0
        %3589 = vmatpush1.msra.mxu0 0.0
        %3590 = vmatprep.subr.mxu0 0.0
        %3591 = vmatpush1.msra.mxu0 0.0
        %3592 = vmatprep.subr.mxu0 0.0
        %3593 = vmatpush1.msra.mxu0 0.0
        %3594 = vmatprep.subr.mxu0 0.0
        %3595 = vmatpush1.msra.mxu0 0.0
        %3596 = vmatprep.subr.mxu0 0.0
        %3597 = vmatpush1.msra.mxu0 0.0
        %3598 = vmatprep.subr.mxu0 0.0
        %3599 = vmatpush1.msra.mxu0 0.0
        %3600 = vmatprep.mubr.f32.mxu0 0.0
        %3601 = vmatmul.mubr.f32.gmra.mrb[0].mxu0 %v3534
        %v3602 = vpop.f32.mrb[0].mxu0
        %v3603 = vadd.f32 0.0, %v3602
        %v3604 = vpop.f32.mrb[0].mxu0
        %3605 = vdwg.mxu0
        %3606 = vrot.lane.b32.xlu0 %v871, 32
        %v3607 = vpop.permute.xlu0 %3606
        %v3610 = vsel %vm1190, %v3452, 0
        %3612 = vmatprep.subr.mxu0 0.0
        %3613 = vmatpush1.msra.mxu0 %v3607
        %3614 = vmatprep.subr.mxu0 0.0
        %3615 = vmatpush1.msra.mxu0 0.0
        %3616 = vmatprep.subr.mxu0 0.0
        %3617 = vmatpush1.msra.mxu0 0.0
        %3618 = vmatprep.subr.mxu0 0.0
        %3619 = vmatpush1.msra.mxu0 0.0
        %3620 = vmatprep.subr.mxu0 0.0
        %3621 = vmatpush1.msra.mxu0 0.0
        %3622 = vmatprep.subr.mxu0 0.0
        %3623 = vmatpush1.msra.mxu0 0.0
        %3624 = vmatprep.subr.mxu0 0.0
        %3625 = vmatpush1.msra.mxu0 0.0
        %3626 = vmatprep.subr.mxu0 0.0
        %3627 = vmatpush1.msra.mxu0 0.0
        %3628 = vmatprep.subr.mxu0 0.0
        %3629 = vmatpush1.msra.mxu0 0.0
        %3630 = vmatprep.subr.mxu0 0.0
        %3631 = vmatpush1.msra.mxu0 0.0
        %3632 = vmatprep.subr.mxu0 0.0
        %3633 = vmatpush1.msra.mxu0 0.0
        %3634 = vmatprep.subr.mxu0 0.0
        %3635 = vmatpush1.msra.mxu0 0.0
        %3636 = vmatprep.subr.mxu0 0.0
        %3637 = vmatpush1.msra.mxu0 0.0
        %3638 = vmatprep.subr.mxu0 0.0
        %3639 = vmatpush1.msra.mxu0 0.0
        %3640 = vmatprep.subr.mxu0 0.0
        %3641 = vmatpush1.msra.mxu0 0.0
        %3642 = vmatprep.subr.mxu0 0.0
        %3643 = vmatpush1.msra.mxu0 0.0
        %3644 = vmatprep.subr.mxu0 0.0
        %3645 = vmatpush1.msra.mxu0 0.0
        %3646 = vmatprep.subr.mxu0 0.0
        %3647 = vmatpush1.msra.mxu0 0.0
        %3648 = vmatprep.subr.mxu0 0.0
        %3649 = vmatpush1.msra.mxu0 0.0
        %3650 = vmatprep.subr.mxu0 0.0
        %3651 = vmatpush1.msra.mxu0 0.0
        %3652 = vmatprep.subr.mxu0 0.0
        %3653 = vmatpush1.msra.mxu0 0.0
        %3654 = vmatprep.subr.mxu0 0.0
        %3655 = vmatpush1.msra.mxu0 0.0
        %3656 = vmatprep.subr.mxu0 0.0
        %3657 = vmatpush1.msra.mxu0 0.0
        %3658 = vmatprep.subr.mxu0 0.0
        %3659 = vmatpush1.msra.mxu0 0.0
        %3660 = vmatprep.subr.mxu0 0.0
        %3661 = vmatpush1.msra.mxu0 0.0
        %3662 = vmatprep.subr.mxu0 0.0
        %3663 = vmatpush1.msra.mxu0 0.0
        %3664 = vmatprep.subr.mxu0 0.0
        %3665 = vmatpush1.msra.mxu0 0.0
        %3666 = vmatprep.subr.mxu0 0.0
        %3667 = vmatpush1.msra.mxu0 0.0
        %3668 = vmatprep.subr.mxu0 0.0
        %3669 = vmatpush1.msra.mxu0 0.0
        %3670 = vmatprep.subr.mxu0 0.0
        %3671 = vmatpush1.msra.mxu0 0.0
        %3672 = vmatprep.subr.mxu0 0.0
        %3673 = vmatpush1.msra.mxu0 0.0
        %3674 = vmatprep.subr.mxu0 0.0
        %3675 = vmatpush1.msra.mxu0 0.0
        %3676 = vmatprep.mubr.f32.mxu0 0.0
        %3677 = vmatmul.mubr.f32.gmra.mrb[0].mxu0 %v3610
        %v3678 = vpop.f32.mrb[0].mxu0
        %v3679 = vadd.f32 0.0, %v3678
        %v3680 = vpop.f32.mrb[0].mxu0
        %3681 = vdwg.mxu0
        %3682 = vrot.lane.b32.xlu0 %v874, 32
        %v3683 = vpop.permute.xlu0 %3682
        %v3686 = vsel %vm1190, %v3453, 0
        %3688 = vmatprep.subr.mxu0 0.0
        %3689 = vmatpush1.msra.mxu0 %v3683
        %3690 = vmatprep.subr.mxu0 0.0
        %3691 = vmatpush1.msra.mxu0 0.0
        %3692 = vmatprep.subr.mxu0 0.0
        %3693 = vmatpush1.msra.mxu0 0.0
        %3694 = vmatprep.subr.mxu0 0.0
        %3695 = vmatpush1.msra.mxu0 0.0
        %3696 = vmatprep.subr.mxu0 0.0
        %3697 = vmatpush1.msra.mxu0 0.0
        %3698 = vmatprep.subr.mxu0 0.0
        %3699 = vmatpush1.msra.mxu0 0.0
        %3700 = vmatprep.subr.mxu0 0.0
        %3701 = vmatpush1.msra.mxu0 0.0
        %3702 = vmatprep.subr.mxu0 0.0
        %3703 = vmatpush1.msra.mxu0 0.0
        %3704 = vmatprep.subr.mxu0 0.0
        %3705 = vmatpush1.msra.mxu0 0.0
        %3706 = vmatprep.subr.mxu0 0.0
        %3707 = vmatpush1.msra.mxu0 0.0
        %3708 = vmatprep.subr.mxu0 0.0
        %3709 = vmatpush1.msra.mxu0 0.0
        %3710 = vmatprep.subr.mxu0 0.0
        %3711 = vmatpush1.msra.mxu0 0.0
        %3712 = vmatprep.subr.mxu0 0.0
        %3713 = vmatpush1.msra.mxu0 0.0
        %3714 = vmatprep.subr.mxu0 0.0
        %3715 = vmatpush1.msra.mxu0 0.0
        %3716 = vmatprep.subr.mxu0 0.0
        %3717 = vmatpush1.msra.mxu0 0.0
        %3718 = vmatprep.subr.mxu0 0.0
        %3719 = vmatpush1.msra.mxu0 0.0
        %3720 = vmatprep.subr.mxu0 0.0
        %3721 = vmatpush1.msra.mxu0 0.0
        %3722 = vmatprep.subr.mxu0 0.0
        %3723 = vmatpush1.msra.mxu0 0.0
        %3724 = vmatprep.subr.mxu0 0.0
        %3725 = vmatpush1.msra.mxu0 0.0
        %3726 = vmatprep.subr.mxu0 0.0
        %3727 = vmatpush1.msra.mxu0 0.0
        %3728 = vmatprep.subr.mxu0 0.0
        %3729 = vmatpush1.msra.mxu0 0.0
        %3730 = vmatprep.subr.mxu0 0.0
        %3731 = vmatpush1.msra.mxu0 0.0
        %3732 = vmatprep.subr.mxu0 0.0
        %3733 = vmatpush1.msra.mxu0 0.0
        %3734 = vmatprep.subr.mxu0 0.0
        %3735 = vmatpush1.msra.mxu0 0.0
        %3736 = vmatprep.subr.mxu0 0.0
        %3737 = vmatpush1.msra.mxu0 0.0
        %3738 = vmatprep.subr.mxu0 0.0
        %3739 = vmatpush1.msra.mxu0 0.0
        %3740 = vmatprep.subr.mxu0 0.0
        %3741 = vmatpush1.msra.mxu0 0.0
        %3742 = vmatprep.subr.mxu0 0.0
        %3743 = vmatpush1.msra.mxu0 0.0
        %3744 = vmatprep.subr.mxu0 0.0
        %3745 = vmatpush1.msra.mxu0 0.0
        %3746 = vmatprep.subr.mxu0 0.0
        %3747 = vmatpush1.msra.mxu0 0.0
        %3748 = vmatprep.subr.mxu0 0.0
        %3749 = vmatpush1.msra.mxu0 0.0
        %3750 = vmatprep.subr.mxu0 0.0
        %3751 = vmatpush1.msra.mxu0 0.0
        %3752 = vmatprep.mubr.f32.mxu0 0.0
        %3753 = vmatmul.mubr.f32.gmra.mrb[0].mxu0 %v3686
        %v3754 = vpop.f32.mrb[0].mxu0
        %v3755 = vadd.f32 0.0, %v3754
        %v3756 = vpop.f32.mrb[0].mxu0
        %3757 = vdwg.mxu0
        %v3758 = vpack.c.bf16 %v3603, %v3527
        %v3759 = vpack.c.bf16 %v3755, %v3679
        %v3760 = vld [vmem:[%s6 + $0x30] sm:$0xf]
        %v3761 = vld [vmem:[%s6 + $0x34] sm:$0xf]
        %v3762 = vld [vmem:[%s6 + $0x38] sm:$0xf]
        %v3763 = vld [vmem:[%s6 + $0x3c] sm:$0xf]
        %v3768 = vunpack.c.l.b16 %v3760
        %v3769 = vunpack.c.l.b16 %v3761
        %v3770 = vunpack.c.l.b16 %v3762
        %v3771 = vunpack.c.l.b16 %v3763
        %v3772 = vpack.c.b16 %v3769, %v3768
        %v3773 = vpack.c.b16 %v3771, %v3770
        %v3777 = vsel %vm877, %v3758, 0
        %v3780 = vsel %vm877, %v3759, 0
        %3782 = vmatprep.subr.bf16.mxu0 0
        %3783 = vmatpush1.bf16.msra.mxu0 %v3772
        %3784 = vmatprep.subr.bf16.mxu0 0
        %3785 = vmatpush1.bf16.msra.mxu0 %v3773
        %3786 = vmatprep.subr.bf16.mxu0 0
        %3787 = vmatpush1.bf16.msra.mxu0 0
        %3788 = vmatprep.subr.bf16.mxu0 0
        %3789 = vmatpush1.bf16.msra.mxu0 0
        %3790 = vmatprep.subr.bf16.mxu0 0
        %3791 = vmatpush1.bf16.msra.mxu0 0
        %3792 = vmatprep.subr.bf16.mxu0 0
        %3793 = vmatpush1.bf16.msra.mxu0 0
        %3794 = vmatprep.subr.bf16.mxu0 0
        %3795 = vmatpush1.bf16.msra.mxu0 0
        %3796 = vmatprep.subr.bf16.mxu0 0
        %3797 = vmatpush1.bf16.msra.mxu0 0
        %3798 = vmatprep.subr.bf16.mxu0 0
        %3799 = vmatpush1.bf16.msra.mxu0 0
        %3800 = vmatprep.subr.bf16.mxu0 0
        %3801 = vmatpush1.bf16.msra.mxu0 0
        %3802 = vmatprep.subr.bf16.mxu0 0
        %3803 = vmatpush1.bf16.msra.mxu0 0
        %3804 = vmatprep.subr.bf16.mxu0 0
        %3805 = vmatpush1.bf16.msra.mxu0 0
        %3806 = vmatprep.subr.bf16.mxu0 0
        %3807 = vmatpush1.bf16.msra.mxu0 0
        %3808 = vmatprep.subr.bf16.mxu0 0
        %3809 = vmatpush1.bf16.msra.mxu0 0
        %3810 = vmatprep.subr.bf16.mxu0 0
        %3811 = vmatpush1.bf16.msra.mxu0 0
        %3812 = vmatprep.subr.bf16.mxu0 0
        %3813 = vmatpush1.bf16.msra.mxu0 0
        %3814 = vmatprep.mubr.bf16.mxu0 0
        %3815 = vmatmul.mubr.bf16.gmra.mrb[0].mxu0 %v3777
        %v3816 = vpop.f32.mrb[0].mxu0
        %v3817 = vadd.f32 0.0, %v3816
        %v3818 = vpop.f32.mrb[0].mxu0
        %v3819 = vpop.f32.mrb[0].mxu0
        %v3820 = vadd.f32 0.0, %v3819
        %v3821 = vpop.f32.mrb[0].mxu0
        %3822 = vmatprep.mubr.bf16.mxu0 0
        %3823 = vmatmul.mubr.bf16.gmra.mrb[0].mxu0 %v3780
        %v3824 = vpop.f32.mrb[0].mxu0
        %v3825 = vadd.f32 0.0, %v3824
        %v3826 = vpop.f32.mrb[0].mxu0
        %v3827 = vpop.f32.mrb[0].mxu0
        %v3828 = vadd.f32 0.0, %v3827
        %v3829 = vpop.f32.mrb[0].mxu0
        %3830 = vdwg.mxu0
        %v3831 = vadd.f32 %v3086, %v3817
        %v3832 = vadd.f32 %v3087, %v3820
        %v3833 = vadd.f32 %v3088, %v3825
        %v3834 = vadd.f32 %v3089, %v3828
        %v3835 = vadd.f32 %v492, %v3831
        %v3836 = vadd.f32 %v493, %v3832
        %v3837 = vadd.f32 %v494, %v3833
        %v3838 = vadd.f32 %v495, %v3834
        %v3839 = vld [vmem:[%s7] sm:$0x1]
        %v3841 = vlaneseq
        %v3842 = vshrl.u32 %v3841, 7
        %v3843 = vsub.s32 0, %v3842
        %v3844 = vrot.slane %v3839, %v3843
        %v3846 = vadd.f32 %v3835, %v3844
        %v3847 = vadd.f32 %v3836, %v3844
        %v3848 = vadd.f32 %v3837, %v3844
        %v3849 = vadd.f32 %v3838, %v3844
        %v3850 = vld [vmem:[%s8] sm:$0x1]
        %v3851 = vld [vmem:[%s9] sm:$0x1]
        %3852 = vadd.xlane.f32.xlu0 %v3846
        %v3853 = vpop.xlane.xlu0 %3852
        %3854 = vadd.xlane.f32.xlu0 %v3847
        %v3855 = vpop.xlane.xlu0 %3854
        %3856 = vadd.xlane.f32.xlu0 %v3848
        %v3857 = vpop.xlane.xlu0 %3856
        %3858 = vadd.xlane.f32.xlu0 %v3849
        %v3859 = vpop.xlane.xlu0 %3858
        %v3860 = vmul.f32 %v3853, %v510
        %v3861 = vmul.f32 %v3855, %v510
        %v3862 = vmul.f32 %v3857, %v510
        %v3863 = vmul.f32 %v3859, %v510
        %v3864 = vsub.f32 %v3846, %v3860
        %v3865 = vsub.f32 %v3847, %v3861
        %v3866 = vsub.f32 %v3848, %v3862
        %v3867 = vsub.f32 %v3849, %v3863
        %v3868 = vmul.f32 %v3864, %v3864
        %v3869 = vmul.f32 %v3865, %v3865
        %v3870 = vmul.f32 %v3866, %v3866
        %v3871 = vmul.f32 %v3867, %v3867
        %3872 = vadd.xlane.f32.xlu0 %v3868
        %v3873 = vpop.xlane.xlu0 %3872
        %3874 = vadd.xlane.f32.xlu0 %v3869
        %v3875 = vpop.xlane.xlu0 %3874
        %3876 = vadd.xlane.f32.xlu0 %v3870
        %v3877 = vpop.xlane.xlu0 %3876
        %3878 = vadd.xlane.f32.xlu0 %v3871
        %v3879 = vpop.xlane.xlu0 %3878
        %v3880 = vmul.f32 %v3873, %v531
        %v3881 = vmul.f32 %v3875, %v531
        %v3882 = vmul.f32 %v3877, %v531
        %v3883 = vmul.f32 %v3879, %v531
        %v3884 = vrsqrt.pop %v3880
        %v3885 = vmul.f32 %v3880, %v3884
        %vm3886 = vcmp.eq.f32.partialorder %v3880, inf
        %v3887 = vsel %vm3886, %v3880, %v3885
        %vm3888 = vcmp.eq.f32.partialorder %v3880, 0.0
        %v3889 = vand.u32 %v3880, 2147483648
        %v3890 = vsel %vm3888, %v3889, %v3887
        %v3891 = vrsqrt.pop %v3881
        %v3892 = vmul.f32 %v3881, %v3891
        %vm3893 = vcmp.eq.f32.partialorder %v3881, inf
        %v3894 = vsel %vm3893, %v3881, %v3892
        %vm3895 = vcmp.eq.f32.partialorder %v3881, 0.0
        %v3896 = vand.u32 %v3881, 2147483648
        %v3897 = vsel %vm3895, %v3896, %v3894
        %v3898 = vrsqrt.pop %v3882
        %v3899 = vmul.f32 %v3882, %v3898
        %vm3900 = vcmp.eq.f32.partialorder %v3882, inf
        %v3901 = vsel %vm3900, %v3882, %v3899
        %vm3902 = vcmp.eq.f32.partialorder %v3882, 0.0
        %v3903 = vand.u32 %v3882, 2147483648
        %v3904 = vsel %vm3902, %v3903, %v3901
        %v3905 = vrsqrt.pop %v3883
        %v3906 = vmul.f32 %v3883, %v3905
        %vm3907 = vcmp.eq.f32.partialorder %v3883, inf
        %v3908 = vsel %vm3907, %v3883, %v3906
        %vm3909 = vcmp.eq.f32.partialorder %v3883, 0.0
        %v3910 = vand.u32 %v3883, 2147483648
        %v3911 = vsel %vm3909, %v3910, %v3908
        %v3913 = vlaneseq
        %v3914 = vshrl.u32 %v3913, 7
        %v3915 = vsub.s32 0, %v3914
        %v3916 = vrot.slane %v3850, %v3915
        %v3918 = vmul.f32 %v3916, %v3864
        %v3919 = vmul.f32 %v3916, %v3865
        %v3920 = vmul.f32 %v3916, %v3866
        %v3921 = vmul.f32 %v3916, %v3867
        %v3922 = vadd.f32 %v3890, 1e-06
        %v3923 = vadd.f32 %v3897, 1e-06
        %v3924 = vadd.f32 %v3904, 1e-06
        %v3925 = vadd.f32 %v3911, 1e-06
        %v3926 = vrcp.pop %v3922
        %v3927 = vmul.f32 %v3918, %v3926
        %v3928 = vrcp.pop %v3923
        %v3929 = vmul.f32 %v3919, %v3928
        %v3930 = vrcp.pop %v3924
        %v3931 = vmul.f32 %v3920, %v3930
        %v3932 = vrcp.pop %v3925
        %v3933 = vmul.f32 %v3921, %v3932
        %v3935 = vlaneseq
        %v3936 = vshrl.u32 %v3935, 7
        %v3937 = vsub.s32 0, %v3936
        %v3938 = vrot.slane %v3851, %v3937
        %v3940 = vadd.f32 %v3927, %v3938
        %v3941 = vadd.f32 %v3929, %v3938
        %v3942 = vadd.f32 %v3931, %v3938
        %v3943 = vadd.f32 %v3933, %v3938
        %v3944 = vpack.c.bf16 %v3941, %v3940
        %v3945 = vpack.c.bf16 %v3943, %v3942
        %v3946 = vld [vmem:[%s10] sm:$0xff]
        %v3947 = vld [vmem:[%s10 + $0x8] sm:$0xff]
        %v3948 = vld [vmem:[%s10 + $0x10] sm:$0xff]
        %v3949 = vld [vmem:[%s10 + $0x18] sm:$0xff]
        %v3950 = vld [vmem:[%s10 + $0x20] sm:$0xff]
        %v3951 = vld [vmem:[%s10 + $0x28] sm:$0xff]
        %v3952 = vld [vmem:[%s10 + $0x30] sm:$0xff]
        %v3953 = vld [vmem:[%s10 + $0x38] sm:$0xff]
        %v3954 = vld [vmem:[%s10 + $0x40] sm:$0xff]
        %v3955 = vld [vmem:[%s10 + $0x48] sm:$0xff]
        %v3956 = vld [vmem:[%s10 + $0x50] sm:$0xff]
        %v3957 = vld [vmem:[%s10 + $0x58] sm:$0xff]
        %v3958 = vld [vmem:[%s10 + $0x60] sm:$0xff]
        %v3959 = vld [vmem:[%s10 + $0x68] sm:$0xff]
        %v3960 = vld [vmem:[%s10 + $0x70] sm:$0xff]
        %v3961 = vld [vmem:[%s10 + $0x78] sm:$0xff]
        %v3962 = vld [vmem:[%s11] sm:$0x3]
        %v3964 = vlaneseq
        %v3965 = vshrl.u32 %v3964, 7
        %v3966 = vsub.s32 0, %v3965
        %v3967 = vrot.slane %v3962, %v3966
        %v3968 = vlaneseq
        %v3969 = vshrl.u32 %v3968, 7
        %v3970 = vsub.s32 1, %v3969
        %v3971 = vrot.slane %v3962, %v3970
        %v3990 = vunpack.c.l.b16 %v3946
        %v3991 = vunpack.c.h.b16 %v3946
        %v3992 = vunpack.c.l.b16 %v3947
        %v3993 = vunpack.c.h.b16 %v3947
        %v3994 = vunpack.c.l.b16 %v3948
        %v3995 = vunpack.c.h.b16 %v3948
        %v3996 = vunpack.c.l.b16 %v3949
        %v3997 = vunpack.c.h.b16 %v3949
        %v3998 = vunpack.c.l.b16 %v3950
        %v3999 = vunpack.c.h.b16 %v3950
        %v4000 = vunpack.c.l.b16 %v3951
        %v4001 = vunpack.c.h.b16 %v3951
        %v4002 = vunpack.c.l.b16 %v3952
        %v4003 = vunpack.c.h.b16 %v3952
        %v4004 = vunpack.c.l.b16 %v3953
        %v4005 = vunpack.c.h.b16 %v3953
        %v4006 = vunpack.c.l.b16 %v3954
        %v4007 = vunpack.c.h.b16 %v3954
        %v4008 = vunpack.c.l.b16 %v3955
        %v4009 = vunpack.c.h.b16 %v3955
        %v4010 = vunpack.c.l.b16 %v3956
        %v4011 = vunpack.c.h.b16 %v3956
        %v4012 = vunpack.c.l.b16 %v3957
        %v4013 = vunpack.c.h.b16 %v3957
        %v4014 = vunpack.c.l.b16 %v3958
        %v4015 = vunpack.c.h.b16 %v3958
        %v4016 = vunpack.c.l.b16 %v3959
        %v4017 = vunpack.c.h.b16 %v3959
        %v4018 = vunpack.c.l.b16 %v3960
        %v4019 = vunpack.c.h.b16 %v3960
        %v4020 = vunpack.c.l.b16 %v3961
        %v4021 = vunpack.c.h.b16 %v3961
        %v4022 = vpack.c.b16 %v3992, %v3990
        %v4023 = vpack.c.b16 %v3993, %v3991
        %v4024 = vpack.c.b16 %v3996, %v3994
        %v4025 = vpack.c.b16 %v3997, %v3995
        %v4026 = vpack.c.b16 %v4000, %v3998
        %v4027 = vpack.c.b16 %v4001, %v3999
        %v4028 = vpack.c.b16 %v4004, %v4002
        %v4029 = vpack.c.b16 %v4005, %v4003
        %v4030 = vpack.c.b16 %v4008, %v4006
        %v4031 = vpack.c.b16 %v4009, %v4007
        %v4032 = vpack.c.b16 %v4012, %v4010
        %v4033 = vpack.c.b16 %v4013, %v4011
        %v4034 = vpack.c.b16 %v4016, %v4014
        %v4035 = vpack.c.b16 %v4017, %v4015
        %v4036 = vpack.c.b16 %v4020, %v4018
        %v4037 = vpack.c.b16 %v4021, %v4019
        %4054 = vmatprep.subr.bf16.mxu0 %v4023
        %4055 = vmatpush1.bf16.msra.mxu0 %v4022
        %4056 = vmatprep.subr.bf16.mxu0 %v4025
        %4057 = vmatpush1.bf16.msra.mxu0 %v4024
        %4058 = vmatprep.subr.bf16.mxu0 %v4027
        %4059 = vmatpush1.bf16.msra.mxu0 %v4026
        %4060 = vmatprep.subr.bf16.mxu0 %v4029
        %4061 = vmatpush1.bf16.msra.mxu0 %v4028
        %4062 = vmatprep.subr.bf16.mxu0 %v4031
        %4063 = vmatpush1.bf16.msra.mxu0 %v4030
        %4064 = vmatprep.subr.bf16.mxu0 %v4033
        %4065 = vmatpush1.bf16.msra.mxu0 %v4032
        %4066 = vmatprep.subr.bf16.mxu0 %v4035
        %4067 = vmatpush1.bf16.msra.mxu0 %v4034
        %4068 = vmatprep.subr.bf16.mxu0 %v4037
        %4069 = vmatpush1.bf16.msra.mxu0 %v4036
        %4070 = vmatprep.subr.bf16.mxu0 0
        %4071 = vmatpush1.bf16.msra.mxu0 0
        %4072 = vmatprep.subr.bf16.mxu0 0
        %4073 = vmatpush1.bf16.msra.mxu0 0
        %4074 = vmatprep.subr.bf16.mxu0 0
        %4075 = vmatpush1.bf16.msra.mxu0 0
        %4076 = vmatprep.subr.bf16.mxu0 0
        %4077 = vmatpush1.bf16.msra.mxu0 0
        %4078 = vmatprep.subr.bf16.mxu0 0
        %4079 = vmatpush1.bf16.msra.mxu0 0
        %4080 = vmatprep.subr.bf16.mxu0 0
        %4081 = vmatpush1.bf16.msra.mxu0 0
        %4082 = vmatprep.subr.bf16.mxu0 0
        %4083 = vmatpush1.bf16.msra.mxu0 0
        %4084 = vmatprep.subr.bf16.mxu0 0
        %4085 = vmatpush1.bf16.msra.mxu0 0
        %4086 = vmatprep.mubr.bf16.mxu0 0
        %4087 = vmatmul.mubr.bf16.gmra.mrb[0].mxu0 %v3944
        %v4088 = vpop.f32.mrb[0].mxu0
        %v4089 = vadd.f32 %v3967, %v4088
        %v4090 = vpop.f32.mrb[0].mxu0
        %v4091 = vadd.f32 %v3971, %v4090
        %v4092 = vpop.f32.mrb[0].mxu0
        %v4093 = vadd.f32 %v3967, %v4092
        %v4094 = vpop.f32.mrb[0].mxu0
        %v4095 = vadd.f32 %v3971, %v4094
        %4096 = vmatprep.mubr.bf16.mxu0 0
        %4097 = vmatmul.mubr.bf16.gmra.mrb[0].mxu0 %v3945
        %v4098 = vpop.f32.mrb[0].mxu0
        %v4099 = vadd.f32 %v3967, %v4098
        %v4100 = vpop.f32.mrb[0].mxu0
        %v4101 = vadd.f32 %v3971, %v4100
        %v4102 = vpop.f32.mrb[0].mxu0
        %v4103 = vadd.f32 %v3967, %v4102
        %v4104 = vpop.f32.mrb[0].mxu0
        %v4105 = vadd.f32 %v3971, %v4104
        %4106 = vdwg.mxu0
        %v4107 = vmax.f32 %v4089, 0.0
        %v4108 = vmax.f32 %v4091, 0.0
        %v4109 = vmax.f32 %v4093, 0.0
        %v4110 = vmax.f32 %v4095, 0.0
        %v4111 = vmax.f32 %v4099, 0.0
        %v4112 = vmax.f32 %v4101, 0.0
        %v4113 = vmax.f32 %v4103, 0.0
        %v4114 = vmax.f32 %v4105, 0.0
        %v4115 = vpack.c.bf16 %v4109, %v4107
        %v4116 = vpack.c.bf16 %v4110, %v4108
        %v4117 = vpack.c.bf16 %v4113, %v4111
        %v4118 = vpack.c.bf16 %v4114, %v4112
        %v4119 = vld [vmem:[%s12] sm:$0xf]
        %v4120 = vld [vmem:[%s12 + $0x4] sm:$0xf]
        %v4121 = vld [vmem:[%s12 + $0x8] sm:$0xf]
        %v4122 = vld [vmem:[%s12 + $0xc] sm:$0xf]
        %v4123 = vld [vmem:[%s12 + $0x10] sm:$0xf]
        %v4124 = vld [vmem:[%s12 + $0x14] sm:$0xf]
        %v4125 = vld [vmem:[%s12 + $0x18] sm:$0xf]
        %v4126 = vld [vmem:[%s12 + $0x1c] sm:$0xf]
        %v4127 = vld [vmem:[%s12 + $0x20] sm:$0xf]
        %v4128 = vld [vmem:[%s12 + $0x24] sm:$0xf]
        %v4129 = vld [vmem:[%s12 + $0x28] sm:$0xf]
        %v4130 = vld [vmem:[%s12 + $0x2c] sm:$0xf]
        %v4131 = vld [vmem:[%s12 + $0x30] sm:$0xf]
        %v4132 = vld [vmem:[%s12 + $0x34] sm:$0xf]
        %v4133 = vld [vmem:[%s12 + $0x38] sm:$0xf]
        %v4134 = vld [vmem:[%s12 + $0x3c] sm:$0xf]
        %v4135 = vld [vmem:[%s12 + $0x40] sm:$0xf]
        %v4136 = vld [vmem:[%s12 + $0x44] sm:$0xf]
        %v4137 = vld [vmem:[%s12 + $0x48] sm:$0xf]
        %v4138 = vld [vmem:[%s12 + $0x4c] sm:$0xf]
        %v4139 = vld [vmem:[%s12 + $0x50] sm:$0xf]
        %v4140 = vld [vmem:[%s12 + $0x54] sm:$0xf]
        %v4141 = vld [vmem:[%s12 + $0x58] sm:$0xf]
        %v4142 = vld [vmem:[%s12 + $0x5c] sm:$0xf]
        %v4143 = vld [vmem:[%s12 + $0x60] sm:$0xf]
        %v4144 = vld [vmem:[%s12 + $0x64] sm:$0xf]
        %v4145 = vld [vmem:[%s12 + $0x68] sm:$0xf]
        %v4146 = vld [vmem:[%s12 + $0x6c] sm:$0xf]
        %v4147 = vld [vmem:[%s12 + $0x70] sm:$0xf]
        %v4148 = vld [vmem:[%s12 + $0x74] sm:$0xf]
        %v4149 = vld [vmem:[%s12 + $0x78] sm:$0xf]
        %v4150 = vld [vmem:[%s12 + $0x7c] sm:$0xf]
        %v4151 = vld [vmem:[%s13] sm:$0x1]
        %v4153 = vlaneseq
        %v4154 = vshrl.u32 %v4153, 7
        %v4155 = vsub.s32 0, %v4154
        %v4156 = vrot.slane %v4151, %v4155
        %v4190 = vunpack.c.l.b16 %v4119
        %v4191 = vunpack.c.l.b16 %v4120
        %v4192 = vunpack.c.l.b16 %v4121
        %v4193 = vunpack.c.l.b16 %v4122
        %v4194 = vunpack.c.l.b16 %v4123
        %v4195 = vunpack.c.l.b16 %v4124
        %v4196 = vunpack.c.l.b16 %v4125
        %v4197 = vunpack.c.l.b16 %v4126
        %v4198 = vunpack.c.l.b16 %v4127
        %v4199 = vunpack.c.l.b16 %v4128
        %v4200 = vunpack.c.l.b16 %v4129
        %v4201 = vunpack.c.l.b16 %v4130
        %v4202 = vunpack.c.l.b16 %v4131
        %v4203 = vunpack.c.l.b16 %v4132
        %v4204 = vunpack.c.l.b16 %v4133
        %v4205 = vunpack.c.l.b16 %v4134
        %v4206 = vunpack.c.l.b16 %v4135
        %v4207 = vunpack.c.l.b16 %v4136
        %v4208 = vunpack.c.l.b16 %v4137
        %v4209 = vunpack.c.l.b16 %v4138
        %v4210 = vunpack.c.l.b16 %v4139
        %v4211 = vunpack.c.l.b16 %v4140
        %v4212 = vunpack.c.l.b16 %v4141
        %v4213 = vunpack.c.l.b16 %v4142
        %v4214 = vunpack.c.l.b16 %v4143
        %v4215 = vunpack.c.l.b16 %v4144
        %v4216 = vunpack.c.l.b16 %v4145
        %v4217 = vunpack.c.l.b16 %v4146
        %v4218 = vunpack.c.l.b16 %v4147
        %v4219 = vunpack.c.l.b16 %v4148
        %v4220 = vunpack.c.l.b16 %v4149
        %v4221 = vunpack.c.l.b16 %v4150
        %v4222 = vpack.c.b16 %v4191, %v4190
        %v4223 = vpack.c.b16 %v4193, %v4192
        %v4224 = vpack.c.b16 %v4195, %v4194
        %v4225 = vpack.c.b16 %v4197, %v4196
        %v4226 = vpack.c.b16 %v4199, %v4198
        %v4227 = vpack.c.b16 %v4201, %v4200
        %v4228 = vpack.c.b16 %v4203, %v4202
        %v4229 = vpack.c.b16 %v4205, %v4204
        %v4230 = vpack.c.b16 %v4207, %v4206
        %v4231 = vpack.c.b16 %v4209, %v4208
        %v4232 = vpack.c.b16 %v4211, %v4210
        %v4233 = vpack.c.b16 %v4213, %v4212
        %v4234 = vpack.c.b16 %v4215, %v4214
        %v4235 = vpack.c.b16 %v4217, %v4216
        %v4236 = vpack.c.b16 %v4219, %v4218
        %v4237 = vpack.c.b16 %v4221, %v4220
        %4254 = vmatprep.subr.bf16.mxu0 0
        %4255 = vmatpush1.bf16.msra.mxu0 %v4222
        %4256 = vmatprep.subr.bf16.mxu0 0
        %4257 = vmatpush1.bf16.msra.mxu0 %v4223
        %4258 = vmatprep.subr.bf16.mxu0 0
        %4259 = vmatpush1.bf16.msra.mxu0 %v4224
        %4260 = vmatprep.subr.bf16.mxu0 0
        %4261 = vmatpush1.bf16.msra.mxu0 %v4225
        %4262 = vmatprep.subr.bf16.mxu0 0
        %4263 = vmatpush1.bf16.msra.mxu0 %v4226
        %4264 = vmatprep.subr.bf16.mxu0 0
        %4265 = vmatpush1.bf16.msra.mxu0 %v4227
        %4266 = vmatprep.subr.bf16.mxu0 0
        %4267 = vmatpush1.bf16.msra.mxu0 %v4228
        %4268 = vmatprep.subr.bf16.mxu0 0
        %4269 = vmatpush1.bf16.msra.mxu0 %v4229
        %4270 = vmatprep.subr.bf16.mxu0 0
        %4271 = vmatpush1.bf16.msra.mxu0 %v4230
        %4272 = vmatprep.subr.bf16.mxu0 0
        %4273 = vmatpush1.bf16.msra.mxu0 %v4231
        %4274 = vmatprep.subr.bf16.mxu0 0
        %4275 = vmatpush1.bf16.msra.mxu0 %v4232
        %4276 = vmatprep.subr.bf16.mxu0 0
        %4277 = vmatpush1.bf16.msra.mxu0 %v4233
        %4278 = vmatprep.subr.bf16.mxu0 0
        %4279 = vmatpush1.bf16.msra.mxu0 %v4234
        %4280 = vmatprep.subr.bf16.mxu0 0
        %4281 = vmatpush1.bf16.msra.mxu0 %v4235
        %4282 = vmatprep.subr.bf16.mxu0 0
        %4283 = vmatpush1.bf16.msra.mxu0 %v4236
        %4284 = vmatprep.subr.bf16.mxu0 0
        %4285 = vmatpush1.bf16.msra.mxu0 %v4237
        %4286 = vmatprep.mubr.bf16.mxu0 %v4116
        %4287 = vmatmul.mubr.bf16.gmra.mrb[0].mxu0 %v4115
        %v4288 = vpop.f32.mrb[0].mxu0
        %v4289 = vadd.f32 %v4156, %v4288
        %v4290 = vpop.f32.mrb[0].mxu0
        %v4291 = vpop.f32.mrb[0].mxu0
        %v4292 = vadd.f32 %v4156, %v4291
        %v4293 = vpop.f32.mrb[0].mxu0
        %4294 = vmatprep.mubr.bf16.mxu0 %v4118
        %4295 = vmatmul.mubr.bf16.gmra.mrb[0].mxu0 %v4117
        %v4296 = vpop.f32.mrb[0].mxu0
        %v4297 = vadd.f32 %v4156, %v4296
        %v4298 = vpop.f32.mrb[0].mxu0
        %v4299 = vpop.f32.mrb[0].mxu0
        %v4300 = vadd.f32 %v4156, %v4299
        %v4301 = vpop.f32.mrb[0].mxu0
        %4302 = vdwg.mxu0
        %v4303 = vadd.f32 %v3846, %v4289
        %v4304 = vadd.f32 %v3847, %v4292
        %v4305 = vadd.f32 %v3848, %v4297
        %v4306 = vadd.f32 %v3849, %v4300
        %4307 = vst [vmem:[%s477] sm:$0xff] %v4303
        %4308 = vst [vmem:[%s477 + $0x8] sm:$0xff] %v4304
        %4309 = vst [vmem:[%s477 + $0x10] sm:$0xff] %v4305
        %4310 = vst [vmem:[%s477 + $0x18] sm:$0xff] %v4306
        %s4311 = sand.u32 %s340, 1
        %s4312 = scalar_lea.sflag [#allocation3], %s4311
        %s4313 = sand.u32 %s340, 1
        %s4314 = smul.addr %s4313, 32
        %s4315 = scalar_lea.vmem [#allocation2], %s4314
        // Predicated region
        $region77: #{transformer_block.1} parent=75 // pred_check
          %p4316 = pneg %p350
        $region78: #{transformer_block.1} parent=75 // pred_check_branch
          %4318 = sbr.rel (%p4316) target = $region80
        $region79: #{transformer_block.1} parent=75 // pred_region
          %s4319 = smul.u32 4, %s28
          %s4321 = ssub.s32 512, 512
          %4322 = vsyncadd %s4312, %s4321
          %s4323 = smul.addr %s4319, 128
          %s4324 = scalar_lea.hbm %s14, %s4323
          %s4325 = sshll.u32 %s4315, 4
          %s4326 = int_to_ptr.vmem [resolvable:$true] %s4325
          %4331 = dma.vmem_to_hbm [thread:$0]  %s4326, 512, %s4324, %s4312, 128, 128, 8
        $region80: #{transformer_block.1} parent=75 // pred_fallthru
          _
      $region76: #{transformer_block.1} parent=5 // pred_fallthru
        _
      %p4332 = scmp.le.s32.totalorder 2, %s23
      // Predicated region
      $region81: #{transformer_block.1} parent=5 // pred_check
        %p4333 = pneg %p4332
      $region82: #{transformer_block.1} parent=5 // pred_check_branch
        %4335 = sbr.rel (%p4333) target = $region84
      $region83: #{transformer_block.1} parent=5 // pred_region
        %s4336 = ssub.s32 %s23, 2
        // Predicated region
        $region85: #{transformer_block.1} parent=83 // pred_check
          %p4337 = pneg %p356
        $region86: #{transformer_block.1} parent=83 // pred_check_branch
          %4339 = sbr.rel (%p4337) target = $region88
        $region87: #{transformer_block.1} parent=83 // pred_region
          %s4340 = sand.u32 %s341, 1
          %s4341 = scalar_lea.sflag [#allocation3], %s4340
          %s4342 = sand.u32 %s341, 1
          %s4343 = smul.addr %s4342, 32
          %s4344 = scalar_lea.vmem [#allocation2], %s4343
          %4345 = dma.done %s4341, 512
        $region88: #{transformer_block.1} parent=83 // pred_fallthru
          _
      $region84: #{transformer_block.1} parent=5 // pred_fallthru
        _
    $region6: #{transformer_block.1} parent=1 // loop_footer
      %s27 = sadd.s32 1, %s23
    $region7: #{transformer_block.1} parent=1 // loop_footer_branch
      %22 = sbr.rel target = $region3
    $region8: #{transformer_block.1} parent=1 // loop_exit
      _
    %4346 = vsyncpa [#allocation3], 1
    %s4347 = scalar_lea.sflag [#allocation3], 1
    %4348 = vsyncpa %s4347, 1

</llo_original>
